<compile_context>
chip_gen: v6e
topology: v6e:2x2x1
jax: 0.10.0
libtpu: 0.0.40
codegen_flags: <defaults>
</compile_context>

<pallas_src>
import functools

import jax
import jax.numpy as jnp
from jax.experimental import pallas as pl
from jax.experimental.pallas import tpu as pltpu


# ------------------------------- fused kernel -------------------------------

def _hybrid_block_kernel(H, W,
                         x_ref,
                         w1a_ref, b1a_ref, w1b_ref, b1b_ref,
                         wp_ref, bp_ref, wc_ref, bc_ref,
                         w3a_ref, w3b_ref, b3_ref,
                         o_ref):
    """One grid step = one image. All intermediates stay in VMEM/vregs."""
    x2d = x_ref[0]                                     # (H*W, Cin) f32
    xb = x2d.astype(jnp.bfloat16)

    def mm(a, w_ref):
        return jnp.dot(a, w_ref[...], preferred_element_type=jnp.float32)

    # conv1_a / conv1_b (1x1) -> folded-BN shift -> relu   (f32 epilogue)
    a = jnp.maximum(mm(xb, w1a_ref) + b1a_ref[...], 0.0)      # (H*W, gw)
    b = jnp.maximum(mm(xb, w1b_ref) + b1b_ref[...], 0.0)

    gw = a.shape[-1]
    a3 = a.reshape(H, W, gw)
    b3d = b.reshape(H, W, gw)

    # conv_polar padding = MixPad2d: H circular first, then W replicate
    a_h = jnp.concatenate([a3[H - 1:H], a3, a3[0:1]], axis=0)            # (H+2, W, gw)
    a_p = jnp.concatenate([a_h[:, 0:1], a_h, a_h[:, W - 1:W]], axis=1)   # (H+2, W+2, gw)

    # conv_cart padding = zeros
    zr = jnp.zeros((1, W, gw), jnp.float32)
    b_h = jnp.concatenate([zr, b3d, zr], axis=0)
    zc = jnp.zeros((H + 2, 1, gw), jnp.float32)
    b_p = jnp.concatenate([zc, b_h, zc], axis=1)

    def conv3x3(xpad, w_ref, shift_ref):
        # im2col: one K = 9*gw matmul instead of nine K = gw matmuls.
        taps = [xpad[ky:ky + H, kx:kx + W, :]
                for ky in range(3) for kx in range(3)]
        patch = jnp.concatenate(taps, axis=-1).reshape(H * W, 9 * gw)
        y = mm(patch.astype(jnp.bfloat16), w_ref) + shift_ref[...]
        return jnp.maximum(y, 0.0)

    a2 = conv3x3(a_p, wp_ref, bp_ref)                  # (H*W, gw)
    b2 = conv3x3(b_p, wc_ref, bc_ref)

    # conv3 on channel-concat == split matmul; + folded-BN shift + residual
    y = mm(a2.astype(jnp.bfloat16), w3a_ref) + mm(b2.astype(jnp.bfloat16), w3b_ref)
    y = y + b3_ref[...] + x2d                          # residual add in f32
    o_ref[0] = jnp.maximum(y, 0.0)


# ------------------------------ pallas_call glue ----------------------------

def _w_spec(arr):
    # Full-array weight block; block index constant across the batch grid.
    assert arr.ndim == 2
    return pl.BlockSpec(arr.shape, lambda n: (0, 0))


def hybrid_block_forward(x_nchw, rois, params):
    x = jnp.transpose(x_nchw, (0, 2, 3, 1)).astype(jnp.float32)   # NHWC
    N, H, W, Cin = x.shape
    gw = params["w1a"].shape[1]
    out_ch = params["b3"].shape[1]
    x2 = x.reshape(N, H * W, Cin)                                  # lane-dense

    weights = (params["w1a"], params["b1a"], params["w1b"], params["b1b"],
               params["wp"], params["bp"], params["wc"], params["bc"],
               params["w3a"], params["w3b"], params["b3"])

    flops = 2 * N * H * W * (2 * Cin * gw + 18 * gw * gw + 2 * gw * out_ch)
    bytes_accessed = (x2.size * 4 + N * H * W * out_ch * 4
                      + sum(int(w.size) * w.dtype.itemsize for w in weights))

    out = pl.pallas_call(
        functools.partial(_hybrid_block_kernel, H, W),
        out_shape=jax.ShapeDtypeStruct((N, H * W, out_ch), jnp.float32),
        grid=(N,),
        in_specs=[pl.BlockSpec((1, H * W, Cin), lambda n: (n, 0, 0))]
                 + [_w_spec(w) for w in weights],
        out_specs=pl.BlockSpec((1, H * W, out_ch), lambda n: (n, 0, 0)),
        compiler_params=pltpu.CompilerParams(
            dimension_semantics=("parallel",)),
        cost_estimate=pl.CostEstimate(flops=flops, transcendentals=0,
                                      bytes_accessed=bytes_accessed),
    )(x2, *weights)

    out = out.reshape(N, H, W, out_ch)
    return dict(x=jnp.transpose(out, (0, 3, 1, 2)), rois=rois)


# ------------------------------ parameter setup -----------------------------

def _bn_fold(gamma, beta, mean, var, eps=1e-5):
    scale = gamma / jnp.sqrt(var + eps)
    shift = beta - mean * scale
    return scale.astype(jnp.float32), shift.reshape(1, -1).astype(jnp.float32)


def make_params(key, inplanes, planes, cardinality=1, bottleneck_width=32):
    group_width = int(planes * (bottleneck_width / 64.0)) * cardinality
    out_ch = planes * 4
    ks = list(jax.random.split(key, 10))

    def norm(k, shape, std=0.1):
        return (std * jax.random.normal(k, shape)).astype(jnp.float32)

    def bn(k, c):
        k1, k2, k3, k4 = jax.random.split(k, 4)
        gamma = 1.0 + 0.05 * jax.random.normal(k1, (c,))
        beta = 0.05 * jax.random.normal(k2, (c,))
        mean = 0.05 * jax.random.normal(k3, (c,))
        var = 1.0 + 0.1 * jnp.abs(jax.random.normal(k4, (c,)))
        return _bn_fold(gamma, beta, mean, var)

    def fold(w, scale):
        # Fold BN scale into conv weight columns; store bf16 for MXU inputs.
        return (w * scale[None, :]).astype(jnp.bfloat16)

    p = {}
    s1a, p["b1a"] = bn(ks[2], group_width)
    s1b, p["b1b"] = bn(ks[3], group_width)
    p["w1a"] = fold(norm(ks[0], (inplanes, group_width)), s1a)
    p["w1b"] = fold(norm(ks[1], (inplanes, group_width)), s1b)

    # 3x3 weights: (3, 3, Cin, Cout) -> (9*Cin, Cout), taps in (ky, kx)
    # row-major order, matching the in-kernel im2col column ordering.
    sp, p["bp"] = bn(ks[5], group_width)
    p["wp"] = fold(norm(ks[4], (3, 3, group_width, group_width))
                   .reshape(9 * group_width, group_width), sp)
    sc, p["bc"] = bn(ks[7], group_width)
    p["wc"] = fold(norm(ks[6], (3, 3, group_width, group_width))
                   .reshape(9 * group_width, group_width), sc)

    s3, p["b3"] = bn(ks[9], out_ch)
    w3 = fold(norm(ks[8], (2 * group_width, out_ch)), s3)
    p["w3a"] = w3[:group_width]   # acts on out_a (first half of channel concat)
    p["w3b"] = w3[group_width:]   # acts on out_b (second half)
    return p


# ---------------------------------- main -------------------------------------

if __name__ == "__main__":
    key = jax.random.PRNGKey(0)
    k_x, k_p = jax.random.split(key)

    # planes=32 -> group_width=16, out_ch = planes*4 = 128 = inplanes
    # (downsample=None requires inplanes == planes*4; 128-ch output is
    #  lane-dense for the HBM writeback).
    N, H, W = 2, 16, 16
    planes = 32
    inplanes = planes * 4

    x = jax.random.normal(k_x, (N, inplanes, H, W), dtype=jnp.float32)
    rois = jnp.array([[2.0, 2.0, 12.0, 12.0],
                      [3.0, 3.0, 13.0, 13.0]], dtype=jnp.float32)

    params = make_params(k_p, inplanes, planes)

    fwd = jax.jit(hybrid_block_forward)
    out = fwd(x, rois, params)
    jax.block_until_ready(out["x"])

    assert out["x"].shape == (N, planes * 4, H, W)
    assert out["rois"].shape == rois.shape
    print("KERNEL_OK")
</pallas_src>

<mosaic_0001>
module attributes {stable_mosaic.version = 11 : i64} {
  func.func @_hybrid_block_kernel(%arg0: i32, %arg1: memref<1x256x128xf32, #tpu.memory_space<vmem>>, %arg2: memref<128x16xbf16, #tpu.memory_space<vmem>>, %arg3: memref<1x16xf32, #tpu.memory_space<vmem>>, %arg4: memref<128x16xbf16, #tpu.memory_space<vmem>>, %arg5: memref<1x16xf32, #tpu.memory_space<vmem>>, %arg6: memref<144x16xbf16, #tpu.memory_space<vmem>>, %arg7: memref<1x16xf32, #tpu.memory_space<vmem>>, %arg8: memref<144x16xbf16, #tpu.memory_space<vmem>>, %arg9: memref<1x16xf32, #tpu.memory_space<vmem>>, %arg10: memref<16x128xbf16, #tpu.memory_space<vmem>>, %arg11: memref<16x128xbf16, #tpu.memory_space<vmem>>, %arg12: memref<1x128xf32, #tpu.memory_space<vmem>>, %arg13: memref<1x256x128xf32, #tpu.memory_space<vmem>>) attributes {dimension_semantics = [#tpu.dimension_semantics<parallel>], iteration_bounds = array<i64: 2>, scalar_prefetch = 0 : i64, scratch_operands = 0 : i64, tpu.core_type = #tpu.core_type<tc>, window_params = [{transform_indices = @transform_0, window_bounds = array<i64: 1, 256, 128>}, {pipeline_mode = #tpu.pipeline_mode<synchronous>, transform_indices = @transform_1, window_bounds = array<i64: 128, 16>}, {pipeline_mode = #tpu.pipeline_mode<synchronous>, transform_indices = @transform_2, window_bounds = array<i64: 1, 16>}, {pipeline_mode = #tpu.pipeline_mode<synchronous>, transform_indices = @transform_3, window_bounds = array<i64: 128, 16>}, {pipeline_mode = #tpu.pipeline_mode<synchronous>, transform_indices = @transform_4, window_bounds = array<i64: 1, 16>}, {pipeline_mode = #tpu.pipeline_mode<synchronous>, transform_indices = @transform_5, window_bounds = array<i64: 144, 16>}, {pipeline_mode = #tpu.pipeline_mode<synchronous>, transform_indices = @transform_6, window_bounds = array<i64: 1, 16>}, {pipeline_mode = #tpu.pipeline_mode<synchronous>, transform_indices = @transform_7, window_bounds = array<i64: 144, 16>}, {pipeline_mode = #tpu.pipeline_mode<synchronous>, transform_indices = @transform_8, window_bounds = array<i64: 1, 16>}, {pipeline_mode = #tpu.pipeline_mode<synchronous>, transform_indices = @transform_9, window_bounds = array<i64: 16, 128>}, {pipeline_mode = #tpu.pipeline_mode<synchronous>, transform_indices = @transform_10, window_bounds = array<i64: 16, 128>}, {pipeline_mode = #tpu.pipeline_mode<synchronous>, transform_indices = @transform_11, window_bounds = array<i64: 1, 128>}, {transform_indices = @transform_12, window_bounds = array<i64: 1, 256, 128>}]} {
    %c0 = arith.constant 0 : index
    %c0_0 = arith.constant 0 : index
    %c0_1 = arith.constant 0 : index
    %0 = vector.load %arg1[%c0, %c0_0, %c0_1] : memref<1x256x128xf32, #tpu.memory_space<vmem>>, vector<1x256x128xf32>
    %1 = vector.shape_cast %0 : vector<1x256x128xf32> to vector<256x128xf32>
    %2 = arith.truncf %1 : vector<256x128xf32> to vector<256x128xbf16>
    %c0_2 = arith.constant 0 : index
    %c0_3 = arith.constant 0 : index
    %3 = vector.load %arg2[%c0_2, %c0_3] : memref<128x16xbf16, #tpu.memory_space<vmem>>, vector<128x16xbf16>
    %cst = arith.constant dense<0.000000e+00> : vector<256x16xf32>
    %4 = tpu.matmul %2, %3, %cst {dimension_numbers = #tpu.dot_dimension_numbers<[1], [0], [0], [1], [0, 0, 1, 1], [], []>} : vector<256x128xbf16>, vector<128x16xbf16>, vector<256x16xf32> -> vector<256x16xf32>
    %c0_4 = arith.constant 0 : index
    %c0_5 = arith.constant 0 : index
    %5 = vector.load %arg3[%c0_4, %c0_5] : memref<1x16xf32, #tpu.memory_space<vmem>>, vector<1x16xf32>
    %6 = vector.broadcast %5 : vector<1x16xf32> to vector<256x16xf32>
    %7 = arith.addf %4, %6 : vector<256x16xf32>
    %cst_6 = arith.constant 0.000000e+00 : f32
    %8 = vector.broadcast %cst_6 : f32 to vector<256x16xf32>
    %9 = arith.maximumf %7, %8 : vector<256x16xf32>
    %c0_7 = arith.constant 0 : index
    %c0_8 = arith.constant 0 : index
    %10 = vector.load %arg4[%c0_7, %c0_8] : memref<128x16xbf16, #tpu.memory_space<vmem>>, vector<128x16xbf16>
    %cst_9 = arith.constant dense<0.000000e+00> : vector<256x16xf32>
    %11 = tpu.matmul %2, %10, %cst_9 {dimension_numbers = #tpu.dot_dimension_numbers<[1], [0], [0], [1], [0, 0, 1, 1], [], []>} : vector<256x128xbf16>, vector<128x16xbf16>, vector<256x16xf32> -> vector<256x16xf32>
    %c0_10 = arith.constant 0 : index
    %c0_11 = arith.constant 0 : index
    %12 = vector.load %arg5[%c0_10, %c0_11] : memref<1x16xf32, #tpu.memory_space<vmem>>, vector<1x16xf32>
    %13 = vector.broadcast %12 : vector<1x16xf32> to vector<256x16xf32>
    %14 = arith.addf %11, %13 : vector<256x16xf32>
    %cst_12 = arith.constant 0.000000e+00 : f32
    %15 = vector.broadcast %cst_12 : f32 to vector<256x16xf32>
    %16 = arith.maximumf %14, %15 : vector<256x16xf32>
    %17 = vector.shape_cast %9 : vector<256x16xf32> to vector<16x16x16xf32>
    %18 = vector.shape_cast %16 : vector<256x16xf32> to vector<16x16x16xf32>
    %19 = vector.extract_strided_slice %17 {offsets = [15, 0, 0], sizes = [1, 16, 16], strides = [1, 1, 1]} : vector<16x16x16xf32> to vector<1x16x16xf32>
    %20 = vector.extract_strided_slice %17 {offsets = [0, 0, 0], sizes = [1, 16, 16], strides = [1, 1, 1]} : vector<16x16x16xf32> to vector<1x16x16xf32>
    %21 = tpu.concatenate %19, %17, %20 in 0 : vector<1x16x16xf32>, vector<16x16x16xf32>, vector<1x16x16xf32> -> vector<18x16x16xf32>
    %22 = vector.extract_strided_slice %21 {offsets = [0, 0, 0], sizes = [18, 1, 16], strides = [1, 1, 1]} : vector<18x16x16xf32> to vector<18x1x16xf32>
    %23 = vector.extract_strided_slice %21 {offsets = [0, 15, 0], sizes = [18, 1, 16], strides = [1, 1, 1]} : vector<18x16x16xf32> to vector<18x1x16xf32>
    %24 = tpu.concatenate %22, %21, %23 in 1 : vector<18x1x16xf32>, vector<18x16x16xf32>, vector<18x1x16xf32> -> vector<18x18x16xf32>
    %cst_13 = arith.constant 0.000000e+00 : f32
    %25 = vector.broadcast %cst_13 : f32 to vector<1x16x16xf32>
    %26 = tpu.concatenate %25, %18, %25 in 0 : vector<1x16x16xf32>, vector<16x16x16xf32>, vector<1x16x16xf32> -> vector<18x16x16xf32>
    %cst_14 = arith.constant 0.000000e+00 : f32
    %27 = vector.broadcast %cst_14 : f32 to vector<18x1x16xf32>
    %28 = tpu.concatenate %27, %26, %27 in 1 : vector<18x1x16xf32>, vector<18x16x16xf32>, vector<18x1x16xf32> -> vector<18x18x16xf32>
    %29 = vector.extract_strided_slice %24 {offsets = [0, 0, 0], sizes = [16, 16, 16], strides = [1, 1, 1]} : vector<18x18x16xf32> to vector<16x16x16xf32>
    %30 = vector.extract_strided_slice %24 {offsets = [0, 1, 0], sizes = [16, 16, 16], strides = [1, 1, 1]} : vector<18x18x16xf32> to vector<16x16x16xf32>
    %31 = vector.extract_strided_slice %24 {offsets = [0, 2, 0], sizes = [16, 16, 16], strides = [1, 1, 1]} : vector<18x18x16xf32> to vector<16x16x16xf32>
    %32 = vector.extract_strided_slice %24 {offsets = [1, 0, 0], sizes = [16, 16, 16], strides = [1, 1, 1]} : vector<18x18x16xf32> to vector<16x16x16xf32>
    %33 = vector.extract_strided_slice %24 {offsets = [1, 1, 0], sizes = [16, 16, 16], strides = [1, 1, 1]} : vector<18x18x16xf32> to vector<16x16x16xf32>
    %34 = vector.extract_strided_slice %24 {offsets = [1, 2, 0], sizes = [16, 16, 16], strides = [1, 1, 1]} : vector<18x18x16xf32> to vector<16x16x16xf32>
    %35 = vector.extract_strided_slice %24 {offsets = [2, 0, 0], sizes = [16, 16, 16], strides = [1, 1, 1]} : vector<18x18x16xf32> to vector<16x16x16xf32>
    %36 = vector.extract_strided_slice %24 {offsets = [2, 1, 0], sizes = [16, 16, 16], strides = [1, 1, 1]} : vector<18x18x16xf32> to vector<16x16x16xf32>
    %37 = vector.extract_strided_slice %24 {offsets = [2, 2, 0], sizes = [16, 16, 16], strides = [1, 1, 1]} : vector<18x18x16xf32> to vector<16x16x16xf32>
    %38 = tpu.concatenate %29, %30, %31, %32, %33, %34, %35, %36, %37 in 2 : vector<16x16x16xf32>, vector<16x16x16xf32>, vector<16x16x16xf32>, vector<16x16x16xf32>, vector<16x16x16xf32>, vector<16x16x16xf32>, vector<16x16x16xf32>, vector<16x16x16xf32>, vector<16x16x16xf32> -> vector<16x16x144xf32>
    %39 = vector.shape_cast %38 : vector<16x16x144xf32> to vector<256x144xf32>
    %40 = arith.truncf %39 : vector<256x144xf32> to vector<256x144xbf16>
    %c0_15 = arith.constant 0 : index
    %c0_16 = arith.constant 0 : index
    %41 = vector.load %arg6[%c0_15, %c0_16] : memref<144x16xbf16, #tpu.memory_space<vmem>>, vector<144x16xbf16>
    %cst_17 = arith.constant dense<0.000000e+00> : vector<256x16xf32>
    %42 = tpu.matmul %40, %41, %cst_17 {dimension_numbers = #tpu.dot_dimension_numbers<[1], [0], [0], [1], [0, 0, 1, 1], [], []>} : vector<256x144xbf16>, vector<144x16xbf16>, vector<256x16xf32> -> vector<256x16xf32>
    %c0_18 = arith.constant 0 : index
    %c0_19 = arith.constant 0 : index
    %43 = vector.load %arg7[%c0_18, %c0_19] : memref<1x16xf32, #tpu.memory_space<vmem>>, vector<1x16xf32>
    %44 = vector.broadcast %43 : vector<1x16xf32> to vector<256x16xf32>
    %45 = arith.addf %42, %44 : vector<256x16xf32>
    %cst_20 = arith.constant 0.000000e+00 : f32
    %46 = vector.broadcast %cst_20 : f32 to vector<256x16xf32>
    %47 = arith.maximumf %45, %46 : vector<256x16xf32>
    %48 = vector.extract_strided_slice %28 {offsets = [0, 0, 0], sizes = [16, 16, 16], strides = [1, 1, 1]} : vector<18x18x16xf32> to vector<16x16x16xf32>
    %49 = vector.extract_strided_slice %28 {offsets = [0, 1, 0], sizes = [16, 16, 16], strides = [1, 1, 1]} : vector<18x18x16xf32> to vector<16x16x16xf32>
    %50 = vector.extract_strided_slice %28 {offsets = [0, 2, 0], sizes = [16, 16, 16], strides = [1, 1, 1]} : vector<18x18x16xf32> to vector<16x16x16xf32>
    %51 = vector.extract_strided_slice %28 {offsets = [1, 0, 0], sizes = [16, 16, 16], strides = [1, 1, 1]} : vector<18x18x16xf32> to vector<16x16x16xf32>
    %52 = vector.extract_strided_slice %28 {offsets = [1, 1, 0], sizes = [16, 16, 16], strides = [1, 1, 1]} : vector<18x18x16xf32> to vector<16x16x16xf32>
    %53 = vector.extract_strided_slice %28 {offsets = [1, 2, 0], sizes = [16, 16, 16], strides = [1, 1, 1]} : vector<18x18x16xf32> to vector<16x16x16xf32>
    %54 = vector.extract_strided_slice %28 {offsets = [2, 0, 0], sizes = [16, 16, 16], strides = [1, 1, 1]} : vector<18x18x16xf32> to vector<16x16x16xf32>
    %55 = vector.extract_strided_slice %28 {offsets = [2, 1, 0], sizes = [16, 16, 16], strides = [1, 1, 1]} : vector<18x18x16xf32> to vector<16x16x16xf32>
    %56 = vector.extract_strided_slice %28 {offsets = [2, 2, 0], sizes = [16, 16, 16], strides = [1, 1, 1]} : vector<18x18x16xf32> to vector<16x16x16xf32>
    %57 = tpu.concatenate %48, %49, %50, %51, %52, %53, %54, %55, %56 in 2 : vector<16x16x16xf32>, vector<16x16x16xf32>, vector<16x16x16xf32>, vector<16x16x16xf32>, vector<16x16x16xf32>, vector<16x16x16xf32>, vector<16x16x16xf32>, vector<16x16x16xf32>, vector<16x16x16xf32> -> vector<16x16x144xf32>
    %58 = vector.shape_cast %57 : vector<16x16x144xf32> to vector<256x144xf32>
    %59 = arith.truncf %58 : vector<256x144xf32> to vector<256x144xbf16>
    %c0_21 = arith.constant 0 : index
    %c0_22 = arith.constant 0 : index
    %60 = vector.load %arg8[%c0_21, %c0_22] : memref<144x16xbf16, #tpu.memory_space<vmem>>, vector<144x16xbf16>
    %cst_23 = arith.constant dense<0.000000e+00> : vector<256x16xf32>
    %61 = tpu.matmul %59, %60, %cst_23 {dimension_numbers = #tpu.dot_dimension_numbers<[1], [0], [0], [1], [0, 0, 1, 1], [], []>} : vector<256x144xbf16>, vector<144x16xbf16>, vector<256x16xf32> -> vector<256x16xf32>
    %c0_24 = arith.constant 0 : index
    %c0_25 = arith.constant 0 : index
    %62 = vector.load %arg9[%c0_24, %c0_25] : memref<1x16xf32, #tpu.memory_space<vmem>>, vector<1x16xf32>
    %63 = vector.broadcast %62 : vector<1x16xf32> to vector<256x16xf32>
    %64 = arith.addf %61, %63 : vector<256x16xf32>
    %cst_26 = arith.constant 0.000000e+00 : f32
    %65 = vector.broadcast %cst_26 : f32 to vector<256x16xf32>
    %66 = arith.maximumf %64, %65 : vector<256x16xf32>
    %67 = arith.truncf %47 : vector<256x16xf32> to vector<256x16xbf16>
    %c0_27 = arith.constant 0 : index
    %c0_28 = arith.constant 0 : index
    %68 = vector.load %arg10[%c0_27, %c0_28] : memref<16x128xbf16, #tpu.memory_space<vmem>>, vector<16x128xbf16>
    %cst_29 = arith.constant dense<0.000000e+00> : vector<256x128xf32>
    %69 = tpu.matmul %67, %68, %cst_29 {dimension_numbers = #tpu.dot_dimension_numbers<[1], [0], [0], [1], [0, 0, 1, 1], [], []>} : vector<256x16xbf16>, vector<16x128xbf16>, vector<256x128xf32> -> vector<256x128xf32>
    %70 = arith.truncf %66 : vector<256x16xf32> to vector<256x16xbf16>
    %c0_30 = arith.constant 0 : index
    %c0_31 = arith.constant 0 : index
    %71 = vector.load %arg11[%c0_30, %c0_31] : memref<16x128xbf16, #tpu.memory_space<vmem>>, vector<16x128xbf16>
    %cst_32 = arith.constant dense<0.000000e+00> : vector<256x128xf32>
    %72 = tpu.matmul %70, %71, %cst_32 {dimension_numbers = #tpu.dot_dimension_numbers<[1], [0], [0], [1], [0, 0, 1, 1], [], []>} : vector<256x16xbf16>, vector<16x128xbf16>, vector<256x128xf32> -> vector<256x128xf32>
    %73 = arith.addf %69, %72 : vector<256x128xf32>
    %c0_33 = arith.constant 0 : index
    %c0_34 = arith.constant 0 : index
    %74 = vector.load %arg12[%c0_33, %c0_34] : memref<1x128xf32, #tpu.memory_space<vmem>>, vector<1x128xf32>
    %75 = vector.broadcast %74 : vector<1x128xf32> to vector<256x128xf32>
    %76 = arith.addf %73, %75 : vector<256x128xf32>
    %77 = arith.addf %76, %1 : vector<256x128xf32>
    %cst_35 = arith.constant 0.000000e+00 : f32
    %78 = vector.broadcast %cst_35 : f32 to vector<256x128xf32>
    %79 = arith.maximumf %77, %78 : vector<256x128xf32>
    %c0_36 = arith.constant 0 : index
    %c0_37 = arith.constant 0 : index
    %c0_38 = arith.constant 0 : index
    %80 = vector.load %arg13[%c0_36, %c0_37, %c0_38] : memref<1x256x128xf32, #tpu.memory_space<vmem>>, vector<1x256x128xf32>
    %81 = vector.shape_cast %80 : vector<1x256x128xf32> to vector<256x128xf32>
    %82 = vector.shape_cast %79 : vector<256x128xf32> to vector<1x256x128xf32>
    tpu.vector_store %arg13[%c0_36, %c0_37, %c0_38], %82 {strides = array<i32>} : memref<1x256x128xf32, #tpu.memory_space<vmem>>, vector<1x256x128xf32>,
    return
  }
  func.func @transform_0(%arg0: i32) -> (i32, i32, i32) {
    %c0_i32 = arith.constant 0 : i32
    %c0_i32_0 = arith.constant 0 : i32
    %c0_i32_1 = arith.constant 0 : i32
    return %arg0, %c0_i32, %c0_i32_0 : i32, i32, i32
  }
  func.func @transform_1(%arg0: i32) -> (i32, i32) {
    %c0_i32 = arith.constant 0 : i32
    %c0_i32_0 = arith.constant 0 : i32
    %c0_i32_1 = arith.constant 0 : i32
    return %c0_i32, %c0_i32_0 : i32, i32
  }
  func.func @transform_2(%arg0: i32) -> (i32, i32) {
    %c0_i32 = arith.constant 0 : i32
    %c0_i32_0 = arith.constant 0 : i32
    %c0_i32_1 = arith.constant 0 : i32
    return %c0_i32, %c0_i32_0 : i32, i32
  }
  func.func @transform_3(%arg0: i32) -> (i32, i32) {
    %c0_i32 = arith.constant 0 : i32
    %c0_i32_0 = arith.constant 0 : i32
    %c0_i32_1 = arith.constant 0 : i32
    return %c0_i32, %c0_i32_0 : i32, i32
  }
  func.func @transform_4(%arg0: i32) -> (i32, i32) {
    %c0_i32 = arith.constant 0 : i32
    %c0_i32_0 = arith.constant 0 : i32
    %c0_i32_1 = arith.constant 0 : i32
    return %c0_i32, %c0_i32_0 : i32, i32
  }
  func.func @transform_5(%arg0: i32) -> (i32, i32) {
    %c0_i32 = arith.constant 0 : i32
    %c0_i32_0 = arith.constant 0 : i32
    %c0_i32_1 = arith.constant 0 : i32
    return %c0_i32, %c0_i32_0 : i32, i32
  }
  func.func @transform_6(%arg0: i32) -> (i32, i32) {
    %c0_i32 = arith.constant 0 : i32
    %c0_i32_0 = arith.constant 0 : i32
    %c0_i32_1 = arith.constant 0 : i32
    return %c0_i32, %c0_i32_0 : i32, i32
  }
  func.func @transform_7(%arg0: i32) -> (i32, i32) {
    %c0_i32 = arith.constant 0 : i32
    %c0_i32_0 = arith.constant 0 : i32
    %c0_i32_1 = arith.constant 0 : i32
    return %c0_i32, %c0_i32_0 : i32, i32
  }
  func.func @transform_8(%arg0: i32) -> (i32, i32) {
    %c0_i32 = arith.constant 0 : i32
    %c0_i32_0 = arith.constant 0 : i32
    %c0_i32_1 = arith.constant 0 : i32
    return %c0_i32, %c0_i32_0 : i32, i32
  }
  func.func @transform_9(%arg0: i32) -> (i32, i32) {
    %c0_i32 = arith.constant 0 : i32
    %c0_i32_0 = arith.constant 0 : i32
    %c0_i32_1 = arith.constant 0 : i32
    return %c0_i32, %c0_i32_0 : i32, i32
  }
  func.func @transform_10(%arg0: i32) -> (i32, i32) {
    %c0_i32 = arith.constant 0 : i32
    %c0_i32_0 = arith.constant 0 : i32
    %c0_i32_1 = arith.constant 0 : i32
    return %c0_i32, %c0_i32_0 : i32, i32
  }
  func.func @transform_11(%arg0: i32) -> (i32, i32) {
    %c0_i32 = arith.constant 0 : i32
    %c0_i32_0 = arith.constant 0 : i32
    %c0_i32_1 = arith.constant 0 : i32
    return %c0_i32, %c0_i32_0 : i32, i32
  }
  func.func @transform_12(%arg0: i32) -> (i32, i32, i32) {
    %c0_i32 = arith.constant 0 : i32
    %c0_i32_0 = arith.constant 0 : i32
    %c0_i32_1 = arith.constant 0 : i32
    return %arg0, %c0_i32, %c0_i32_0 : i32, i32, i32
  }
}

</mosaic_0001>

<llo_original>
// kernel: hybrid_block_forward.1
$region0: #{hybrid_block_forward.1}
  #allocation0 [shape = 'u32[]', space=smem, size = 0x4, offset = 0x4, fixed_abs, tag = 'smem constant byte address 0x4 - core index']
  #allocation1 [shape = 'u32[144,128]{1,0:T(1,128)}', space=vmem, size = 0x12000, scoped, tag = 'internal scratch']
  %s0 = inlined_call_operand.hbm [shape: f32[2,256,128], index: 0, kind: input, shape index: {}]
  %s1 = inlined_call_operand.vmem [shape: bf16[128,16], index: 1, kind: input, shape index: {}]
  %s2 = inlined_call_operand.vmem [shape: f32[1,16], index: 2, kind: input, shape index: {}]
  %s3 = inlined_call_operand.vmem [shape: bf16[128,16], index: 3, kind: input, shape index: {}]
  %s4 = inlined_call_operand.vmem [shape: f32[1,16], index: 4, kind: input, shape index: {}]
  %s5 = inlined_call_operand.vmem [shape: bf16[144,16], index: 5, kind: input, shape index: {}]
  %s6 = inlined_call_operand.vmem [shape: f32[1,16], index: 6, kind: input, shape index: {}]
  %s7 = inlined_call_operand.vmem [shape: bf16[144,16], index: 7, kind: input, shape index: {}]
  %s8 = inlined_call_operand.vmem [shape: f32[1,16], index: 8, kind: input, shape index: {}]
  %s9 = inlined_call_operand.vmem [shape: bf16[16,128], index: 9, kind: input, shape index: {}]
  %s10 = inlined_call_operand.vmem [shape: bf16[16,128], index: 10, kind: input, shape index: {}]
  %s11 = inlined_call_operand.vmem [shape: f32[1,128], index: 11, kind: input, shape index: {}]
  %s12 = inlined_call_operand.hbm [shape: f32[2,256,128], index: 12, kind: output, shape index: {}]
  %s13 = sld [smem:[#allocation0]]
  $region85: #{hybrid_block_forward.1} parent=0
    _
  %s15 = ssub.s32 1, %s13
  %s16 = scalar_select 0, %s15, %s13
  $region1: #{hybrid_block_forward.1} parent=0
    #allocation2 [shape = 'u8[262144]{0}', space=vmem, size = 0x40000, scoped, tag = 'input window, operand 0']
    #allocation3 [shape = 's32[2]{0}', space=sflag, size = 0x8, scoped, tag = 'scoped memory for hybrid_block_forward.1']
    #allocation4 [shape = 's32[2]{0}', space=sflag, size = 0x8, scoped, tag = 'scoped memory for hybrid_block_forward.1']
    #allocation5 [shape = 'u8[262144]{0}', space=vmem, size = 0x40000, scoped, tag = 'output window, operand 0']
    %17 = vsyncpa [#allocation3], 0
    %s18 = scalar_lea.sflag [#allocation3], 1
    %19 = vsyncpa %s18, 0
    %20 = vsyncpa [#allocation4], 0
    %s21 = scalar_lea.sflag [#allocation4], 1
    %22 = vsyncpa %s21, 0
    loop: start=0, step=1, limit=4
    $region2: #{hybrid_block_forward.1} parent=1 // loop_pre_header
      _
    $region3: #{hybrid_block_forward.1} parent=1 // loop_header
      %s24 = sphi 0, %s28
      %p25 = scmp.ge.s32.totalorder %s24, 4
      %s34 = sphi 0, %s36
      %s37 = sphi 0, %s34
      %s38 = sphi 0, %s37
      %s54 = sphi 0, %s38
      %s58 = sphi 0, %s58
      %s60 = sphi 0, %s58
      %s61 = sphi 0, %s60
      %s75 = sphi 0, %s61
      %s79 = sphi 0, %s79
      %s81 = sphi 0, %s79
      %s82 = sphi 0, %s81
      %s96 = sphi 0, %s82
      %s100 = sphi 0, %s100
      %s102 = sphi 0, %s100
      %s103 = sphi 0, %s102
      %s117 = sphi 0, %s103
      %s121 = sphi 0, %s121
      %s123 = sphi 0, %s121
      %s124 = sphi 0, %s123
      %s138 = sphi 0, %s124
      %s142 = sphi 0, %s142
      %s144 = sphi 0, %s142
      %s145 = sphi 0, %s144
      %s159 = sphi 0, %s145
      %s163 = sphi 0, %s163
      %s165 = sphi 0, %s163
      %s166 = sphi 0, %s165
      %s180 = sphi 0, %s166
      %s184 = sphi 0, %s184
      %s186 = sphi 0, %s184
      %s187 = sphi 0, %s186
      %s201 = sphi 0, %s187
      %s205 = sphi 0, %s205
      %s207 = sphi 0, %s205
      %s208 = sphi 0, %s207
      %s222 = sphi 0, %s208
      %s226 = sphi 0, %s226
      %s228 = sphi 0, %s226
      %s229 = sphi 0, %s228
      %s243 = sphi 0, %s229
      %s247 = sphi 0, %s247
      %s249 = sphi 0, %s247
      %s250 = sphi 0, %s249
      %s264 = sphi 0, %s250
      %s268 = sphi 0, %s268
      %s270 = sphi 0, %s268
      %s271 = sphi 0, %s270
      %s285 = sphi 0, %s271
      %s291 = sphi 0, %s293
      %s294 = sphi 0, %s291
      %s295 = sphi 0, %s294
      %s311 = sphi 0, %s295
    $region4: #{hybrid_block_forward.1} parent=1 // loop_header_branch
      %27 = sbr.rel (%p25) target = $region8
    $region5: #{hybrid_block_forward.1} parent=1 // loop_body
      %s29 = ssub.s32 %s24, 1
      %s30 = ssub.s32 %s24, 2
      %s31 = sadd.s32 %s24, 1
      %s32 = ssub.s32 %s24, %s31
      %p33 = scmp.eq.s32.totalorder %s32, 0
      %s35 = sadd.s32 %s34, 1
      %s36 = scalar_select %p33, %s34, %s35
      %p39 = pneg %p33
      %p40 = scmp.eq.s32.totalorder %s24, 1
      %p41 = por %p39, %p40
      %p42 = scmp.ne.s32.totalorder %s34, %s37
      %p43 = scmp.eq.s32.totalorder %s24, 0
      %p44 = por %p42, %p43
      %p45 = scmp.ne.s32.totalorder %s34, %s37
      %p46 = scmp.eq.s32.totalorder %s29, 1
      %p47 = por %p45, %p46
      %p48 = scmp.ne.s32.totalorder %s37, %s38
      %p49 = scmp.eq.s32.totalorder %s29, 0
      %p50 = por %p48, %p49
      %p51 = scmp.ne.s32.totalorder %s37, %s38
      %p52 = scmp.eq.s32.totalorder %s30, 1
      %p53 = por %p51, %p52
      %p55 = scmp.ne.s32.totalorder %s38, %s54
      %p56 = scmp.eq.s32.totalorder %s30, 0
      %p57 = por %p55, %p56
      %s59 = sadd.s32 %s58, 1
      %p62 = scmp.eq.s32.totalorder %s24, 1
      %p63 = scmp.ne.s32.totalorder %s58, %s60
      %p64 = scmp.eq.s32.totalorder %s24, 0
      %p65 = por %p63, %p64
      %p66 = scmp.ne.s32.totalorder %s58, %s60
      %p67 = scmp.eq.s32.totalorder %s29, 1
      %p68 = por %p66, %p67
      %p69 = scmp.ne.s32.totalorder %s60, %s61
      %p70 = scmp.eq.s32.totalorder %s29, 0
      %p71 = por %p69, %p70
      %p72 = scmp.ne.s32.totalorder %s60, %s61
      %p73 = scmp.eq.s32.totalorder %s30, 1
      %p74 = por %p72, %p73
      %p76 = scmp.ne.s32.totalorder %s61, %s75
      %p77 = scmp.eq.s32.totalorder %s30, 0
      %p78 = por %p76, %p77
      %s80 = sadd.s32 %s79, 1
      %p83 = scmp.eq.s32.totalorder %s24, 1
      %p84 = scmp.ne.s32.totalorder %s79, %s81
      %p85 = scmp.eq.s32.totalorder %s24, 0
      %p86 = por %p84, %p85
      %p87 = scmp.ne.s32.totalorder %s79, %s81
      %p88 = scmp.eq.s32.totalorder %s29, 1
      %p89 = por %p87, %p88
      %p90 = scmp.ne.s32.totalorder %s81, %s82
      %p91 = scmp.eq.s32.totalorder %s29, 0
      %p92 = por %p90, %p91
      %p93 = scmp.ne.s32.totalorder %s81, %s82
      %p94 = scmp.eq.s32.totalorder %s30, 1
      %p95 = por %p93, %p94
      %p97 = scmp.ne.s32.totalorder %s82, %s96
      %p98 = scmp.eq.s32.totalorder %s30, 0
      %p99 = por %p97, %p98
      %s101 = sadd.s32 %s100, 1
      %p104 = scmp.eq.s32.totalorder %s24, 1
      %p105 = scmp.ne.s32.totalorder %s100, %s102
      %p106 = scmp.eq.s32.totalorder %s24, 0
      %p107 = por %p105, %p106
      %p108 = scmp.ne.s32.totalorder %s100, %s102
      %p109 = scmp.eq.s32.totalorder %s29, 1
      %p110 = por %p108, %p109
      %p111 = scmp.ne.s32.totalorder %s102, %s103
      %p112 = scmp.eq.s32.totalorder %s29, 0
      %p113 = por %p111, %p112
      %p114 = scmp.ne.s32.totalorder %s102, %s103
      %p115 = scmp.eq.s32.totalorder %s30, 1
      %p116 = por %p114, %p115
      %p118 = scmp.ne.s32.totalorder %s103, %s117
      %p119 = scmp.eq.s32.totalorder %s30, 0
      %p120 = por %p118, %p119
      %s122 = sadd.s32 %s121, 1
      %p125 = scmp.eq.s32.totalorder %s24, 1
      %p126 = scmp.ne.s32.totalorder %s121, %s123
      %p127 = scmp.eq.s32.totalorder %s24, 0
      %p128 = por %p126, %p127
      %p129 = scmp.ne.s32.totalorder %s121, %s123
      %p130 = scmp.eq.s32.totalorder %s29, 1
      %p131 = por %p129, %p130
      %p132 = scmp.ne.s32.totalorder %s123, %s124
      %p133 = scmp.eq.s32.totalorder %s29, 0
      %p134 = por %p132, %p133
      %p135 = scmp.ne.s32.totalorder %s123, %s124
      %p136 = scmp.eq.s32.totalorder %s30, 1
      %p137 = por %p135, %p136
      %p139 = scmp.ne.s32.totalorder %s124, %s138
      %p140 = scmp.eq.s32.totalorder %s30, 0
      %p141 = por %p139, %p140
      %s143 = sadd.s32 %s142, 1
      %p146 = scmp.eq.s32.totalorder %s24, 1
      %p147 = scmp.ne.s32.totalorder %s142, %s144
      %p148 = scmp.eq.s32.totalorder %s24, 0
      %p149 = por %p147, %p148
      %p150 = scmp.ne.s32.totalorder %s142, %s144
      %p151 = scmp.eq.s32.totalorder %s29, 1
      %p152 = por %p150, %p151
      %p153 = scmp.ne.s32.totalorder %s144, %s145
      %p154 = scmp.eq.s32.totalorder %s29, 0
      %p155 = por %p153, %p154
      %p156 = scmp.ne.s32.totalorder %s144, %s145
      %p157 = scmp.eq.s32.totalorder %s30, 1
      %p158 = por %p156, %p157
      %p160 = scmp.ne.s32.totalorder %s145, %s159
      %p161 = scmp.eq.s32.totalorder %s30, 0
      %p162 = por %p160, %p161
      %s164 = sadd.s32 %s163, 1
      %p167 = scmp.eq.s32.totalorder %s24, 1
      %p168 = scmp.ne.s32.totalorder %s163, %s165
      %p169 = scmp.eq.s32.totalorder %s24, 0
      %p170 = por %p168, %p169
      %p171 = scmp.ne.s32.totalorder %s163, %s165
      %p172 = scmp.eq.s32.totalorder %s29, 1
      %p173 = por %p171, %p172
      %p174 = scmp.ne.s32.totalorder %s165, %s166
      %p175 = scmp.eq.s32.totalorder %s29, 0
      %p176 = por %p174, %p175
      %p177 = scmp.ne.s32.totalorder %s165, %s166
      %p178 = scmp.eq.s32.totalorder %s30, 1
      %p179 = por %p177, %p178
      %p181 = scmp.ne.s32.totalorder %s166, %s180
      %p182 = scmp.eq.s32.totalorder %s30, 0
      %p183 = por %p181, %p182
      %s185 = sadd.s32 %s184, 1
      %p188 = scmp.eq.s32.totalorder %s24, 1
      %p189 = scmp.ne.s32.totalorder %s184, %s186
      %p190 = scmp.eq.s32.totalorder %s24, 0
      %p191 = por %p189, %p190
      %p192 = scmp.ne.s32.totalorder %s184, %s186
      %p193 = scmp.eq.s32.totalorder %s29, 1
      %p194 = por %p192, %p193
      %p195 = scmp.ne.s32.totalorder %s186, %s187
      %p196 = scmp.eq.s32.totalorder %s29, 0
      %p197 = por %p195, %p196
      %p198 = scmp.ne.s32.totalorder %s186, %s187
      %p199 = scmp.eq.s32.totalorder %s30, 1
      %p200 = por %p198, %p199
      %p202 = scmp.ne.s32.totalorder %s187, %s201
      %p203 = scmp.eq.s32.totalorder %s30, 0
      %p204 = por %p202, %p203
      %s206 = sadd.s32 %s205, 1
      %p209 = scmp.eq.s32.totalorder %s24, 1
      %p210 = scmp.ne.s32.totalorder %s205, %s207
      %p211 = scmp.eq.s32.totalorder %s24, 0
      %p212 = por %p210, %p211
      %p213 = scmp.ne.s32.totalorder %s205, %s207
      %p214 = scmp.eq.s32.totalorder %s29, 1
      %p215 = por %p213, %p214
      %p216 = scmp.ne.s32.totalorder %s207, %s208
      %p217 = scmp.eq.s32.totalorder %s29, 0
      %p218 = por %p216, %p217
      %p219 = scmp.ne.s32.totalorder %s207, %s208
      %p220 = scmp.eq.s32.totalorder %s30, 1
      %p221 = por %p219, %p220
      %p223 = scmp.ne.s32.totalorder %s208, %s222
      %p224 = scmp.eq.s32.totalorder %s30, 0
      %p225 = por %p223, %p224
      %s227 = sadd.s32 %s226, 1
      %p230 = scmp.eq.s32.totalorder %s24, 1
      %p231 = scmp.ne.s32.totalorder %s226, %s228
      %p232 = scmp.eq.s32.totalorder %s24, 0
      %p233 = por %p231, %p232
      %p234 = scmp.ne.s32.totalorder %s226, %s228
      %p235 = scmp.eq.s32.totalorder %s29, 1
      %p236 = por %p234, %p235
      %p237 = scmp.ne.s32.totalorder %s228, %s229
      %p238 = scmp.eq.s32.totalorder %s29, 0
      %p239 = por %p237, %p238
      %p240 = scmp.ne.s32.totalorder %s228, %s229
      %p241 = scmp.eq.s32.totalorder %s30, 1
      %p242 = por %p240, %p241
      %p244 = scmp.ne.s32.totalorder %s229, %s243
      %p245 = scmp.eq.s32.totalorder %s30, 0
      %p246 = por %p244, %p245
      %s248 = sadd.s32 %s247, 1
      %p251 = scmp.eq.s32.totalorder %s24, 1
      %p252 = scmp.ne.s32.totalorder %s247, %s249
      %p253 = scmp.eq.s32.totalorder %s24, 0
      %p254 = por %p252, %p253
      %p255 = scmp.ne.s32.totalorder %s247, %s249
      %p256 = scmp.eq.s32.totalorder %s29, 1
      %p257 = por %p255, %p256
      %p258 = scmp.ne.s32.totalorder %s249, %s250
      %p259 = scmp.eq.s32.totalorder %s29, 0
      %p260 = por %p258, %p259
      %p261 = scmp.ne.s32.totalorder %s249, %s250
      %p262 = scmp.eq.s32.totalorder %s30, 1
      %p263 = por %p261, %p262
      %p265 = scmp.ne.s32.totalorder %s250, %s264
      %p266 = scmp.eq.s32.totalorder %s30, 0
      %p267 = por %p265, %p266
      %s269 = sadd.s32 %s268, 1
      %p272 = scmp.eq.s32.totalorder %s24, 1
      %p273 = scmp.ne.s32.totalorder %s268, %s270
      %p274 = scmp.eq.s32.totalorder %s24, 0
      %p275 = por %p273, %p274
      %p276 = scmp.ne.s32.totalorder %s268, %s270
      %p277 = scmp.eq.s32.totalorder %s29, 1
      %p278 = por %p276, %p277
      %p279 = scmp.ne.s32.totalorder %s270, %s271
      %p280 = scmp.eq.s32.totalorder %s29, 0
      %p281 = por %p279, %p280
      %p282 = scmp.ne.s32.totalorder %s270, %s271
      %p283 = scmp.eq.s32.totalorder %s30, 1
      %p284 = por %p282, %p283
      %p286 = scmp.ne.s32.totalorder %s271, %s285
      %p287 = scmp.eq.s32.totalorder %s30, 0
      %p288 = por %p286, %p287
      %s289 = ssub.s32 %s24, %s31
      %p290 = scmp.eq.s32.totalorder %s289, 0
      %s292 = sadd.s32 %s291, 1
      %s293 = scalar_select %p290, %s291, %s292
      %p296 = pneg %p290
      %p297 = scmp.eq.s32.totalorder %s24, 1
      %p298 = por %p296, %p297
      %p299 = scmp.ne.s32.totalorder %s291, %s294
      %p300 = scmp.eq.s32.totalorder %s24, 0
      %p301 = por %p299, %p300
      %p302 = scmp.ne.s32.totalorder %s291, %s294
      %p303 = scmp.eq.s32.totalorder %s29, 1
      %p304 = por %p302, %p303
      %p305 = scmp.ne.s32.totalorder %s294, %s295
      %p306 = scmp.eq.s32.totalorder %s29, 0
      %p307 = por %p305, %p306
      %p308 = scmp.ne.s32.totalorder %s294, %s295
      %p309 = scmp.eq.s32.totalorder %s30, 1
      %p310 = por %p308, %p309
      %p312 = scmp.ne.s32.totalorder %s295, %s311
      %p313 = scmp.eq.s32.totalorder %s30, 0
      %p314 = por %p312, %p313
      %p315 = scmp.le.s32.totalorder 1, %s24
      %p316 = scmp.lt.s32.totalorder %s24, 3
      %p317 = pnand %p315, %p316
      %p318 = pneg %p317
      // Predicated region
      $region9: #{hybrid_block_forward.1} parent=5 // pred_check
        _
      $region10: #{hybrid_block_forward.1} parent=5 // pred_check_branch
        %320 = sbr.rel (%p317) target = $region12
      $region11: #{hybrid_block_forward.1} parent=5 // pred_region
        %s321 = ssub.s32 %s24, 1
        // Predicated region
        $region13: #{hybrid_block_forward.1} parent=11 // pred_check
          %p322 = pneg %p71
        $region14: #{hybrid_block_forward.1} parent=11 // pred_check_branch
          %324 = sbr.rel (%p322) target = $region16
        $region15: #{hybrid_block_forward.1} parent=11 // pred_region
          _
        $region16: #{hybrid_block_forward.1} parent=11 // pred_fallthru
          _
        // Predicated region
        $region17: #{hybrid_block_forward.1} parent=11 // pred_check
          %p325 = pneg %p92
        $region18: #{hybrid_block_forward.1} parent=11 // pred_check_branch
          %327 = sbr.rel (%p325) target = $region20
        $region19: #{hybrid_block_forward.1} parent=11 // pred_region
          _
        $region20: #{hybrid_block_forward.1} parent=11 // pred_fallthru
          _
        // Predicated region
        $region21: #{hybrid_block_forward.1} parent=11 // pred_check
          %p328 = pneg %p113
        $region22: #{hybrid_block_forward.1} parent=11 // pred_check_branch
          %330 = sbr.rel (%p328) target = $region24
        $region23: #{hybrid_block_forward.1} parent=11 // pred_region
          _
        $region24: #{hybrid_block_forward.1} parent=11 // pred_fallthru
          _
        // Predicated region
        $region25: #{hybrid_block_forward.1} parent=11 // pred_check
          %p331 = pneg %p134
        $region26: #{hybrid_block_forward.1} parent=11 // pred_check_branch
          %333 = sbr.rel (%p331) target = $region28
        $region27: #{hybrid_block_forward.1} parent=11 // pred_region
          _
        $region28: #{hybrid_block_forward.1} parent=11 // pred_fallthru
          _
        // Predicated region
        $region29: #{hybrid_block_forward.1} parent=11 // pred_check
          %p334 = pneg %p155
        $region30: #{hybrid_block_forward.1} parent=11 // pred_check_branch
          %336 = sbr.rel (%p334) target = $region32
        $region31: #{hybrid_block_forward.1} parent=11 // pred_region
          _
        $region32: #{hybrid_block_forward.1} parent=11 // pred_fallthru
          _
        // Predicated region
        $region33: #{hybrid_block_forward.1} parent=11 // pred_check
          %p337 = pneg %p176
        $region34: #{hybrid_block_forward.1} parent=11 // pred_check_branch
          %339 = sbr.rel (%p337) target = $region36
        $region35: #{hybrid_block_forward.1} parent=11 // pred_region
          _
        $region36: #{hybrid_block_forward.1} parent=11 // pred_fallthru
          _
        // Predicated region
        $region37: #{hybrid_block_forward.1} parent=11 // pred_check
          %p340 = pneg %p197
        $region38: #{hybrid_block_forward.1} parent=11 // pred_check_branch
          %342 = sbr.rel (%p340) target = $region40
        $region39: #{hybrid_block_forward.1} parent=11 // pred_region
          _
        $region40: #{hybrid_block_forward.1} parent=11 // pred_fallthru
          _
        // Predicated region
        $region41: #{hybrid_block_forward.1} parent=11 // pred_check
          %p343 = pneg %p218
        $region42: #{hybrid_block_forward.1} parent=11 // pred_check_branch
          %345 = sbr.rel (%p343) target = $region44
        $region43: #{hybrid_block_forward.1} parent=11 // pred_region
          _
        $region44: #{hybrid_block_forward.1} parent=11 // pred_fallthru
          _
        // Predicated region
        $region45: #{hybrid_block_forward.1} parent=11 // pred_check
          %p346 = pneg %p239
        $region46: #{hybrid_block_forward.1} parent=11 // pred_check_branch
          %348 = sbr.rel (%p346) target = $region48
        $region47: #{hybrid_block_forward.1} parent=11 // pred_region
          _
        $region48: #{hybrid_block_forward.1} parent=11 // pred_fallthru
          _
        // Predicated region
        $region49: #{hybrid_block_forward.1} parent=11 // pred_check
          %p349 = pneg %p260
        $region50: #{hybrid_block_forward.1} parent=11 // pred_check_branch
          %351 = sbr.rel (%p349) target = $region52
        $region51: #{hybrid_block_forward.1} parent=11 // pred_region
          _
        $region52: #{hybrid_block_forward.1} parent=11 // pred_fallthru
          _
        // Predicated region
        $region53: #{hybrid_block_forward.1} parent=11 // pred_check
          %p352 = pneg %p281
        $region54: #{hybrid_block_forward.1} parent=11 // pred_check_branch
          %354 = sbr.rel (%p352) target = $region56
        $region55: #{hybrid_block_forward.1} parent=11 // pred_region
          _
        $region56: #{hybrid_block_forward.1} parent=11 // pred_fallthru
          _
      $region12: #{hybrid_block_forward.1} parent=5 // pred_fallthru
        _
      %p355 = scmp.lt.s32.totalorder %s24, 2
      // Predicated region
      $region57: #{hybrid_block_forward.1} parent=5 // pred_check
        %p356 = pneg %p355
      $region58: #{hybrid_block_forward.1} parent=5 // pred_check_branch
        %358 = sbr.rel (%p356) target = $region60
      $region59: #{hybrid_block_forward.1} parent=5 // pred_region
        // Predicated region
        $region61: #{hybrid_block_forward.1} parent=59 // pred_check
          %p359 = pneg %p44
        $region62: #{hybrid_block_forward.1} parent=59 // pred_check_branch
          %361 = sbr.rel (%p359) target = $region64
        $region63: #{hybrid_block_forward.1} parent=59 // pred_region
          %s362 = sand.u32 %s34, 1
          %s363 = scalar_lea.sflag [#allocation3], %s362
          %s364 = sand.u32 %s34, 1
          %s365 = smul.addr %s364, 256
          %s366 = scalar_lea.vmem [#allocation2], %s365
          %s368 = ssub.s32 4096, 4096
          %369 = vsyncadd %s363, %s368
          %s370 = smul.addr %s24, 32
          %s371 = smul.addr %s370, 128
          %s372 = scalar_lea.hbm %s0, %s371
          %s373 = sshll.u32 %s366, 4
          %s374 = int_to_ptr.vmem [resolvable:$true] %s373
          %379 = dma.hbm_to_vmem [thread:$0]  %s372, 4096, %s374, %s363, 128, 128, 8
        $region64: #{hybrid_block_forward.1} parent=59 // pred_fallthru
          _
      $region60: #{hybrid_block_forward.1} parent=5 // pred_fallthru
        _
      %p380 = scmp.le.s32.totalorder 1, %s24
      %p381 = scmp.lt.s32.totalorder %s24, 3
      %p382 = pnand %p380, %p381
      %p383 = pneg %p382
      // Predicated region
      $region65: #{hybrid_block_forward.1} parent=5 // pred_check
        _
      $region66: #{hybrid_block_forward.1} parent=5 // pred_check_branch
        %385 = sbr.rel (%p382) target = $region68
      $region67: #{hybrid_block_forward.1} parent=5 // pred_region
        %s386 = ssub.s32 %s24, 1
        %s387 = sand.u32 %s37, 1
        %s388 = scalar_lea.sflag [#allocation3], %s387
        %s389 = sand.u32 %s37, 1
        %s390 = smul.addr %s389, 256
        %s391 = scalar_lea.vmem [#allocation2], %s390
        // Predicated region
        $region69: #{hybrid_block_forward.1} parent=67 // pred_check
          %p392 = pneg %p50
        $region70: #{hybrid_block_forward.1} parent=67 // pred_check_branch
          %394 = sbr.rel (%p392) target = $region72
        $region71: #{hybrid_block_forward.1} parent=67 // pred_region
          %395 = dma.done %s388, 4096
        $region72: #{hybrid_block_forward.1} parent=67 // pred_fallthru
          _
        %s396 = sand.u32 %s37, 1
        %s397 = scalar_lea.sflag [#allocation3], %s396
        %s398 = sand.u32 %s37, 1
        %s399 = smul.addr %s398, 256
        %s400 = scalar_lea.vmem [#allocation2], %s399
        %p401 = pneg %p50
        %p402 = pneg %p47
        %p403 = pneg %p71
        %p404 = pneg %p68
        %p405 = pneg %p92
        %p406 = pneg %p89
        %p407 = pneg %p113
        %p408 = pneg %p110
        %p409 = pneg %p134
        %p410 = pneg %p131
        %p411 = pneg %p155
        %p412 = pneg %p152
        %p413 = pneg %p176
        %p414 = pneg %p173
        %p415 = pneg %p197
        %p416 = pneg %p194
        %p417 = pneg %p218
        %p418 = pneg %p215
        %p419 = pneg %p239
        %p420 = pneg %p236
        %p421 = pneg %p260
        %p422 = pneg %p257
        %p423 = pneg %p281
        %p424 = pneg %p278
        %p425 = pneg %p307
        %p426 = pneg %p304
        %s427 = sand.u32 %s294, 1
        %s428 = scalar_lea.sflag [#allocation4], %s427
        %s429 = sand.u32 %s294, 1
        %s430 = smul.addr %s429, 256
        %s431 = scalar_lea.vmem [#allocation5], %s430
        %v433 = vld [vmem:[%s391] sm:$0xff]
        %v434 = vld [vmem:[%s391 + $0x8] sm:$0xff]
        %v435 = vld [vmem:[%s391 + $0x10] sm:$0xff]
        %v436 = vld [vmem:[%s391 + $0x18] sm:$0xff]
        %v437 = vld [vmem:[%s391 + $0x20] sm:$0xff]
        %v438 = vld [vmem:[%s391 + $0x28] sm:$0xff]
        %v439 = vld [vmem:[%s391 + $0x30] sm:$0xff]
        %v440 = vld [vmem:[%s391 + $0x38] sm:$0xff]
        %v441 = vld [vmem:[%s391 + $0x40] sm:$0xff]
        %v442 = vld [vmem:[%s391 + $0x48] sm:$0xff]
        %v443 = vld [vmem:[%s391 + $0x50] sm:$0xff]
        %v444 = vld [vmem:[%s391 + $0x58] sm:$0xff]
        %v445 = vld [vmem:[%s391 + $0x60] sm:$0xff]
        %v446 = vld [vmem:[%s391 + $0x68] sm:$0xff]
        %v447 = vld [vmem:[%s391 + $0x70] sm:$0xff]
        %v448 = vld [vmem:[%s391 + $0x78] sm:$0xff]
        %v449 = vld [vmem:[%s391 + $0x80] sm:$0xff]
        %v450 = vld [vmem:[%s391 + $0x88] sm:$0xff]
        %v451 = vld [vmem:[%s391 + $0x90] sm:$0xff]
        %v452 = vld [vmem:[%s391 + $0x98] sm:$0xff]
        %v453 = vld [vmem:[%s391 + $0xa0] sm:$0xff]
        %v454 = vld [vmem:[%s391 + $0xa8] sm:$0xff]
        %v455 = vld [vmem:[%s391 + $0xb0] sm:$0xff]
        %v456 = vld [vmem:[%s391 + $0xb8] sm:$0xff]
        %v457 = vld [vmem:[%s391 + $0xc0] sm:$0xff]
        %v458 = vld [vmem:[%s391 + $0xc8] sm:$0xff]
        %v459 = vld [vmem:[%s391 + $0xd0] sm:$0xff]
        %v460 = vld [vmem:[%s391 + $0xd8] sm:$0xff]
        %v461 = vld [vmem:[%s391 + $0xe0] sm:$0xff]
        %v462 = vld [vmem:[%s391 + $0xe8] sm:$0xff]
        %v463 = vld [vmem:[%s391 + $0xf0] sm:$0xff]
        %v464 = vld [vmem:[%s391 + $0xf8] sm:$0xff]
        %v465 = vpack.c.bf16 %v434, %v433
        %v466 = vpack.c.bf16 %v436, %v435
        %v467 = vpack.c.bf16 %v438, %v437
        %v468 = vpack.c.bf16 %v440, %v439
        %v469 = vpack.c.bf16 %v442, %v441
        %v470 = vpack.c.bf16 %v444, %v443
        %v471 = vpack.c.bf16 %v446, %v445
        %v472 = vpack.c.bf16 %v448, %v447
        %v473 = vpack.c.bf16 %v450, %v449
        %v474 = vpack.c.bf16 %v452, %v451
        %v475 = vpack.c.bf16 %v454, %v453
        %v476 = vpack.c.bf16 %v456, %v455
        %v477 = vpack.c.bf16 %v458, %v457
        %v478 = vpack.c.bf16 %v460, %v459
        %v479 = vpack.c.bf16 %v462, %v461
        %v480 = vpack.c.bf16 %v464, %v463
        %v481 = vld [vmem:[%s1] sm:$0xf]
        %v482 = vld [vmem:[%s1 + $0x4] sm:$0xf]
        %v483 = vld [vmem:[%s1 + $0x8] sm:$0xf]
        %v484 = vld [vmem:[%s1 + $0xc] sm:$0xf]
        %v485 = vld [vmem:[%s1 + $0x10] sm:$0xf]
        %v486 = vld [vmem:[%s1 + $0x14] sm:$0xf]
        %v487 = vld [vmem:[%s1 + $0x18] sm:$0xf]
        %v488 = vld [vmem:[%s1 + $0x1c] sm:$0xf]
        %v489 = vld [vmem:[%s1 + $0x20] sm:$0xf]
        %v490 = vld [vmem:[%s1 + $0x24] sm:$0xf]
        %v491 = vld [vmem:[%s1 + $0x28] sm:$0xf]
        %v492 = vld [vmem:[%s1 + $0x2c] sm:$0xf]
        %v493 = vld [vmem:[%s1 + $0x30] sm:$0xf]
        %v494 = vld [vmem:[%s1 + $0x34] sm:$0xf]
        %v495 = vld [vmem:[%s1 + $0x38] sm:$0xf]
        %v496 = vld [vmem:[%s1 + $0x3c] sm:$0xf]
        %v497 = vld [vmem:[%s2] sm:$0x1]
        %v499 = vlaneseq
        %v500 = vshrl.u32 %v499, 7
        %v501 = vsub.s32 0, %v500
        %v502 = vrot.slane %v497, %v501
        %v520 = vunpack.c.l.b16 %v481
        %v521 = vunpack.c.l.b16 %v482
        %v522 = vunpack.c.l.b16 %v483
        %v523 = vunpack.c.l.b16 %v484
        %v524 = vunpack.c.l.b16 %v485
        %v525 = vunpack.c.l.b16 %v486
        %v526 = vunpack.c.l.b16 %v487
        %v527 = vunpack.c.l.b16 %v488
        %v528 = vunpack.c.l.b16 %v489
        %v529 = vunpack.c.l.b16 %v490
        %v530 = vunpack.c.l.b16 %v491
        %v531 = vunpack.c.l.b16 %v492
        %v532 = vunpack.c.l.b16 %v493
        %v533 = vunpack.c.l.b16 %v494
        %v534 = vunpack.c.l.b16 %v495
        %v535 = vunpack.c.l.b16 %v496
        %v536 = vpack.c.b16 %v521, %v520
        %v537 = vpack.c.b16 %v523, %v522
        %v538 = vpack.c.b16 %v525, %v524
        %v539 = vpack.c.b16 %v527, %v526
        %v540 = vpack.c.b16 %v529, %v528
        %v541 = vpack.c.b16 %v531, %v530
        %v542 = vpack.c.b16 %v533, %v532
        %v543 = vpack.c.b16 %v535, %v534
        %552 = vmatprep.subr.bf16.mxu0 0
        %553 = vmatpush1.bf16.msra.mxu0 %v543
        %554 = vmatprep.subr.bf16.mxu0 0
        %555 = vmatpush1.bf16.msra.mxu0 %v542
        %556 = vmatprep.subr.bf16.mxu0 0
        %557 = vmatpush1.bf16.msra.mxu0 %v541
        %558 = vmatprep.subr.bf16.mxu0 0
        %559 = vmatpush1.bf16.msra.mxu0 %v540
        %560 = vmatprep.subr.bf16.mxu0 0
        %561 = vmatpush1.bf16.msra.mxu0 %v539
        %562 = vmatprep.subr.bf16.mxu0 0
        %563 = vmatpush1.bf16.msra.mxu0 %v538
        %564 = vmatprep.subr.bf16.mxu0 0
        %565 = vmatpush1.bf16.msra.mxu0 %v537
        %566 = vmatprep.subr.bf16.mxu0 0
        %567 = vmatpush1.bf16.msra.mxu0 %v536
        %568 = vmatprep.subr.bf16.mxu0 0
        %569 = vmatpush2.bf16.msra.mxu0 0
        %570 = vmatprep.subr.bf16.mxu0 0
        %571 = vmatpush2.bf16.msra.mxu0 0
        %572 = vmatprep.subr.bf16.mxu0 0
        %573 = vmatpush2.bf16.msra.mxu0 0
        %574 = vmatprep.subr.bf16.mxu0 0
        %575 = vmatpush2.bf16.msra.mxu0 0
        %576 = vmatprep.subr.bf16.mxu0 0
        %577 = vmatpush2.bf16.msra.mxu0 0
        %578 = vmatprep.subr.bf16.mxu0 0
        %579 = vmatpush2.bf16.msra.mxu0 0
        %580 = vmatprep.subr.bf16.mxu0 0
        %581 = vmatpush2.bf16.msra.mxu0 0
        %582 = vmatprep.subr.bf16.mxu0 0
        %583 = vmatpush2.bf16.msra.mxu0 0
        %584 = vmatprep.mubr.bf16.mxu0 0
        %585 = vmatmul.mubr.bf16.gmra.mxu0 %v465
        %v586 = vpop.f32.mrf.mxu0
        %v587 = vadd.f32 %v502, %v586
        %v588 = vpop.f32.mrf.mxu0
        %v589 = vpop.f32.mrf.mxu0
        %v590 = vadd.f32 %v502, %v589
        %v591 = vpop.f32.mrf.mxu0
        %592 = vmatprep.mubr.bf16.mxu0 0
        %593 = vmatmul.mubr.bf16.gmra.mxu0 %v466
        %v594 = vpop.f32.mrf.mxu0
        %v595 = vadd.f32 %v502, %v594
        %v596 = vpop.f32.mrf.mxu0
        %v597 = vpop.f32.mrf.mxu0
        %v598 = vadd.f32 %v502, %v597
        %v599 = vpop.f32.mrf.mxu0
        %600 = vmatprep.mubr.bf16.mxu0 0
        %601 = vmatmul.mubr.bf16.gmra.mxu0 %v467
        %v602 = vpop.f32.mrf.mxu0
        %v603 = vadd.f32 %v502, %v602
        %v604 = vpop.f32.mrf.mxu0
        %v605 = vpop.f32.mrf.mxu0
        %v606 = vadd.f32 %v502, %v605
        %v607 = vpop.f32.mrf.mxu0
        %608 = vmatprep.mubr.bf16.mxu0 0
        %609 = vmatmul.mubr.bf16.gmra.mxu0 %v468
        %v610 = vpop.f32.mrf.mxu0
        %v611 = vadd.f32 %v502, %v610
        %v612 = vpop.f32.mrf.mxu0
        %v613 = vpop.f32.mrf.mxu0
        %v614 = vadd.f32 %v502, %v613
        %v615 = vpop.f32.mrf.mxu0
        %616 = vmatprep.mubr.bf16.mxu0 0
        %617 = vmatmul.mubr.bf16.gmra.mxu0 %v469
        %v618 = vpop.f32.mrf.mxu0
        %v619 = vadd.f32 %v502, %v618
        %v620 = vpop.f32.mrf.mxu0
        %v621 = vpop.f32.mrf.mxu0
        %v622 = vadd.f32 %v502, %v621
        %v623 = vpop.f32.mrf.mxu0
        %624 = vmatprep.mubr.bf16.mxu0 0
        %625 = vmatmul.mubr.bf16.gmra.mxu0 %v470
        %v626 = vpop.f32.mrf.mxu0
        %v627 = vadd.f32 %v502, %v626
        %v628 = vpop.f32.mrf.mxu0
        %v629 = vpop.f32.mrf.mxu0
        %v630 = vadd.f32 %v502, %v629
        %v631 = vpop.f32.mrf.mxu0
        %632 = vmatprep.mubr.bf16.mxu0 0
        %633 = vmatmul.mubr.bf16.gmra.mxu0 %v471
        %v634 = vpop.f32.mrf.mxu0
        %v635 = vadd.f32 %v502, %v634
        %v636 = vpop.f32.mrf.mxu0
        %v637 = vpop.f32.mrf.mxu0
        %v638 = vadd.f32 %v502, %v637
        %v639 = vpop.f32.mrf.mxu0
        %640 = vmatprep.mubr.bf16.mxu0 0
        %641 = vmatmul.mubr.bf16.gmra.mxu0 %v472
        %v642 = vpop.f32.mrf.mxu0
        %v643 = vadd.f32 %v502, %v642
        %v644 = vpop.f32.mrf.mxu0
        %v645 = vpop.f32.mrf.mxu0
        %v646 = vadd.f32 %v502, %v645
        %v647 = vpop.f32.mrf.mxu0
        %648 = vmatprep.mubr.bf16.mxu0 0
        %649 = vmatmul.mubr.bf16.gmra.mxu0 %v473
        %v650 = vpop.f32.mrf.mxu0
        %v651 = vadd.f32 %v502, %v650
        %v652 = vpop.f32.mrf.mxu0
        %v653 = vpop.f32.mrf.mxu0
        %v654 = vadd.f32 %v502, %v653
        %v655 = vpop.f32.mrf.mxu0
        %656 = vmatprep.mubr.bf16.mxu0 0
        %657 = vmatmul.mubr.bf16.gmra.mxu0 %v474
        %v658 = vpop.f32.mrf.mxu0
        %v659 = vadd.f32 %v502, %v658
        %v660 = vpop.f32.mrf.mxu0
        %v661 = vpop.f32.mrf.mxu0
        %v662 = vadd.f32 %v502, %v661
        %v663 = vpop.f32.mrf.mxu0
        %664 = vmatprep.mubr.bf16.mxu0 0
        %665 = vmatmul.mubr.bf16.gmra.mxu0 %v475
        %v666 = vpop.f32.mrf.mxu0
        %v667 = vadd.f32 %v502, %v666
        %v668 = vpop.f32.mrf.mxu0
        %v669 = vpop.f32.mrf.mxu0
        %v670 = vadd.f32 %v502, %v669
        %v671 = vpop.f32.mrf.mxu0
        %672 = vmatprep.mubr.bf16.mxu0 0
        %673 = vmatmul.mubr.bf16.gmra.mxu0 %v476
        %v674 = vpop.f32.mrf.mxu0
        %v675 = vadd.f32 %v502, %v674
        %v676 = vpop.f32.mrf.mxu0
        %v677 = vpop.f32.mrf.mxu0
        %v678 = vadd.f32 %v502, %v677
        %v679 = vpop.f32.mrf.mxu0
        %680 = vmatprep.mubr.bf16.mxu0 0
        %681 = vmatmul.mubr.bf16.gmra.mxu0 %v477
        %v682 = vpop.f32.mrf.mxu0
        %v683 = vadd.f32 %v502, %v682
        %v684 = vpop.f32.mrf.mxu0
        %v685 = vpop.f32.mrf.mxu0
        %v686 = vadd.f32 %v502, %v685
        %v687 = vpop.f32.mrf.mxu0
        %688 = vmatprep.mubr.bf16.mxu0 0
        %689 = vmatmul.mubr.bf16.gmra.mxu0 %v478
        %v690 = vpop.f32.mrf.mxu0
        %v691 = vadd.f32 %v502, %v690
        %v692 = vpop.f32.mrf.mxu0
        %v693 = vpop.f32.mrf.mxu0
        %v694 = vadd.f32 %v502, %v693
        %v695 = vpop.f32.mrf.mxu0
        %696 = vmatprep.mubr.bf16.mxu0 0
        %697 = vmatmul.mubr.bf16.gmra.mxu0 %v479
        %v698 = vpop.f32.mrf.mxu0
        %v699 = vadd.f32 %v502, %v698
        %v700 = vpop.f32.mrf.mxu0
        %v701 = vpop.f32.mrf.mxu0
        %v702 = vadd.f32 %v502, %v701
        %v703 = vpop.f32.mrf.mxu0
        %704 = vmatprep.mubr.bf16.mxu0 0
        %705 = vmatmul.mubr.bf16.gmra.mxu0 %v480
        %v706 = vpop.f32.mrf.mxu0
        %v707 = vadd.f32 %v502, %v706
        %v708 = vpop.f32.mrf.mxu0
        %v709 = vpop.f32.mrf.mxu0
        %v710 = vadd.f32 %v502, %v709
        %v711 = vpop.f32.mrf.mxu0
        %712 = vdwg.mxu0
        %v713 = vmax.f32 %v587, 0.0
        %v714 = vmax.f32 %v590, 0.0
        %v715 = vmax.f32 %v595, 0.0
        %v716 = vmax.f32 %v598, 0.0
        %v717 = vmax.f32 %v603, 0.0
        %v718 = vmax.f32 %v606, 0.0
        %v719 = vmax.f32 %v611, 0.0
        %v720 = vmax.f32 %v614, 0.0
        %v721 = vmax.f32 %v619, 0.0
        %v722 = vmax.f32 %v622, 0.0
        %v723 = vmax.f32 %v627, 0.0
        %v724 = vmax.f32 %v630, 0.0
        %v725 = vmax.f32 %v635, 0.0
        %v726 = vmax.f32 %v638, 0.0
        %v727 = vmax.f32 %v643, 0.0
        %v728 = vmax.f32 %v646, 0.0
        %v729 = vmax.f32 %v651, 0.0
        %v730 = vmax.f32 %v654, 0.0
        %v731 = vmax.f32 %v659, 0.0
        %v732 = vmax.f32 %v662, 0.0
        %v733 = vmax.f32 %v667, 0.0
        %v734 = vmax.f32 %v670, 0.0
        %v735 = vmax.f32 %v675, 0.0
        %v736 = vmax.f32 %v678, 0.0
        %v737 = vmax.f32 %v683, 0.0
        %v738 = vmax.f32 %v686, 0.0
        %v739 = vmax.f32 %v691, 0.0
        %v740 = vmax.f32 %v694, 0.0
        %v741 = vmax.f32 %v699, 0.0
        %v742 = vmax.f32 %v702, 0.0
        %v743 = vmax.f32 %v707, 0.0
        %v744 = vmax.f32 %v710, 0.0
        %v745 = vld [vmem:[%s3] sm:$0xf]
        %v746 = vld [vmem:[%s3 + $0x4] sm:$0xf]
        %v747 = vld [vmem:[%s3 + $0x8] sm:$0xf]
        %v748 = vld [vmem:[%s3 + $0xc] sm:$0xf]
        %v749 = vld [vmem:[%s3 + $0x10] sm:$0xf]
        %v750 = vld [vmem:[%s3 + $0x14] sm:$0xf]
        %v751 = vld [vmem:[%s3 + $0x18] sm:$0xf]
        %v752 = vld [vmem:[%s3 + $0x1c] sm:$0xf]
        %v753 = vld [vmem:[%s3 + $0x20] sm:$0xf]
        %v754 = vld [vmem:[%s3 + $0x24] sm:$0xf]
        %v755 = vld [vmem:[%s3 + $0x28] sm:$0xf]
        %v756 = vld [vmem:[%s3 + $0x2c] sm:$0xf]
        %v757 = vld [vmem:[%s3 + $0x30] sm:$0xf]
        %v758 = vld [vmem:[%s3 + $0x34] sm:$0xf]
        %v759 = vld [vmem:[%s3 + $0x38] sm:$0xf]
        %v760 = vld [vmem:[%s3 + $0x3c] sm:$0xf]
        %v761 = vld [vmem:[%s4] sm:$0x1]
        %v763 = vlaneseq
        %v764 = vshrl.u32 %v763, 7
        %v765 = vsub.s32 0, %v764
        %v766 = vrot.slane %v761, %v765
        %v784 = vunpack.c.l.b16 %v745
        %v785 = vunpack.c.l.b16 %v746
        %v786 = vunpack.c.l.b16 %v747
        %v787 = vunpack.c.l.b16 %v748
        %v788 = vunpack.c.l.b16 %v749
        %v789 = vunpack.c.l.b16 %v750
        %v790 = vunpack.c.l.b16 %v751
        %v791 = vunpack.c.l.b16 %v752
        %v792 = vunpack.c.l.b16 %v753
        %v793 = vunpack.c.l.b16 %v754
        %v794 = vunpack.c.l.b16 %v755
        %v795 = vunpack.c.l.b16 %v756
        %v796 = vunpack.c.l.b16 %v757
        %v797 = vunpack.c.l.b16 %v758
        %v798 = vunpack.c.l.b16 %v759
        %v799 = vunpack.c.l.b16 %v760
        %v800 = vpack.c.b16 %v785, %v784
        %v801 = vpack.c.b16 %v787, %v786
        %v802 = vpack.c.b16 %v789, %v788
        %v803 = vpack.c.b16 %v791, %v790
        %v804 = vpack.c.b16 %v793, %v792
        %v805 = vpack.c.b16 %v795, %v794
        %v806 = vpack.c.b16 %v797, %v796
        %v807 = vpack.c.b16 %v799, %v798
        %816 = vmatprep.subr.bf16.mxu0 0
        %817 = vmatpush1.bf16.msra.mxu0 %v807
        %818 = vmatprep.subr.bf16.mxu0 0
        %819 = vmatpush1.bf16.msra.mxu0 %v806
        %820 = vmatprep.subr.bf16.mxu0 0
        %821 = vmatpush1.bf16.msra.mxu0 %v805
        %822 = vmatprep.subr.bf16.mxu0 0
        %823 = vmatpush1.bf16.msra.mxu0 %v804
        %824 = vmatprep.subr.bf16.mxu0 0
        %825 = vmatpush1.bf16.msra.mxu0 %v803
        %826 = vmatprep.subr.bf16.mxu0 0
        %827 = vmatpush1.bf16.msra.mxu0 %v802
        %828 = vmatprep.subr.bf16.mxu0 0
        %829 = vmatpush1.bf16.msra.mxu0 %v801
        %830 = vmatprep.subr.bf16.mxu0 0
        %831 = vmatpush1.bf16.msra.mxu0 %v800
        %832 = vmatprep.subr.bf16.mxu0 0
        %833 = vmatpush2.bf16.msra.mxu0 0
        %834 = vmatprep.subr.bf16.mxu0 0
        %835 = vmatpush2.bf16.msra.mxu0 0
        %836 = vmatprep.subr.bf16.mxu0 0
        %837 = vmatpush2.bf16.msra.mxu0 0
        %838 = vmatprep.subr.bf16.mxu0 0
        %839 = vmatpush2.bf16.msra.mxu0 0
        %840 = vmatprep.subr.bf16.mxu0 0
        %841 = vmatpush2.bf16.msra.mxu0 0
        %842 = vmatprep.subr.bf16.mxu0 0
        %843 = vmatpush2.bf16.msra.mxu0 0
        %844 = vmatprep.subr.bf16.mxu0 0
        %845 = vmatpush2.bf16.msra.mxu0 0
        %846 = vmatprep.subr.bf16.mxu0 0
        %847 = vmatpush2.bf16.msra.mxu0 0
        %848 = vmatprep.mubr.bf16.mxu0 0
        %849 = vmatmul.mubr.bf16.gmra.mxu0 %v465
        %v850 = vpop.f32.mrf.mxu0
        %v851 = vadd.f32 %v766, %v850
        %v852 = vpop.f32.mrf.mxu0
        %v853 = vpop.f32.mrf.mxu0
        %v854 = vadd.f32 %v766, %v853
        %v855 = vpop.f32.mrf.mxu0
        %856 = vmatprep.mubr.bf16.mxu0 0
        %857 = vmatmul.mubr.bf16.gmra.mxu0 %v466
        %v858 = vpop.f32.mrf.mxu0
        %v859 = vadd.f32 %v766, %v858
        %v860 = vpop.f32.mrf.mxu0
        %v861 = vpop.f32.mrf.mxu0
        %v862 = vadd.f32 %v766, %v861
        %v863 = vpop.f32.mrf.mxu0
        %864 = vmatprep.mubr.bf16.mxu0 0
        %865 = vmatmul.mubr.bf16.gmra.mxu0 %v467
        %v866 = vpop.f32.mrf.mxu0
        %v867 = vadd.f32 %v766, %v866
        %v868 = vpop.f32.mrf.mxu0
        %v869 = vpop.f32.mrf.mxu0
        %v870 = vadd.f32 %v766, %v869
        %v871 = vpop.f32.mrf.mxu0
        %872 = vmatprep.mubr.bf16.mxu0 0
        %873 = vmatmul.mubr.bf16.gmra.mxu0 %v468
        %v874 = vpop.f32.mrf.mxu0
        %v875 = vadd.f32 %v766, %v874
        %v876 = vpop.f32.mrf.mxu0
        %v877 = vpop.f32.mrf.mxu0
        %v878 = vadd.f32 %v766, %v877
        %v879 = vpop.f32.mrf.mxu0
        %880 = vmatprep.mubr.bf16.mxu0 0
        %881 = vmatmul.mubr.bf16.gmra.mxu0 %v469
        %v882 = vpop.f32.mrf.mxu0
        %v883 = vadd.f32 %v766, %v882
        %v884 = vpop.f32.mrf.mxu0
        %v885 = vpop.f32.mrf.mxu0
        %v886 = vadd.f32 %v766, %v885
        %v887 = vpop.f32.mrf.mxu0
        %888 = vmatprep.mubr.bf16.mxu0 0
        %889 = vmatmul.mubr.bf16.gmra.mxu0 %v470
        %v890 = vpop.f32.mrf.mxu0
        %v891 = vadd.f32 %v766, %v890
        %v892 = vpop.f32.mrf.mxu0
        %v893 = vpop.f32.mrf.mxu0
        %v894 = vadd.f32 %v766, %v893
        %v895 = vpop.f32.mrf.mxu0
        %896 = vmatprep.mubr.bf16.mxu0 0
        %897 = vmatmul.mubr.bf16.gmra.mxu0 %v471
        %v898 = vpop.f32.mrf.mxu0
        %v899 = vadd.f32 %v766, %v898
        %v900 = vpop.f32.mrf.mxu0
        %v901 = vpop.f32.mrf.mxu0
        %v902 = vadd.f32 %v766, %v901
        %v903 = vpop.f32.mrf.mxu0
        %904 = vmatprep.mubr.bf16.mxu0 0
        %905 = vmatmul.mubr.bf16.gmra.mxu0 %v472
        %v906 = vpop.f32.mrf.mxu0
        %v907 = vadd.f32 %v766, %v906
        %v908 = vpop.f32.mrf.mxu0
        %v909 = vpop.f32.mrf.mxu0
        %v910 = vadd.f32 %v766, %v909
        %v911 = vpop.f32.mrf.mxu0
        %912 = vmatprep.mubr.bf16.mxu0 0
        %913 = vmatmul.mubr.bf16.gmra.mxu0 %v473
        %v914 = vpop.f32.mrf.mxu0
        %v915 = vadd.f32 %v766, %v914
        %v916 = vpop.f32.mrf.mxu0
        %v917 = vpop.f32.mrf.mxu0
        %v918 = vadd.f32 %v766, %v917
        %v919 = vpop.f32.mrf.mxu0
        %920 = vmatprep.mubr.bf16.mxu0 0
        %921 = vmatmul.mubr.bf16.gmra.mxu0 %v474
        %v922 = vpop.f32.mrf.mxu0
        %v923 = vadd.f32 %v766, %v922
        %v924 = vpop.f32.mrf.mxu0
        %v925 = vpop.f32.mrf.mxu0
        %v926 = vadd.f32 %v766, %v925
        %v927 = vpop.f32.mrf.mxu0
        %928 = vmatprep.mubr.bf16.mxu0 0
        %929 = vmatmul.mubr.bf16.gmra.mxu0 %v475
        %v930 = vpop.f32.mrf.mxu0
        %v931 = vadd.f32 %v766, %v930
        %v932 = vpop.f32.mrf.mxu0
        %v933 = vpop.f32.mrf.mxu0
        %v934 = vadd.f32 %v766, %v933
        %v935 = vpop.f32.mrf.mxu0
        %936 = vmatprep.mubr.bf16.mxu0 0
        %937 = vmatmul.mubr.bf16.gmra.mxu0 %v476
        %v938 = vpop.f32.mrf.mxu0
        %v939 = vadd.f32 %v766, %v938
        %v940 = vpop.f32.mrf.mxu0
        %v941 = vpop.f32.mrf.mxu0
        %v942 = vadd.f32 %v766, %v941
        %v943 = vpop.f32.mrf.mxu0
        %944 = vmatprep.mubr.bf16.mxu0 0
        %945 = vmatmul.mubr.bf16.gmra.mxu0 %v477
        %v946 = vpop.f32.mrf.mxu0
        %v947 = vadd.f32 %v766, %v946
        %v948 = vpop.f32.mrf.mxu0
        %v949 = vpop.f32.mrf.mxu0
        %v950 = vadd.f32 %v766, %v949
        %v951 = vpop.f32.mrf.mxu0
        %952 = vmatprep.mubr.bf16.mxu0 0
        %953 = vmatmul.mubr.bf16.gmra.mxu0 %v478
        %v954 = vpop.f32.mrf.mxu0
        %v955 = vadd.f32 %v766, %v954
        %v956 = vpop.f32.mrf.mxu0
        %v957 = vpop.f32.mrf.mxu0
        %v958 = vadd.f32 %v766, %v957
        %v959 = vpop.f32.mrf.mxu0
        %960 = vmatprep.mubr.bf16.mxu0 0
        %961 = vmatmul.mubr.bf16.gmra.mxu0 %v479
        %v962 = vpop.f32.mrf.mxu0
        %v963 = vadd.f32 %v766, %v962
        %v964 = vpop.f32.mrf.mxu0
        %v965 = vpop.f32.mrf.mxu0
        %v966 = vadd.f32 %v766, %v965
        %v967 = vpop.f32.mrf.mxu0
        %968 = vmatprep.mubr.bf16.mxu0 0
        %969 = vmatmul.mubr.bf16.gmra.mxu0 %v480
        %v970 = vpop.f32.mrf.mxu0
        %v971 = vadd.f32 %v766, %v970
        %v972 = vpop.f32.mrf.mxu0
        %v973 = vpop.f32.mrf.mxu0
        %v974 = vadd.f32 %v766, %v973
        %v975 = vpop.f32.mrf.mxu0
        %976 = vdwg.mxu0
        %v977 = vmax.f32 %v851, 0.0
        %v978 = vmax.f32 %v854, 0.0
        %v979 = vmax.f32 %v859, 0.0
        %v980 = vmax.f32 %v862, 0.0
        %v981 = vmax.f32 %v867, 0.0
        %v982 = vmax.f32 %v870, 0.0
        %v983 = vmax.f32 %v875, 0.0
        %v984 = vmax.f32 %v878, 0.0
        %v985 = vmax.f32 %v883, 0.0
        %v986 = vmax.f32 %v886, 0.0
        %v987 = vmax.f32 %v891, 0.0
        %v988 = vmax.f32 %v894, 0.0
        %v989 = vmax.f32 %v899, 0.0
        %v990 = vmax.f32 %v902, 0.0
        %v991 = vmax.f32 %v907, 0.0
        %v992 = vmax.f32 %v910, 0.0
        %v993 = vmax.f32 %v915, 0.0
        %v994 = vmax.f32 %v918, 0.0
        %v995 = vmax.f32 %v923, 0.0
        %v996 = vmax.f32 %v926, 0.0
        %v997 = vmax.f32 %v931, 0.0
        %v998 = vmax.f32 %v934, 0.0
        %v999 = vmax.f32 %v939, 0.0
        %v1000 = vmax.f32 %v942, 0.0
        %v1001 = vmax.f32 %v947, 0.0
        %v1002 = vmax.f32 %v950, 0.0
        %v1003 = vmax.f32 %v955, 0.0
        %v1004 = vmax.f32 %v958, 0.0
        %v1005 = vmax.f32 %v963, 0.0
        %v1006 = vmax.f32 %v966, 0.0
        %v1007 = vmax.f32 %v971, 0.0
        %v1008 = vmax.f32 %v974, 0.0
        %vm1041 = vcmask 1040384
        %v1042 = vrot.slane %v743, 7
        %v1043 = vrot.slane %v744, 7
        %v1044 = vsel %vm1041, %v1042, %v1043
        %v1045 = vrot.slane %v713, 7
        %v1046 = vrot.slane %v714, 7
        %v1047 = vsel %vm1041, %v1045, %v1046
        %v1048 = vrot.slane %v715, 7
        %v1049 = vrot.slane %v716, 7
        %v1050 = vsel %vm1041, %v1048, %v1049
        %v1051 = vrot.slane %v717, 7
        %v1052 = vrot.slane %v718, 7
        %v1053 = vsel %vm1041, %v1051, %v1052
        %v1054 = vrot.slane %v719, 7
        %v1055 = vrot.slane %v720, 7
        %v1056 = vsel %vm1041, %v1054, %v1055
        %v1057 = vrot.slane %v721, 7
        %v1058 = vrot.slane %v722, 7
        %v1059 = vsel %vm1041, %v1057, %v1058
        %v1060 = vrot.slane %v723, 7
        %v1061 = vrot.slane %v724, 7
        %v1062 = vsel %vm1041, %v1060, %v1061
        %v1063 = vrot.slane %v725, 7
        %v1064 = vrot.slane %v726, 7
        %v1065 = vsel %vm1041, %v1063, %v1064
        %v1066 = vrot.slane %v727, 7
        %v1067 = vrot.slane %v728, 7
        %v1068 = vsel %vm1041, %v1066, %v1067
        %v1069 = vrot.slane %v729, 7
        %v1070 = vrot.slane %v730, 7
        %v1071 = vsel %vm1041, %v1069, %v1070
        %v1072 = vrot.slane %v731, 7
        %v1073 = vrot.slane %v732, 7
        %v1074 = vsel %vm1041, %v1072, %v1073
        %v1075 = vrot.slane %v733, 7
        %v1076 = vrot.slane %v734, 7
        %v1077 = vsel %vm1041, %v1075, %v1076
        %v1078 = vrot.slane %v735, 7
        %v1079 = vrot.slane %v736, 7
        %v1080 = vsel %vm1041, %v1078, %v1079
        %v1081 = vrot.slane %v737, 7
        %v1082 = vrot.slane %v738, 7
        %v1083 = vsel %vm1041, %v1081, %v1082
        %v1084 = vrot.slane %v739, 7
        %v1085 = vrot.slane %v740, 7
        %v1086 = vsel %vm1041, %v1084, %v1085
        %v1087 = vrot.slane %v741, 7
        %v1088 = vrot.slane %v742, 7
        %v1089 = vsel %vm1041, %v1087, %v1088
        %v1138 = vrot.slane %v744, 6
        %v1139 = vrot.slane %v714, 6
        %v1140 = vrot.slane %v716, 6
        %v1141 = vrot.slane %v718, 6
        %v1142 = vrot.slane %v720, 6
        %v1143 = vrot.slane %v722, 6
        %v1144 = vrot.slane %v724, 6
        %v1145 = vrot.slane %v726, 6
        %v1146 = vrot.slane %v728, 6
        %v1147 = vrot.slane %v730, 6
        %v1148 = vrot.slane %v732, 6
        %v1149 = vrot.slane %v734, 6
        %v1150 = vrot.slane %v736, 6
        %v1151 = vrot.slane %v738, 6
        %v1152 = vrot.slane %v740, 6
        %v1153 = vrot.slane %v742, 6
        %v1170 = vsel %vm1041, %v743, %v1042
        %v1171 = vsel %vm1041, %v713, %v1045
        %v1172 = vsel %vm1041, %v715, %v1048
        %v1173 = vsel %vm1041, %v717, %v1051
        %v1174 = vsel %vm1041, %v719, %v1054
        %v1175 = vsel %vm1041, %v721, %v1057
        %v1176 = vsel %vm1041, %v723, %v1060
        %v1177 = vsel %vm1041, %v725, %v1063
        %v1178 = vsel %vm1041, %v727, %v1066
        %v1179 = vsel %vm1041, %v729, %v1069
        %v1180 = vsel %vm1041, %v731, %v1072
        %v1181 = vsel %vm1041, %v733, %v1075
        %v1182 = vsel %vm1041, %v735, %v1078
        %v1183 = vsel %vm1041, %v737, %v1081
        %v1184 = vsel %vm1041, %v739, %v1084
        %v1185 = vsel %vm1041, %v741, %v1087
        %v1186 = vsel %vm1041, %v1043, %v1138
        %v1187 = vsel %vm1041, %v1046, %v1139
        %v1188 = vsel %vm1041, %v1049, %v1140
        %v1189 = vsel %vm1041, %v1052, %v1141
        %v1190 = vsel %vm1041, %v1055, %v1142
        %v1191 = vsel %vm1041, %v1058, %v1143
        %v1192 = vsel %vm1041, %v1061, %v1144
        %v1193 = vsel %vm1041, %v1064, %v1145
        %v1194 = vsel %vm1041, %v1067, %v1146
        %v1195 = vsel %vm1041, %v1070, %v1147
        %v1196 = vsel %vm1041, %v1073, %v1148
        %v1197 = vsel %vm1041, %v1076, %v1149
        %v1198 = vsel %vm1041, %v1079, %v1150
        %v1199 = vsel %vm1041, %v1082, %v1151
        %v1200 = vsel %vm1041, %v1085, %v1152
        %v1201 = vsel %vm1041, %v1088, %v1153
        %v1235 = vrot.slane 0.0, 7
        %v1236 = vsel %vm1041, %v1235, %v1235
        %v1237 = vrot.slane %v977, 7
        %v1238 = vrot.slane %v978, 7
        %v1239 = vsel %vm1041, %v1237, %v1238
        %v1240 = vrot.slane %v979, 7
        %v1241 = vrot.slane %v980, 7
        %v1242 = vsel %vm1041, %v1240, %v1241
        %v1243 = vrot.slane %v981, 7
        %v1244 = vrot.slane %v982, 7
        %v1245 = vsel %vm1041, %v1243, %v1244
        %v1246 = vrot.slane %v983, 7
        %v1247 = vrot.slane %v984, 7
        %v1248 = vsel %vm1041, %v1246, %v1247
        %v1249 = vrot.slane %v985, 7
        %v1250 = vrot.slane %v986, 7
        %v1251 = vsel %vm1041, %v1249, %v1250
        %v1252 = vrot.slane %v987, 7
        %v1253 = vrot.slane %v988, 7
        %v1254 = vsel %vm1041, %v1252, %v1253
        %v1255 = vrot.slane %v989, 7
        %v1256 = vrot.slane %v990, 7
        %v1257 = vsel %vm1041, %v1255, %v1256
        %v1258 = vrot.slane %v991, 7
        %v1259 = vrot.slane %v992, 7
        %v1260 = vsel %vm1041, %v1258, %v1259
        %v1261 = vrot.slane %v993, 7
        %v1262 = vrot.slane %v994, 7
        %v1263 = vsel %vm1041, %v1261, %v1262
        %v1264 = vrot.slane %v995, 7
        %v1265 = vrot.slane %v996, 7
        %v1266 = vsel %vm1041, %v1264, %v1265
        %v1267 = vrot.slane %v997, 7
        %v1268 = vrot.slane %v998, 7
        %v1269 = vsel %vm1041, %v1267, %v1268
        %v1270 = vrot.slane %v999, 7
        %v1271 = vrot.slane %v1000, 7
        %v1272 = vsel %vm1041, %v1270, %v1271
        %v1273 = vrot.slane %v1001, 7
        %v1274 = vrot.slane %v1002, 7
        %v1275 = vsel %vm1041, %v1273, %v1274
        %v1276 = vrot.slane %v1003, 7
        %v1277 = vrot.slane %v1004, 7
        %v1278 = vsel %vm1041, %v1276, %v1277
        %v1279 = vrot.slane %v1005, 7
        %v1280 = vrot.slane %v1006, 7
        %v1281 = vsel %vm1041, %v1279, %v1280
        %v1282 = vrot.slane %v1007, 7
        %v1283 = vrot.slane %v1008, 7
        %v1284 = vsel %vm1041, %v1282, %v1283
        %v1334 = vsel %vm1041, 0.0, %v1235
        %v1335 = vsel %vm1041, 0.0, %v1237
        %v1336 = vsel %vm1041, 0.0, %v1240
        %v1337 = vsel %vm1041, 0.0, %v1243
        %v1338 = vsel %vm1041, 0.0, %v1246
        %v1339 = vsel %vm1041, 0.0, %v1249
        %v1340 = vsel %vm1041, 0.0, %v1252
        %v1341 = vsel %vm1041, 0.0, %v1255
        %v1342 = vsel %vm1041, 0.0, %v1258
        %v1343 = vsel %vm1041, 0.0, %v1261
        %v1344 = vsel %vm1041, 0.0, %v1264
        %v1345 = vsel %vm1041, 0.0, %v1267
        %v1346 = vsel %vm1041, 0.0, %v1270
        %v1347 = vsel %vm1041, 0.0, %v1273
        %v1348 = vsel %vm1041, 0.0, %v1276
        %v1349 = vsel %vm1041, 0.0, %v1279
        %v1350 = vsel %vm1041, 0.0, %v1282
        %v1351 = vsel %vm1041, %v1235, 0.0
        %v1352 = vsel %vm1041, %v1238, 0.0
        %v1353 = vsel %vm1041, %v1241, 0.0
        %v1354 = vsel %vm1041, %v1244, 0.0
        %v1355 = vsel %vm1041, %v1247, 0.0
        %v1356 = vsel %vm1041, %v1250, 0.0
        %v1357 = vsel %vm1041, %v1253, 0.0
        %v1358 = vsel %vm1041, %v1256, 0.0
        %v1359 = vsel %vm1041, %v1259, 0.0
        %v1360 = vsel %vm1041, %v1262, 0.0
        %v1361 = vsel %vm1041, %v1265, 0.0
        %v1362 = vsel %vm1041, %v1268, 0.0
        %v1363 = vsel %vm1041, %v1271, 0.0
        %v1364 = vsel %vm1041, %v1274, 0.0
        %v1365 = vsel %vm1041, %v1277, 0.0
        %v1366 = vsel %vm1041, %v1280, 0.0
        %v1367 = vsel %vm1041, %v1283, 0.0
        %vm1400 = vcmask 1046528
        %v1401 = vrot.slane %v1170, 1
        %v1402 = vrot.slane %v1044, 1
        %v1403 = vsel %vm1400, %v1401, %v1402
        %v1404 = vrot.slane %v1186, 1
        %v1405 = vsel %vm1400, %v1402, %v1404
        %v1406 = vrot.slane %v1171, 1
        %v1407 = vrot.slane %v1047, 1
        %v1408 = vsel %vm1400, %v1406, %v1407
        %v1409 = vrot.slane %v1187, 1
        %v1410 = vsel %vm1400, %v1407, %v1409
        %v1411 = vrot.slane %v1172, 1
        %v1412 = vrot.slane %v1050, 1
        %v1413 = vsel %vm1400, %v1411, %v1412
        %v1414 = vrot.slane %v1188, 1
        %v1415 = vsel %vm1400, %v1412, %v1414
        %v1416 = vrot.slane %v1173, 1
        %v1417 = vrot.slane %v1053, 1
        %v1418 = vsel %vm1400, %v1416, %v1417
        %v1419 = vrot.slane %v1189, 1
        %v1420 = vsel %vm1400, %v1417, %v1419
        %v1421 = vrot.slane %v1174, 1
        %v1422 = vrot.slane %v1056, 1
        %v1423 = vsel %vm1400, %v1421, %v1422
        %v1424 = vrot.slane %v1190, 1
        %v1425 = vsel %vm1400, %v1422, %v1424
        %v1426 = vrot.slane %v1175, 1
        %v1427 = vrot.slane %v1059, 1
        %v1428 = vsel %vm1400, %v1426, %v1427
        %v1429 = vrot.slane %v1191, 1
        %v1430 = vsel %vm1400, %v1427, %v1429
        %v1431 = vrot.slane %v1176, 1
        %v1432 = vrot.slane %v1062, 1
        %v1433 = vsel %vm1400, %v1431, %v1432
        %v1434 = vrot.slane %v1192, 1
        %v1435 = vsel %vm1400, %v1432, %v1434
        %v1436 = vrot.slane %v1177, 1
        %v1437 = vrot.slane %v1065, 1
        %v1438 = vsel %vm1400, %v1436, %v1437
        %v1439 = vrot.slane %v1193, 1
        %v1440 = vsel %vm1400, %v1437, %v1439
        %v1441 = vrot.slane %v1178, 1
        %v1442 = vrot.slane %v1068, 1
        %v1443 = vsel %vm1400, %v1441, %v1442
        %v1444 = vrot.slane %v1194, 1
        %v1445 = vsel %vm1400, %v1442, %v1444
        %v1446 = vrot.slane %v1179, 1
        %v1447 = vrot.slane %v1071, 1
        %v1448 = vsel %vm1400, %v1446, %v1447
        %v1449 = vrot.slane %v1195, 1
        %v1450 = vsel %vm1400, %v1447, %v1449
        %v1451 = vrot.slane %v1180, 1
        %v1452 = vrot.slane %v1074, 1
        %v1453 = vsel %vm1400, %v1451, %v1452
        %v1454 = vrot.slane %v1196, 1
        %v1455 = vsel %vm1400, %v1452, %v1454
        %v1456 = vrot.slane %v1181, 1
        %v1457 = vrot.slane %v1077, 1
        %v1458 = vsel %vm1400, %v1456, %v1457
        %v1459 = vrot.slane %v1197, 1
        %v1460 = vsel %vm1400, %v1457, %v1459
        %v1461 = vrot.slane %v1182, 1
        %v1462 = vrot.slane %v1080, 1
        %v1463 = vsel %vm1400, %v1461, %v1462
        %v1464 = vrot.slane %v1198, 1
        %v1465 = vsel %vm1400, %v1462, %v1464
        %v1466 = vrot.slane %v1183, 1
        %v1467 = vrot.slane %v1083, 1
        %v1468 = vsel %vm1400, %v1466, %v1467
        %v1469 = vrot.slane %v1199, 1
        %v1470 = vsel %vm1400, %v1467, %v1469
        %v1471 = vrot.slane %v1184, 1
        %v1472 = vrot.slane %v1086, 1
        %v1473 = vsel %vm1400, %v1471, %v1472
        %v1474 = vrot.slane %v1200, 1
        %v1475 = vsel %vm1400, %v1472, %v1474
        %v1476 = vrot.slane %v1185, 1
        %v1477 = vrot.slane %v1089, 1
        %v1478 = vsel %vm1400, %v1476, %v1477
        %v1479 = vrot.slane %v1201, 1
        %v1480 = vsel %vm1400, %v1477, %v1479
        %1481 = vrot.lane.b32.xlu0 %v1403, 16
        %v1482 = vpop.permute.xlu0 %1481
        %1483 = vrot.lane.b32.xlu0 %v1405, 16
        %v1484 = vpop.permute.xlu0 %1483
        %1485 = vrot.lane.b32.xlu0 %v1408, 16
        %v1486 = vpop.permute.xlu0 %1485
        %1487 = vrot.lane.b32.xlu0 %v1410, 16
        %v1488 = vpop.permute.xlu0 %1487
        %1489 = vrot.lane.b32.xlu0 %v1413, 16
        %v1490 = vpop.permute.xlu0 %1489
        %1491 = vrot.lane.b32.xlu0 %v1415, 16
        %v1492 = vpop.permute.xlu0 %1491
        %1493 = vrot.lane.b32.xlu0 %v1418, 16
        %v1494 = vpop.permute.xlu0 %1493
        %1495 = vrot.lane.b32.xlu0 %v1420, 16
        %v1496 = vpop.permute.xlu0 %1495
        %1497 = vrot.lane.b32.xlu0 %v1423, 16
        %v1498 = vpop.permute.xlu0 %1497
        %1499 = vrot.lane.b32.xlu0 %v1425, 16
        %v1500 = vpop.permute.xlu0 %1499
        %1501 = vrot.lane.b32.xlu0 %v1428, 16
        %v1502 = vpop.permute.xlu0 %1501
        %1503 = vrot.lane.b32.xlu0 %v1430, 16
        %v1504 = vpop.permute.xlu0 %1503
        %1505 = vrot.lane.b32.xlu0 %v1433, 16
        %v1506 = vpop.permute.xlu0 %1505
        %1507 = vrot.lane.b32.xlu0 %v1435, 16
        %v1508 = vpop.permute.xlu0 %1507
        %1509 = vrot.lane.b32.xlu0 %v1438, 16
        %v1510 = vpop.permute.xlu0 %1509
        %1511 = vrot.lane.b32.xlu0 %v1440, 16
        %v1512 = vpop.permute.xlu0 %1511
        %1513 = vrot.lane.b32.xlu0 %v1443, 16
        %v1514 = vpop.permute.xlu0 %1513
        %1515 = vrot.lane.b32.xlu0 %v1445, 16
        %v1516 = vpop.permute.xlu0 %1515
        %1517 = vrot.lane.b32.xlu0 %v1448, 16
        %v1518 = vpop.permute.xlu0 %1517
        %1519 = vrot.lane.b32.xlu0 %v1450, 16
        %v1520 = vpop.permute.xlu0 %1519
        %1521 = vrot.lane.b32.xlu0 %v1453, 16
        %v1522 = vpop.permute.xlu0 %1521
        %1523 = vrot.lane.b32.xlu0 %v1455, 16
        %v1524 = vpop.permute.xlu0 %1523
        %1525 = vrot.lane.b32.xlu0 %v1458, 16
        %v1526 = vpop.permute.xlu0 %1525
        %1527 = vrot.lane.b32.xlu0 %v1460, 16
        %v1528 = vpop.permute.xlu0 %1527
        %1529 = vrot.lane.b32.xlu0 %v1463, 16
        %v1530 = vpop.permute.xlu0 %1529
        %1531 = vrot.lane.b32.xlu0 %v1465, 16
        %v1532 = vpop.permute.xlu0 %1531
        %1533 = vrot.lane.b32.xlu0 %v1468, 16
        %v1534 = vpop.permute.xlu0 %1533
        %1535 = vrot.lane.b32.xlu0 %v1470, 16
        %v1536 = vpop.permute.xlu0 %1535
        %1537 = vrot.lane.b32.xlu0 %v1473, 16
        %v1538 = vpop.permute.xlu0 %1537
        %1539 = vrot.lane.b32.xlu0 %v1475, 16
        %v1540 = vpop.permute.xlu0 %1539
        %1541 = vrot.lane.b32.xlu0 %v1478, 16
        %v1542 = vpop.permute.xlu0 %1541
        %1543 = vrot.lane.b32.xlu0 %v1480, 16
        %v1544 = vpop.permute.xlu0 %1543
        %vm1577 = vcmask 1045504
        %v1578 = vrot.slane %v1170, 2
        %v1579 = vrot.slane %v1044, 2
        %v1580 = vsel %vm1577, %v1578, %v1579
        %v1581 = vrot.slane %v1186, 2
        %v1582 = vsel %vm1577, %v1579, %v1581
        %v1583 = vrot.slane %v1171, 2
        %v1584 = vrot.slane %v1047, 2
        %v1585 = vsel %vm1577, %v1583, %v1584
        %v1586 = vrot.slane %v1187, 2
        %v1587 = vsel %vm1577, %v1584, %v1586
        %v1588 = vrot.slane %v1172, 2
        %v1589 = vrot.slane %v1050, 2
        %v1590 = vsel %vm1577, %v1588, %v1589
        %v1591 = vrot.slane %v1188, 2
        %v1592 = vsel %vm1577, %v1589, %v1591
        %v1593 = vrot.slane %v1173, 2
        %v1594 = vrot.slane %v1053, 2
        %v1595 = vsel %vm1577, %v1593, %v1594
        %v1596 = vrot.slane %v1189, 2
        %v1597 = vsel %vm1577, %v1594, %v1596
        %v1598 = vrot.slane %v1174, 2
        %v1599 = vrot.slane %v1056, 2
        %v1600 = vsel %vm1577, %v1598, %v1599
        %v1601 = vrot.slane %v1190, 2
        %v1602 = vsel %vm1577, %v1599, %v1601
        %v1603 = vrot.slane %v1175, 2
        %v1604 = vrot.slane %v1059, 2
        %v1605 = vsel %vm1577, %v1603, %v1604
        %v1606 = vrot.slane %v1191, 2
        %v1607 = vsel %vm1577, %v1604, %v1606
        %v1608 = vrot.slane %v1176, 2
        %v1609 = vrot.slane %v1062, 2
        %v1610 = vsel %vm1577, %v1608, %v1609
        %v1611 = vrot.slane %v1192, 2
        %v1612 = vsel %vm1577, %v1609, %v1611
        %v1613 = vrot.slane %v1177, 2
        %v1614 = vrot.slane %v1065, 2
        %v1615 = vsel %vm1577, %v1613, %v1614
        %v1616 = vrot.slane %v1193, 2
        %v1617 = vsel %vm1577, %v1614, %v1616
        %v1618 = vrot.slane %v1178, 2
        %v1619 = vrot.slane %v1068, 2
        %v1620 = vsel %vm1577, %v1618, %v1619
        %v1621 = vrot.slane %v1194, 2
        %v1622 = vsel %vm1577, %v1619, %v1621
        %v1623 = vrot.slane %v1179, 2
        %v1624 = vrot.slane %v1071, 2
        %v1625 = vsel %vm1577, %v1623, %v1624
        %v1626 = vrot.slane %v1195, 2
        %v1627 = vsel %vm1577, %v1624, %v1626
        %v1628 = vrot.slane %v1180, 2
        %v1629 = vrot.slane %v1074, 2
        %v1630 = vsel %vm1577, %v1628, %v1629
        %v1631 = vrot.slane %v1196, 2
        %v1632 = vsel %vm1577, %v1629, %v1631
        %v1633 = vrot.slane %v1181, 2
        %v1634 = vrot.slane %v1077, 2
        %v1635 = vsel %vm1577, %v1633, %v1634
        %v1636 = vrot.slane %v1197, 2
        %v1637 = vsel %vm1577, %v1634, %v1636
        %v1638 = vrot.slane %v1182, 2
        %v1639 = vrot.slane %v1080, 2
        %v1640 = vsel %vm1577, %v1638, %v1639
        %v1641 = vrot.slane %v1198, 2
        %v1642 = vsel %vm1577, %v1639, %v1641
        %v1643 = vrot.slane %v1183, 2
        %v1644 = vrot.slane %v1083, 2
        %v1645 = vsel %vm1577, %v1643, %v1644
        %v1646 = vrot.slane %v1199, 2
        %v1647 = vsel %vm1577, %v1644, %v1646
        %v1648 = vrot.slane %v1184, 2
        %v1649 = vrot.slane %v1086, 2
        %v1650 = vsel %vm1577, %v1648, %v1649
        %v1651 = vrot.slane %v1200, 2
        %v1652 = vsel %vm1577, %v1649, %v1651
        %v1653 = vrot.slane %v1185, 2
        %v1654 = vrot.slane %v1089, 2
        %v1655 = vsel %vm1577, %v1653, %v1654
        %v1656 = vrot.slane %v1201, 2
        %v1657 = vsel %vm1577, %v1654, %v1656
        %1658 = vrot.lane.b32.xlu0 %v1580, 32
        %v1659 = vpop.permute.xlu0 %1658
        %1660 = vrot.lane.b32.xlu0 %v1582, 32
        %v1661 = vpop.permute.xlu0 %1660
        %1662 = vrot.lane.b32.xlu0 %v1585, 32
        %v1663 = vpop.permute.xlu0 %1662
        %1664 = vrot.lane.b32.xlu0 %v1587, 32
        %v1665 = vpop.permute.xlu0 %1664
        %1666 = vrot.lane.b32.xlu0 %v1590, 32
        %v1667 = vpop.permute.xlu0 %1666
        %1668 = vrot.lane.b32.xlu0 %v1592, 32
        %v1669 = vpop.permute.xlu0 %1668
        %1670 = vrot.lane.b32.xlu0 %v1595, 32
        %v1671 = vpop.permute.xlu0 %1670
        %1672 = vrot.lane.b32.xlu0 %v1597, 32
        %v1673 = vpop.permute.xlu0 %1672
        %1674 = vrot.lane.b32.xlu0 %v1600, 32
        %v1675 = vpop.permute.xlu0 %1674
        %1676 = vrot.lane.b32.xlu0 %v1602, 32
        %v1677 = vpop.permute.xlu0 %1676
        %1678 = vrot.lane.b32.xlu0 %v1605, 32
        %v1679 = vpop.permute.xlu0 %1678
        %1680 = vrot.lane.b32.xlu0 %v1607, 32
        %v1681 = vpop.permute.xlu0 %1680
        %1682 = vrot.lane.b32.xlu0 %v1610, 32
        %v1683 = vpop.permute.xlu0 %1682
        %1684 = vrot.lane.b32.xlu0 %v1612, 32
        %v1685 = vpop.permute.xlu0 %1684
        %1686 = vrot.lane.b32.xlu0 %v1615, 32
        %v1687 = vpop.permute.xlu0 %1686
        %1688 = vrot.lane.b32.xlu0 %v1617, 32
        %v1689 = vpop.permute.xlu0 %1688
        %1690 = vrot.lane.b32.xlu0 %v1620, 32
        %v1691 = vpop.permute.xlu0 %1690
        %1692 = vrot.lane.b32.xlu0 %v1622, 32
        %v1693 = vpop.permute.xlu0 %1692
        %1694 = vrot.lane.b32.xlu0 %v1625, 32
        %v1695 = vpop.permute.xlu0 %1694
        %1696 = vrot.lane.b32.xlu0 %v1627, 32
        %v1697 = vpop.permute.xlu0 %1696
        %1698 = vrot.lane.b32.xlu0 %v1630, 32
        %v1699 = vpop.permute.xlu0 %1698
        %1700 = vrot.lane.b32.xlu0 %v1632, 32
        %v1701 = vpop.permute.xlu0 %1700
        %1702 = vrot.lane.b32.xlu0 %v1635, 32
        %v1703 = vpop.permute.xlu0 %1702
        %1704 = vrot.lane.b32.xlu0 %v1637, 32
        %v1705 = vpop.permute.xlu0 %1704
        %1706 = vrot.lane.b32.xlu0 %v1640, 32
        %v1707 = vpop.permute.xlu0 %1706
        %1708 = vrot.lane.b32.xlu0 %v1642, 32
        %v1709 = vpop.permute.xlu0 %1708
        %1710 = vrot.lane.b32.xlu0 %v1645, 32
        %v1711 = vpop.permute.xlu0 %1710
        %1712 = vrot.lane.b32.xlu0 %v1647, 32
        %v1713 = vpop.permute.xlu0 %1712
        %1714 = vrot.lane.b32.xlu0 %v1650, 32
        %v1715 = vpop.permute.xlu0 %1714
        %1716 = vrot.lane.b32.xlu0 %v1652, 32
        %v1717 = vpop.permute.xlu0 %1716
        %1718 = vrot.lane.b32.xlu0 %v1655, 32
        %v1719 = vpop.permute.xlu0 %1718
        %1720 = vrot.lane.b32.xlu0 %v1657, 32
        %v1721 = vpop.permute.xlu0 %1720
        %1754 = vrot.lane.b32.xlu0 %v1171, 48
        %v1755 = vpop.permute.xlu0 %1754
        %1756 = vrot.lane.b32.xlu0 %v1047, 48
        %v1757 = vpop.permute.xlu0 %1756
        %1758 = vrot.lane.b32.xlu0 %v1172, 48
        %v1759 = vpop.permute.xlu0 %1758
        %1760 = vrot.lane.b32.xlu0 %v1050, 48
        %v1761 = vpop.permute.xlu0 %1760
        %1762 = vrot.lane.b32.xlu0 %v1173, 48
        %v1763 = vpop.permute.xlu0 %1762
        %1764 = vrot.lane.b32.xlu0 %v1053, 48
        %v1765 = vpop.permute.xlu0 %1764
        %1766 = vrot.lane.b32.xlu0 %v1174, 48
        %v1767 = vpop.permute.xlu0 %1766
        %1768 = vrot.lane.b32.xlu0 %v1056, 48
        %v1769 = vpop.permute.xlu0 %1768
        %1770 = vrot.lane.b32.xlu0 %v1175, 48
        %v1771 = vpop.permute.xlu0 %1770
        %1772 = vrot.lane.b32.xlu0 %v1059, 48
        %v1773 = vpop.permute.xlu0 %1772
        %1774 = vrot.lane.b32.xlu0 %v1176, 48
        %v1775 = vpop.permute.xlu0 %1774
        %1776 = vrot.lane.b32.xlu0 %v1062, 48
        %v1777 = vpop.permute.xlu0 %1776
        %1778 = vrot.lane.b32.xlu0 %v1177, 48
        %v1779 = vpop.permute.xlu0 %1778
        %1780 = vrot.lane.b32.xlu0 %v1065, 48
        %v1781 = vpop.permute.xlu0 %1780
        %1782 = vrot.lane.b32.xlu0 %v1178, 48
        %v1783 = vpop.permute.xlu0 %1782
        %1784 = vrot.lane.b32.xlu0 %v1068, 48
        %v1785 = vpop.permute.xlu0 %1784
        %1786 = vrot.lane.b32.xlu0 %v1179, 48
        %v1787 = vpop.permute.xlu0 %1786
        %1788 = vrot.lane.b32.xlu0 %v1071, 48
        %v1789 = vpop.permute.xlu0 %1788
        %1790 = vrot.lane.b32.xlu0 %v1180, 48
        %v1791 = vpop.permute.xlu0 %1790
        %1792 = vrot.lane.b32.xlu0 %v1074, 48
        %v1793 = vpop.permute.xlu0 %1792
        %1794 = vrot.lane.b32.xlu0 %v1181, 48
        %v1795 = vpop.permute.xlu0 %1794
        %1796 = vrot.lane.b32.xlu0 %v1077, 48
        %v1797 = vpop.permute.xlu0 %1796
        %1798 = vrot.lane.b32.xlu0 %v1182, 48
        %v1799 = vpop.permute.xlu0 %1798
        %1800 = vrot.lane.b32.xlu0 %v1080, 48
        %v1801 = vpop.permute.xlu0 %1800
        %1802 = vrot.lane.b32.xlu0 %v1183, 48
        %v1803 = vpop.permute.xlu0 %1802
        %1804 = vrot.lane.b32.xlu0 %v1083, 48
        %v1805 = vpop.permute.xlu0 %1804
        %1806 = vrot.lane.b32.xlu0 %v1184, 48
        %v1807 = vpop.permute.xlu0 %1806
        %1808 = vrot.lane.b32.xlu0 %v1086, 48
        %v1809 = vpop.permute.xlu0 %1808
        %1810 = vrot.lane.b32.xlu0 %v1185, 48
        %v1811 = vpop.permute.xlu0 %1810
        %1812 = vrot.lane.b32.xlu0 %v1089, 48
        %v1813 = vpop.permute.xlu0 %1812
        %1814 = vrot.lane.b32.xlu0 %v1170, 48
        %v1815 = vpop.permute.xlu0 %1814
        %1816 = vrot.lane.b32.xlu0 %v1044, 48
        %v1817 = vpop.permute.xlu0 %1816
        %1850 = vrot.lane.b32.xlu0 %v1408, 64
        %v1851 = vpop.permute.xlu0 %1850
        %1852 = vrot.lane.b32.xlu0 %v1410, 64
        %v1853 = vpop.permute.xlu0 %1852
        %1854 = vrot.lane.b32.xlu0 %v1413, 64
        %v1855 = vpop.permute.xlu0 %1854
        %1856 = vrot.lane.b32.xlu0 %v1415, 64
        %v1857 = vpop.permute.xlu0 %1856
        %1858 = vrot.lane.b32.xlu0 %v1418, 64
        %v1859 = vpop.permute.xlu0 %1858
        %1860 = vrot.lane.b32.xlu0 %v1420, 64
        %v1861 = vpop.permute.xlu0 %1860
        %1862 = vrot.lane.b32.xlu0 %v1423, 64
        %v1863 = vpop.permute.xlu0 %1862
        %1864 = vrot.lane.b32.xlu0 %v1425, 64
        %v1865 = vpop.permute.xlu0 %1864
        %1866 = vrot.lane.b32.xlu0 %v1428, 64
        %v1867 = vpop.permute.xlu0 %1866
        %1868 = vrot.lane.b32.xlu0 %v1430, 64
        %v1869 = vpop.permute.xlu0 %1868
        %1870 = vrot.lane.b32.xlu0 %v1433, 64
        %v1871 = vpop.permute.xlu0 %1870
        %1872 = vrot.lane.b32.xlu0 %v1435, 64
        %v1873 = vpop.permute.xlu0 %1872
        %1874 = vrot.lane.b32.xlu0 %v1438, 64
        %v1875 = vpop.permute.xlu0 %1874
        %1876 = vrot.lane.b32.xlu0 %v1440, 64
        %v1877 = vpop.permute.xlu0 %1876
        %1878 = vrot.lane.b32.xlu0 %v1443, 64
        %v1879 = vpop.permute.xlu0 %1878
        %1880 = vrot.lane.b32.xlu0 %v1445, 64
        %v1881 = vpop.permute.xlu0 %1880
        %1882 = vrot.lane.b32.xlu0 %v1448, 64
        %v1883 = vpop.permute.xlu0 %1882
        %1884 = vrot.lane.b32.xlu0 %v1450, 64
        %v1885 = vpop.permute.xlu0 %1884
        %1886 = vrot.lane.b32.xlu0 %v1453, 64
        %v1887 = vpop.permute.xlu0 %1886
        %1888 = vrot.lane.b32.xlu0 %v1455, 64
        %v1889 = vpop.permute.xlu0 %1888
        %1890 = vrot.lane.b32.xlu0 %v1458, 64
        %v1891 = vpop.permute.xlu0 %1890
        %1892 = vrot.lane.b32.xlu0 %v1460, 64
        %v1893 = vpop.permute.xlu0 %1892
        %1894 = vrot.lane.b32.xlu0 %v1463, 64
        %v1895 = vpop.permute.xlu0 %1894
        %1896 = vrot.lane.b32.xlu0 %v1465, 64
        %v1897 = vpop.permute.xlu0 %1896
        %1898 = vrot.lane.b32.xlu0 %v1468, 64
        %v1899 = vpop.permute.xlu0 %1898
        %1900 = vrot.lane.b32.xlu0 %v1470, 64
        %v1901 = vpop.permute.xlu0 %1900
        %1902 = vrot.lane.b32.xlu0 %v1473, 64
        %v1903 = vpop.permute.xlu0 %1902
        %1904 = vrot.lane.b32.xlu0 %v1475, 64
        %v1905 = vpop.permute.xlu0 %1904
        %1906 = vrot.lane.b32.xlu0 %v1478, 64
        %v1907 = vpop.permute.xlu0 %1906
        %1908 = vrot.lane.b32.xlu0 %v1480, 64
        %v1909 = vpop.permute.xlu0 %1908
        %1910 = vrot.lane.b32.xlu0 %v1403, 64
        %v1911 = vpop.permute.xlu0 %1910
        %1912 = vrot.lane.b32.xlu0 %v1405, 64
        %v1913 = vpop.permute.xlu0 %1912
        %1946 = vrot.lane.b32.xlu0 %v1585, 80
        %v1947 = vpop.permute.xlu0 %1946
        %1948 = vrot.lane.b32.xlu0 %v1587, 80
        %v1949 = vpop.permute.xlu0 %1948
        %1950 = vrot.lane.b32.xlu0 %v1590, 80
        %v1951 = vpop.permute.xlu0 %1950
        %1952 = vrot.lane.b32.xlu0 %v1592, 80
        %v1953 = vpop.permute.xlu0 %1952
        %1954 = vrot.lane.b32.xlu0 %v1595, 80
        %v1955 = vpop.permute.xlu0 %1954
        %1956 = vrot.lane.b32.xlu0 %v1597, 80
        %v1957 = vpop.permute.xlu0 %1956
        %1958 = vrot.lane.b32.xlu0 %v1600, 80
        %v1959 = vpop.permute.xlu0 %1958
        %1960 = vrot.lane.b32.xlu0 %v1602, 80
        %v1961 = vpop.permute.xlu0 %1960
        %1962 = vrot.lane.b32.xlu0 %v1605, 80
        %v1963 = vpop.permute.xlu0 %1962
        %1964 = vrot.lane.b32.xlu0 %v1607, 80
        %v1965 = vpop.permute.xlu0 %1964
        %1966 = vrot.lane.b32.xlu0 %v1610, 80
        %v1967 = vpop.permute.xlu0 %1966
        %1968 = vrot.lane.b32.xlu0 %v1612, 80
        %v1969 = vpop.permute.xlu0 %1968
        %1970 = vrot.lane.b32.xlu0 %v1615, 80
        %v1971 = vpop.permute.xlu0 %1970
        %1972 = vrot.lane.b32.xlu0 %v1617, 80
        %v1973 = vpop.permute.xlu0 %1972
        %1974 = vrot.lane.b32.xlu0 %v1620, 80
        %v1975 = vpop.permute.xlu0 %1974
        %1976 = vrot.lane.b32.xlu0 %v1622, 80
        %v1977 = vpop.permute.xlu0 %1976
        %1978 = vrot.lane.b32.xlu0 %v1625, 80
        %v1979 = vpop.permute.xlu0 %1978
        %1980 = vrot.lane.b32.xlu0 %v1627, 80
        %v1981 = vpop.permute.xlu0 %1980
        %1982 = vrot.lane.b32.xlu0 %v1630, 80
        %v1983 = vpop.permute.xlu0 %1982
        %1984 = vrot.lane.b32.xlu0 %v1632, 80
        %v1985 = vpop.permute.xlu0 %1984
        %1986 = vrot.lane.b32.xlu0 %v1635, 80
        %v1987 = vpop.permute.xlu0 %1986
        %1988 = vrot.lane.b32.xlu0 %v1637, 80
        %v1989 = vpop.permute.xlu0 %1988
        %1990 = vrot.lane.b32.xlu0 %v1640, 80
        %v1991 = vpop.permute.xlu0 %1990
        %1992 = vrot.lane.b32.xlu0 %v1642, 80
        %v1993 = vpop.permute.xlu0 %1992
        %1994 = vrot.lane.b32.xlu0 %v1645, 80
        %v1995 = vpop.permute.xlu0 %1994
        %1996 = vrot.lane.b32.xlu0 %v1647, 80
        %v1997 = vpop.permute.xlu0 %1996
        %1998 = vrot.lane.b32.xlu0 %v1650, 80
        %v1999 = vpop.permute.xlu0 %1998
        %2000 = vrot.lane.b32.xlu0 %v1652, 80
        %v2001 = vpop.permute.xlu0 %2000
        %2002 = vrot.lane.b32.xlu0 %v1655, 80
        %v2003 = vpop.permute.xlu0 %2002
        %2004 = vrot.lane.b32.xlu0 %v1657, 80
        %v2005 = vpop.permute.xlu0 %2004
        %2006 = vrot.lane.b32.xlu0 %v1580, 80
        %v2007 = vpop.permute.xlu0 %2006
        %2008 = vrot.lane.b32.xlu0 %v1582, 80
        %v2009 = vpop.permute.xlu0 %2008
        %2042 = vrot.lane.b32.xlu0 %v1172, 96
        %v2043 = vpop.permute.xlu0 %2042
        %2044 = vrot.lane.b32.xlu0 %v1050, 96
        %v2045 = vpop.permute.xlu0 %2044
        %2046 = vrot.lane.b32.xlu0 %v1173, 96
        %v2047 = vpop.permute.xlu0 %2046
        %2048 = vrot.lane.b32.xlu0 %v1053, 96
        %v2049 = vpop.permute.xlu0 %2048
        %2050 = vrot.lane.b32.xlu0 %v1174, 96
        %v2051 = vpop.permute.xlu0 %2050
        %2052 = vrot.lane.b32.xlu0 %v1056, 96
        %v2053 = vpop.permute.xlu0 %2052
        %2054 = vrot.lane.b32.xlu0 %v1175, 96
        %v2055 = vpop.permute.xlu0 %2054
        %2056 = vrot.lane.b32.xlu0 %v1059, 96
        %v2057 = vpop.permute.xlu0 %2056
        %2058 = vrot.lane.b32.xlu0 %v1176, 96
        %v2059 = vpop.permute.xlu0 %2058
        %2060 = vrot.lane.b32.xlu0 %v1062, 96
        %v2061 = vpop.permute.xlu0 %2060
        %2062 = vrot.lane.b32.xlu0 %v1177, 96
        %v2063 = vpop.permute.xlu0 %2062
        %2064 = vrot.lane.b32.xlu0 %v1065, 96
        %v2065 = vpop.permute.xlu0 %2064
        %2066 = vrot.lane.b32.xlu0 %v1178, 96
        %v2067 = vpop.permute.xlu0 %2066
        %2068 = vrot.lane.b32.xlu0 %v1068, 96
        %v2069 = vpop.permute.xlu0 %2068
        %2070 = vrot.lane.b32.xlu0 %v1179, 96
        %v2071 = vpop.permute.xlu0 %2070
        %2072 = vrot.lane.b32.xlu0 %v1071, 96
        %v2073 = vpop.permute.xlu0 %2072
        %2074 = vrot.lane.b32.xlu0 %v1180, 96
        %v2075 = vpop.permute.xlu0 %2074
        %2076 = vrot.lane.b32.xlu0 %v1074, 96
        %v2077 = vpop.permute.xlu0 %2076
        %2078 = vrot.lane.b32.xlu0 %v1181, 96
        %v2079 = vpop.permute.xlu0 %2078
        %2080 = vrot.lane.b32.xlu0 %v1077, 96
        %v2081 = vpop.permute.xlu0 %2080
        %2082 = vrot.lane.b32.xlu0 %v1182, 96
        %v2083 = vpop.permute.xlu0 %2082
        %2084 = vrot.lane.b32.xlu0 %v1080, 96
        %v2085 = vpop.permute.xlu0 %2084
        %2086 = vrot.lane.b32.xlu0 %v1183, 96
        %v2087 = vpop.permute.xlu0 %2086
        %2088 = vrot.lane.b32.xlu0 %v1083, 96
        %v2089 = vpop.permute.xlu0 %2088
        %2090 = vrot.lane.b32.xlu0 %v1184, 96
        %v2091 = vpop.permute.xlu0 %2090
        %2092 = vrot.lane.b32.xlu0 %v1086, 96
        %v2093 = vpop.permute.xlu0 %2092
        %2094 = vrot.lane.b32.xlu0 %v1185, 96
        %v2095 = vpop.permute.xlu0 %2094
        %2096 = vrot.lane.b32.xlu0 %v1089, 96
        %v2097 = vpop.permute.xlu0 %2096
        %2098 = vrot.lane.b32.xlu0 %v1170, 96
        %v2099 = vpop.permute.xlu0 %2098
        %2100 = vrot.lane.b32.xlu0 %v1044, 96
        %v2101 = vpop.permute.xlu0 %2100
        %2102 = vrot.lane.b32.xlu0 %v1171, 96
        %v2103 = vpop.permute.xlu0 %2102
        %2104 = vrot.lane.b32.xlu0 %v1047, 96
        %v2105 = vpop.permute.xlu0 %2104
        %2138 = vrot.lane.b32.xlu0 %v1413, 112
        %v2139 = vpop.permute.xlu0 %2138
        %2140 = vrot.lane.b32.xlu0 %v1415, 112
        %v2141 = vpop.permute.xlu0 %2140
        %2142 = vrot.lane.b32.xlu0 %v1418, 112
        %v2143 = vpop.permute.xlu0 %2142
        %2144 = vrot.lane.b32.xlu0 %v1420, 112
        %v2145 = vpop.permute.xlu0 %2144
        %2146 = vrot.lane.b32.xlu0 %v1423, 112
        %v2147 = vpop.permute.xlu0 %2146
        %2148 = vrot.lane.b32.xlu0 %v1425, 112
        %v2149 = vpop.permute.xlu0 %2148
        %2150 = vrot.lane.b32.xlu0 %v1428, 112
        %v2151 = vpop.permute.xlu0 %2150
        %2152 = vrot.lane.b32.xlu0 %v1430, 112
        %v2153 = vpop.permute.xlu0 %2152
        %2154 = vrot.lane.b32.xlu0 %v1433, 112
        %v2155 = vpop.permute.xlu0 %2154
        %2156 = vrot.lane.b32.xlu0 %v1435, 112
        %v2157 = vpop.permute.xlu0 %2156
        %2158 = vrot.lane.b32.xlu0 %v1438, 112
        %v2159 = vpop.permute.xlu0 %2158
        %2160 = vrot.lane.b32.xlu0 %v1440, 112
        %v2161 = vpop.permute.xlu0 %2160
        %2162 = vrot.lane.b32.xlu0 %v1443, 112
        %v2163 = vpop.permute.xlu0 %2162
        %2164 = vrot.lane.b32.xlu0 %v1445, 112
        %v2165 = vpop.permute.xlu0 %2164
        %2166 = vrot.lane.b32.xlu0 %v1448, 112
        %v2167 = vpop.permute.xlu0 %2166
        %2168 = vrot.lane.b32.xlu0 %v1450, 112
        %v2169 = vpop.permute.xlu0 %2168
        %2170 = vrot.lane.b32.xlu0 %v1453, 112
        %v2171 = vpop.permute.xlu0 %2170
        %2172 = vrot.lane.b32.xlu0 %v1455, 112
        %v2173 = vpop.permute.xlu0 %2172
        %2174 = vrot.lane.b32.xlu0 %v1458, 112
        %v2175 = vpop.permute.xlu0 %2174
        %2176 = vrot.lane.b32.xlu0 %v1460, 112
        %v2177 = vpop.permute.xlu0 %2176
        %2178 = vrot.lane.b32.xlu0 %v1463, 112
        %v2179 = vpop.permute.xlu0 %2178
        %2180 = vrot.lane.b32.xlu0 %v1465, 112
        %v2181 = vpop.permute.xlu0 %2180
        %2182 = vrot.lane.b32.xlu0 %v1468, 112
        %v2183 = vpop.permute.xlu0 %2182
        %2184 = vrot.lane.b32.xlu0 %v1470, 112
        %v2185 = vpop.permute.xlu0 %2184
        %2186 = vrot.lane.b32.xlu0 %v1473, 112
        %v2187 = vpop.permute.xlu0 %2186
        %2188 = vrot.lane.b32.xlu0 %v1475, 112
        %v2189 = vpop.permute.xlu0 %2188
        %2190 = vrot.lane.b32.xlu0 %v1478, 112
        %v2191 = vpop.permute.xlu0 %2190
        %2192 = vrot.lane.b32.xlu0 %v1480, 112
        %v2193 = vpop.permute.xlu0 %2192
        %2194 = vrot.lane.b32.xlu0 %v1403, 112
        %v2195 = vpop.permute.xlu0 %2194
        %2196 = vrot.lane.b32.xlu0 %v1405, 112
        %v2197 = vpop.permute.xlu0 %2196
        %2198 = vrot.lane.b32.xlu0 %v1408, 112
        %v2199 = vpop.permute.xlu0 %2198
        %2200 = vrot.lane.b32.xlu0 %v1410, 112
        %v2201 = vpop.permute.xlu0 %2200
        %vm2266 = vcmask 130048
        %v2267 = vsel %vm2266, %v1170, %v1482
        %v2268 = vsel %vm2266, %v1044, %v1484
        %v2269 = vsel %vm2266, %v1171, %v1486
        %v2270 = vsel %vm2266, %v1047, %v1488
        %v2271 = vsel %vm2266, %v1172, %v1490
        %v2272 = vsel %vm2266, %v1050, %v1492
        %v2273 = vsel %vm2266, %v1173, %v1494
        %v2274 = vsel %vm2266, %v1053, %v1496
        %v2275 = vsel %vm2266, %v1174, %v1498
        %v2276 = vsel %vm2266, %v1056, %v1500
        %v2277 = vsel %vm2266, %v1175, %v1502
        %v2278 = vsel %vm2266, %v1059, %v1504
        %v2279 = vsel %vm2266, %v1176, %v1506
        %v2280 = vsel %vm2266, %v1062, %v1508
        %v2281 = vsel %vm2266, %v1177, %v1510
        %v2282 = vsel %vm2266, %v1065, %v1512
        %v2283 = vsel %vm2266, %v1178, %v1514
        %v2284 = vsel %vm2266, %v1068, %v1516
        %v2285 = vsel %vm2266, %v1179, %v1518
        %v2286 = vsel %vm2266, %v1071, %v1520
        %v2287 = vsel %vm2266, %v1180, %v1522
        %v2288 = vsel %vm2266, %v1074, %v1524
        %v2289 = vsel %vm2266, %v1181, %v1526
        %v2290 = vsel %vm2266, %v1077, %v1528
        %v2291 = vsel %vm2266, %v1182, %v1530
        %v2292 = vsel %vm2266, %v1080, %v1532
        %v2293 = vsel %vm2266, %v1183, %v1534
        %v2294 = vsel %vm2266, %v1083, %v1536
        %v2295 = vsel %vm2266, %v1184, %v1538
        %v2296 = vsel %vm2266, %v1086, %v1540
        %v2297 = vsel %vm2266, %v1185, %v1542
        %v2298 = vsel %vm2266, %v1089, %v1544
        %vm2299 = vcmask 261120
        %v2300 = vsel %vm2299, %v2267, %v1659
        %v2301 = vsel %vm2299, %v2268, %v1661
        %v2302 = vsel %vm2299, %v2269, %v1663
        %v2303 = vsel %vm2299, %v2270, %v1665
        %v2304 = vsel %vm2299, %v2271, %v1667
        %v2305 = vsel %vm2299, %v2272, %v1669
        %v2306 = vsel %vm2299, %v2273, %v1671
        %v2307 = vsel %vm2299, %v2274, %v1673
        %v2308 = vsel %vm2299, %v2275, %v1675
        %v2309 = vsel %vm2299, %v2276, %v1677
        %v2310 = vsel %vm2299, %v2277, %v1679
        %v2311 = vsel %vm2299, %v2278, %v1681
        %v2312 = vsel %vm2299, %v2279, %v1683
        %v2313 = vsel %vm2299, %v2280, %v1685
        %v2314 = vsel %vm2299, %v2281, %v1687
        %v2315 = vsel %vm2299, %v2282, %v1689
        %v2316 = vsel %vm2299, %v2283, %v1691
        %v2317 = vsel %vm2299, %v2284, %v1693
        %v2318 = vsel %vm2299, %v2285, %v1695
        %v2319 = vsel %vm2299, %v2286, %v1697
        %v2320 = vsel %vm2299, %v2287, %v1699
        %v2321 = vsel %vm2299, %v2288, %v1701
        %v2322 = vsel %vm2299, %v2289, %v1703
        %v2323 = vsel %vm2299, %v2290, %v1705
        %v2324 = vsel %vm2299, %v2291, %v1707
        %v2325 = vsel %vm2299, %v2292, %v1709
        %v2326 = vsel %vm2299, %v2293, %v1711
        %v2327 = vsel %vm2299, %v2294, %v1713
        %v2328 = vsel %vm2299, %v2295, %v1715
        %v2329 = vsel %vm2299, %v2296, %v1717
        %v2330 = vsel %vm2299, %v2297, %v1719
        %v2331 = vsel %vm2299, %v2298, %v1721
        %vm2332 = vcmask 392192
        %v2333 = vsel %vm2332, %v2300, %v1755
        %v2334 = vsel %vm2332, %v2301, %v1757
        %v2335 = vsel %vm2332, %v2302, %v1759
        %v2336 = vsel %vm2332, %v2303, %v1761
        %v2337 = vsel %vm2332, %v2304, %v1763
        %v2338 = vsel %vm2332, %v2305, %v1765
        %v2339 = vsel %vm2332, %v2306, %v1767
        %v2340 = vsel %vm2332, %v2307, %v1769
        %v2341 = vsel %vm2332, %v2308, %v1771
        %v2342 = vsel %vm2332, %v2309, %v1773
        %v2343 = vsel %vm2332, %v2310, %v1775
        %v2344 = vsel %vm2332, %v2311, %v1777
        %v2345 = vsel %vm2332, %v2312, %v1779
        %v2346 = vsel %vm2332, %v2313, %v1781
        %v2347 = vsel %vm2332, %v2314, %v1783
        %v2348 = vsel %vm2332, %v2315, %v1785
        %v2349 = vsel %vm2332, %v2316, %v1787
        %v2350 = vsel %vm2332, %v2317, %v1789
        %v2351 = vsel %vm2332, %v2318, %v1791
        %v2352 = vsel %vm2332, %v2319, %v1793
        %v2353 = vsel %vm2332, %v2320, %v1795
        %v2354 = vsel %vm2332, %v2321, %v1797
        %v2355 = vsel %vm2332, %v2322, %v1799
        %v2356 = vsel %vm2332, %v2323, %v1801
        %v2357 = vsel %vm2332, %v2324, %v1803
        %v2358 = vsel %vm2332, %v2325, %v1805
        %v2359 = vsel %vm2332, %v2326, %v1807
        %v2360 = vsel %vm2332, %v2327, %v1809
        %v2361 = vsel %vm2332, %v2328, %v1811
        %v2362 = vsel %vm2332, %v2329, %v1813
        %v2363 = vsel %vm2332, %v2330, %v1815
        %v2364 = vsel %vm2332, %v2331, %v1817
        %vm2365 = vcmask 523264
        %v2366 = vsel %vm2365, %v2333, %v1851
        %v2367 = vsel %vm2365, %v2334, %v1853
        %v2368 = vsel %vm2365, %v2335, %v1855
        %v2369 = vsel %vm2365, %v2336, %v1857
        %v2370 = vsel %vm2365, %v2337, %v1859
        %v2371 = vsel %vm2365, %v2338, %v1861
        %v2372 = vsel %vm2365, %v2339, %v1863
        %v2373 = vsel %vm2365, %v2340, %v1865
        %v2374 = vsel %vm2365, %v2341, %v1867
        %v2375 = vsel %vm2365, %v2342, %v1869
        %v2376 = vsel %vm2365, %v2343, %v1871
        %v2377 = vsel %vm2365, %v2344, %v1873
        %v2378 = vsel %vm2365, %v2345, %v1875
        %v2379 = vsel %vm2365, %v2346, %v1877
        %v2380 = vsel %vm2365, %v2347, %v1879
        %v2381 = vsel %vm2365, %v2348, %v1881
        %v2382 = vsel %vm2365, %v2349, %v1883
        %v2383 = vsel %vm2365, %v2350, %v1885
        %v2384 = vsel %vm2365, %v2351, %v1887
        %v2385 = vsel %vm2365, %v2352, %v1889
        %v2386 = vsel %vm2365, %v2353, %v1891
        %v2387 = vsel %vm2365, %v2354, %v1893
        %v2388 = vsel %vm2365, %v2355, %v1895
        %v2389 = vsel %vm2365, %v2356, %v1897
        %v2390 = vsel %vm2365, %v2357, %v1899
        %v2391 = vsel %vm2365, %v2358, %v1901
        %v2392 = vsel %vm2365, %v2359, %v1903
        %v2393 = vsel %vm2365, %v2360, %v1905
        %v2394 = vsel %vm2365, %v2361, %v1907
        %v2395 = vsel %vm2365, %v2362, %v1909
        %v2396 = vsel %vm2365, %v2363, %v1911
        %v2397 = vsel %vm2365, %v2364, %v1913
        %vm2398 = vcmask 654336
        %v2399 = vsel %vm2398, %v2366, %v1947
        %v2400 = vsel %vm2398, %v2367, %v1949
        %v2401 = vsel %vm2398, %v2368, %v1951
        %v2402 = vsel %vm2398, %v2369, %v1953
        %v2403 = vsel %vm2398, %v2370, %v1955
        %v2404 = vsel %vm2398, %v2371, %v1957
        %v2405 = vsel %vm2398, %v2372, %v1959
        %v2406 = vsel %vm2398, %v2373, %v1961
        %v2407 = vsel %vm2398, %v2374, %v1963
        %v2408 = vsel %vm2398, %v2375, %v1965
        %v2409 = vsel %vm2398, %v2376, %v1967
        %v2410 = vsel %vm2398, %v2377, %v1969
        %v2411 = vsel %vm2398, %v2378, %v1971
        %v2412 = vsel %vm2398, %v2379, %v1973
        %v2413 = vsel %vm2398, %v2380, %v1975
        %v2414 = vsel %vm2398, %v2381, %v1977
        %v2415 = vsel %vm2398, %v2382, %v1979
        %v2416 = vsel %vm2398, %v2383, %v1981
        %v2417 = vsel %vm2398, %v2384, %v1983
        %v2418 = vsel %vm2398, %v2385, %v1985
        %v2419 = vsel %vm2398, %v2386, %v1987
        %v2420 = vsel %vm2398, %v2387, %v1989
        %v2421 = vsel %vm2398, %v2388, %v1991
        %v2422 = vsel %vm2398, %v2389, %v1993
        %v2423 = vsel %vm2398, %v2390, %v1995
        %v2424 = vsel %vm2398, %v2391, %v1997
        %v2425 = vsel %vm2398, %v2392, %v1999
        %v2426 = vsel %vm2398, %v2393, %v2001
        %v2427 = vsel %vm2398, %v2394, %v2003
        %v2428 = vsel %vm2398, %v2395, %v2005
        %v2429 = vsel %vm2398, %v2396, %v2007
        %v2430 = vsel %vm2398, %v2397, %v2009
        %vm2431 = vcmask 785408
        %v2432 = vsel %vm2431, %v2399, %v2043
        %v2433 = vsel %vm2431, %v2400, %v2045
        %v2434 = vsel %vm2431, %v2401, %v2047
        %v2435 = vsel %vm2431, %v2402, %v2049
        %v2436 = vsel %vm2431, %v2403, %v2051
        %v2437 = vsel %vm2431, %v2404, %v2053
        %v2438 = vsel %vm2431, %v2405, %v2055
        %v2439 = vsel %vm2431, %v2406, %v2057
        %v2440 = vsel %vm2431, %v2407, %v2059
        %v2441 = vsel %vm2431, %v2408, %v2061
        %v2442 = vsel %vm2431, %v2409, %v2063
        %v2443 = vsel %vm2431, %v2410, %v2065
        %v2444 = vsel %vm2431, %v2411, %v2067
        %v2445 = vsel %vm2431, %v2412, %v2069
        %v2446 = vsel %vm2431, %v2413, %v2071
        %v2447 = vsel %vm2431, %v2414, %v2073
        %v2448 = vsel %vm2431, %v2415, %v2075
        %v2449 = vsel %vm2431, %v2416, %v2077
        %v2450 = vsel %vm2431, %v2417, %v2079
        %v2451 = vsel %vm2431, %v2418, %v2081
        %v2452 = vsel %vm2431, %v2419, %v2083
        %v2453 = vsel %vm2431, %v2420, %v2085
        %v2454 = vsel %vm2431, %v2421, %v2087
        %v2455 = vsel %vm2431, %v2422, %v2089
        %v2456 = vsel %vm2431, %v2423, %v2091
        %v2457 = vsel %vm2431, %v2424, %v2093
        %v2458 = vsel %vm2431, %v2425, %v2095
        %v2459 = vsel %vm2431, %v2426, %v2097
        %v2460 = vsel %vm2431, %v2427, %v2099
        %v2461 = vsel %vm2431, %v2428, %v2101
        %v2462 = vsel %vm2431, %v2429, %v2103
        %v2463 = vsel %vm2431, %v2430, %v2105
        %vm2464 = vcmask 916480
        %v2465 = vsel %vm2464, %v2432, %v2139
        %v2466 = vsel %vm2464, %v2433, %v2141
        %v2467 = vsel %vm2464, %v2434, %v2143
        %v2468 = vsel %vm2464, %v2435, %v2145
        %v2469 = vsel %vm2464, %v2436, %v2147
        %v2470 = vsel %vm2464, %v2437, %v2149
        %v2471 = vsel %vm2464, %v2438, %v2151
        %v2472 = vsel %vm2464, %v2439, %v2153
        %v2473 = vsel %vm2464, %v2440, %v2155
        %v2474 = vsel %vm2464, %v2441, %v2157
        %v2475 = vsel %vm2464, %v2442, %v2159
        %v2476 = vsel %vm2464, %v2443, %v2161
        %v2477 = vsel %vm2464, %v2444, %v2163
        %v2478 = vsel %vm2464, %v2445, %v2165
        %v2479 = vsel %vm2464, %v2446, %v2167
        %v2480 = vsel %vm2464, %v2447, %v2169
        %v2481 = vsel %vm2464, %v2448, %v2171
        %v2482 = vsel %vm2464, %v2449, %v2173
        %v2483 = vsel %vm2464, %v2450, %v2175
        %v2484 = vsel %vm2464, %v2451, %v2177
        %v2485 = vsel %vm2464, %v2452, %v2179
        %v2486 = vsel %vm2464, %v2453, %v2181
        %v2487 = vsel %vm2464, %v2454, %v2183
        %v2488 = vsel %vm2464, %v2455, %v2185
        %v2489 = vsel %vm2464, %v2456, %v2187
        %v2490 = vsel %vm2464, %v2457, %v2189
        %v2491 = vsel %vm2464, %v2458, %v2191
        %v2492 = vsel %vm2464, %v2459, %v2193
        %v2493 = vsel %vm2464, %v2460, %v2195
        %v2494 = vsel %vm2464, %v2461, %v2197
        %v2495 = vsel %vm2464, %v2462, %v2199
        %v2496 = vsel %vm2464, %v2463, %v2201
        %v2497 = vpack.c.bf16 %v2466, %v2465
        %v2498 = vpack.c.bf16 %v1592, %v1590
        %v2499 = vpack.c.bf16 %v2468, %v2467
        %v2500 = vpack.c.bf16 %v1597, %v1595
        %v2501 = vpack.c.bf16 %v2470, %v2469
        %v2502 = vpack.c.bf16 %v1602, %v1600
        %v2503 = vpack.c.bf16 %v2472, %v2471
        %v2504 = vpack.c.bf16 %v1607, %v1605
        %v2505 = vpack.c.bf16 %v2474, %v2473
        %v2506 = vpack.c.bf16 %v1612, %v1610
        %v2507 = vpack.c.bf16 %v2476, %v2475
        %v2508 = vpack.c.bf16 %v1617, %v1615
        %v2509 = vpack.c.bf16 %v2478, %v2477
        %v2510 = vpack.c.bf16 %v1622, %v1620
        %v2511 = vpack.c.bf16 %v2480, %v2479
        %v2512 = vpack.c.bf16 %v1627, %v1625
        %v2513 = vpack.c.bf16 %v2482, %v2481
        %v2514 = vpack.c.bf16 %v1632, %v1630
        %v2515 = vpack.c.bf16 %v2484, %v2483
        %v2516 = vpack.c.bf16 %v1637, %v1635
        %v2517 = vpack.c.bf16 %v2486, %v2485
        %v2518 = vpack.c.bf16 %v1642, %v1640
        %v2519 = vpack.c.bf16 %v2488, %v2487
        %v2520 = vpack.c.bf16 %v1647, %v1645
        %v2521 = vpack.c.bf16 %v2490, %v2489
        %v2522 = vpack.c.bf16 %v1652, %v1650
        %v2523 = vpack.c.bf16 %v2492, %v2491
        %v2524 = vpack.c.bf16 %v1657, %v1655
        %v2525 = vpack.c.bf16 %v2494, %v2493
        %v2526 = vpack.c.bf16 %v1582, %v1580
        %v2527 = vpack.c.bf16 %v2496, %v2495
        %v2528 = vpack.c.bf16 %v1587, %v1585
        %v2529 = vld [vmem:[%s5] sm:$0xf]
        %v2530 = vld [vmem:[%s5 + $0x4] sm:$0xf]
        %v2531 = vld [vmem:[%s5 + $0x8] sm:$0xf]
        %v2532 = vld [vmem:[%s5 + $0xc] sm:$0xf]
        %v2533 = vld [vmem:[%s5 + $0x10] sm:$0xf]
        %v2534 = vld [vmem:[%s5 + $0x14] sm:$0xf]
        %v2535 = vld [vmem:[%s5 + $0x18] sm:$0xf]
        %v2536 = vld [vmem:[%s5 + $0x1c] sm:$0xf]
        %v2537 = vld [vmem:[%s5 + $0x20] sm:$0xf]
        %v2538 = vld [vmem:[%s5 + $0x24] sm:$0xf]
        %v2539 = vld [vmem:[%s5 + $0x28] sm:$0xf]
        %v2540 = vld [vmem:[%s5 + $0x2c] sm:$0xf]
        %v2541 = vld [vmem:[%s5 + $0x30] sm:$0xf]
        %v2542 = vld [vmem:[%s5 + $0x34] sm:$0xf]
        %v2543 = vld [vmem:[%s5 + $0x38] sm:$0xf]
        %v2544 = vld [vmem:[%s5 + $0x3c] sm:$0xf]
        %v2545 = vld [vmem:[%s5 + $0x40] sm:$0xf]
        %v2546 = vld [vmem:[%s5 + $0x44] sm:$0xf]
        %v2547 = vld [vmem:[%s6] sm:$0x1]
        %v2549 = vlaneseq
        %v2550 = vshrl.u32 %v2549, 7
        %v2551 = vsub.s32 0, %v2550
        %v2552 = vrot.slane %v2547, %v2551
        %v2572 = vunpack.c.l.b16 %v2529
        %v2573 = vunpack.c.l.b16 %v2530
        %v2574 = vunpack.c.l.b16 %v2531
        %v2575 = vunpack.c.l.b16 %v2532
        %v2576 = vunpack.c.l.b16 %v2533
        %v2577 = vunpack.c.l.b16 %v2534
        %v2578 = vunpack.c.l.b16 %v2535
        %v2579 = vunpack.c.l.b16 %v2536
        %v2580 = vunpack.c.l.b16 %v2537
        %v2581 = vunpack.c.l.b16 %v2538
        %v2582 = vunpack.c.l.b16 %v2539
        %v2583 = vunpack.c.l.b16 %v2540
        %v2584 = vunpack.c.l.b16 %v2541
        %v2585 = vunpack.c.l.b16 %v2542
        %v2586 = vunpack.c.l.b16 %v2543
        %v2587 = vunpack.c.l.b16 %v2544
        %v2588 = vunpack.c.l.b16 %v2545
        %v2589 = vunpack.c.l.b16 %v2546
        %v2590 = vpack.c.b16 %v2573, %v2572
        %v2591 = vpack.c.b16 %v2575, %v2574
        %v2592 = vpack.c.b16 %v2577, %v2576
        %v2593 = vpack.c.b16 %v2579, %v2578
        %v2594 = vpack.c.b16 %v2581, %v2580
        %v2595 = vpack.c.b16 %v2583, %v2582
        %v2596 = vpack.c.b16 %v2585, %v2584
        %v2597 = vpack.c.b16 %v2587, %v2586
        %v2598 = vpack.c.b16 %v2589, %v2588
        %v2609 = vsel %vm2266, %v2498, 0
        %v2612 = vsel %vm2266, %v2500, 0
        %v2615 = vsel %vm2266, %v2502, 0
        %v2618 = vsel %vm2266, %v2504, 0
        %v2621 = vsel %vm2266, %v2506, 0
        %v2624 = vsel %vm2266, %v2508, 0
        %v2627 = vsel %vm2266, %v2510, 0
        %v2630 = vsel %vm2266, %v2512, 0
        %v2633 = vsel %vm2266, %v2514, 0
        %v2636 = vsel %vm2266, %v2516, 0
        %v2639 = vsel %vm2266, %v2518, 0
        %v2642 = vsel %vm2266, %v2520, 0
        %v2645 = vsel %vm2266, %v2522, 0
        %v2648 = vsel %vm2266, %v2524, 0
        %v2651 = vsel %vm2266, %v2526, 0
        %v2654 = vsel %vm2266, %v2528, 0
        %2656 = vmatprep.subr.bf16.mxu0 0
        %2657 = vmatpush1.bf16.msra.mxu0 %v2597
        %2658 = vmatprep.subr.bf16.mxu0 0
        %2659 = vmatpush1.bf16.msra.mxu0 %v2596
        %2660 = vmatprep.subr.bf16.mxu0 0
        %2661 = vmatpush1.bf16.msra.mxu0 %v2595
        %2662 = vmatprep.subr.bf16.mxu0 0
        %2663 = vmatpush1.bf16.msra.mxu0 %v2594
        %2664 = vmatprep.subr.bf16.mxu0 0
        %2665 = vmatpush1.bf16.msra.mxu0 %v2593
        %2666 = vmatprep.subr.bf16.mxu0 0
        %2667 = vmatpush1.bf16.msra.mxu0 %v2592
        %2668 = vmatprep.subr.bf16.mxu0 0
        %2669 = vmatpush1.bf16.msra.mxu0 %v2591
        %2670 = vmatprep.subr.bf16.mxu0 0
        %2671 = vmatpush1.bf16.msra.mxu0 %v2590
        %2672 = vmatprep.subr.bf16.mxu0 0
        %2673 = vmatpush2.bf16.msra.mxu0 0
        %2674 = vmatprep.subr.bf16.mxu0 0
        %2675 = vmatpush2.bf16.msra.mxu0 0
        %2676 = vmatprep.subr.bf16.mxu0 0
        %2677 = vmatpush2.bf16.msra.mxu0 0
        %2678 = vmatprep.subr.bf16.mxu0 0
        %2679 = vmatpush2.bf16.msra.mxu0 0
        %2680 = vmatprep.subr.bf16.mxu0 0
        %2681 = vmatpush2.bf16.msra.mxu0 0
        %2682 = vmatprep.subr.bf16.mxu0 0
        %2683 = vmatpush2.bf16.msra.mxu0 0
        %2684 = vmatprep.subr.bf16.mxu0 0
        %2685 = vmatpush2.bf16.msra.mxu0 0
        %2686 = vmatprep.subr.bf16.mxu0 0
        %2687 = vmatpush2.bf16.msra.mxu0 %v2598
        %2688 = vmatprep.mubr.bf16.mxu0 %v2609
        %2689 = vmatmul.mubr.bf16.gmra.mxu0 %v2497
        %v2690 = vpop.f32.mrf.mxu0
        %v2691 = vadd.f32 %v2552, %v2690
        %v2692 = vpop.f32.mrf.mxu0
        %v2693 = vpop.f32.mrf.mxu0
        %v2694 = vadd.f32 %v2552, %v2693
        %v2695 = vpop.f32.mrf.mxu0
        %2696 = vmatprep.mubr.bf16.mxu0 %v2612
        %2697 = vmatmul.mubr.bf16.gmra.mxu0 %v2499
        %v2698 = vpop.f32.mrf.mxu0
        %v2699 = vadd.f32 %v2552, %v2698
        %v2700 = vpop.f32.mrf.mxu0
        %v2701 = vpop.f32.mrf.mxu0
        %v2702 = vadd.f32 %v2552, %v2701
        %v2703 = vpop.f32.mrf.mxu0
        %2704 = vmatprep.mubr.bf16.mxu0 %v2615
        %2705 = vmatmul.mubr.bf16.gmra.mxu0 %v2501
        %v2706 = vpop.f32.mrf.mxu0
        %v2707 = vadd.f32 %v2552, %v2706
        %v2708 = vpop.f32.mrf.mxu0
        %v2709 = vpop.f32.mrf.mxu0
        %v2710 = vadd.f32 %v2552, %v2709
        %v2711 = vpop.f32.mrf.mxu0
        %2712 = vmatprep.mubr.bf16.mxu0 %v2618
        %2713 = vmatmul.mubr.bf16.gmra.mxu0 %v2503
        %v2714 = vpop.f32.mrf.mxu0
        %v2715 = vadd.f32 %v2552, %v2714
        %v2716 = vpop.f32.mrf.mxu0
        %v2717 = vpop.f32.mrf.mxu0
        %v2718 = vadd.f32 %v2552, %v2717
        %v2719 = vpop.f32.mrf.mxu0
        %2720 = vmatprep.mubr.bf16.mxu0 %v2621
        %2721 = vmatmul.mubr.bf16.gmra.mxu0 %v2505
        %v2722 = vpop.f32.mrf.mxu0
        %v2723 = vadd.f32 %v2552, %v2722
        %v2724 = vpop.f32.mrf.mxu0
        %v2725 = vpop.f32.mrf.mxu0
        %v2726 = vadd.f32 %v2552, %v2725
        %v2727 = vpop.f32.mrf.mxu0
        %2728 = vmatprep.mubr.bf16.mxu0 %v2624
        %2729 = vmatmul.mubr.bf16.gmra.mxu0 %v2507
        %v2730 = vpop.f32.mrf.mxu0
        %v2731 = vadd.f32 %v2552, %v2730
        %v2732 = vpop.f32.mrf.mxu0
        %v2733 = vpop.f32.mrf.mxu0
        %v2734 = vadd.f32 %v2552, %v2733
        %v2735 = vpop.f32.mrf.mxu0
        %2736 = vmatprep.mubr.bf16.mxu0 %v2627
        %2737 = vmatmul.mubr.bf16.gmra.mxu0 %v2509
        %v2738 = vpop.f32.mrf.mxu0
        %v2739 = vadd.f32 %v2552, %v2738
        %v2740 = vpop.f32.mrf.mxu0
        %v2741 = vpop.f32.mrf.mxu0
        %v2742 = vadd.f32 %v2552, %v2741
        %v2743 = vpop.f32.mrf.mxu0
        %2744 = vmatprep.mubr.bf16.mxu0 %v2630
        %2745 = vmatmul.mubr.bf16.gmra.mxu0 %v2511
        %v2746 = vpop.f32.mrf.mxu0
        %v2747 = vadd.f32 %v2552, %v2746
        %v2748 = vpop.f32.mrf.mxu0
        %v2749 = vpop.f32.mrf.mxu0
        %v2750 = vadd.f32 %v2552, %v2749
        %v2751 = vpop.f32.mrf.mxu0
        %2752 = vmatprep.mubr.bf16.mxu0 %v2633
        %2753 = vmatmul.mubr.bf16.gmra.mxu0 %v2513
        %v2754 = vpop.f32.mrf.mxu0
        %v2755 = vadd.f32 %v2552, %v2754
        %v2756 = vpop.f32.mrf.mxu0
        %v2757 = vpop.f32.mrf.mxu0
        %v2758 = vadd.f32 %v2552, %v2757
        %v2759 = vpop.f32.mrf.mxu0
        %2760 = vmatprep.mubr.bf16.mxu0 %v2636
        %2761 = vmatmul.mubr.bf16.gmra.mxu0 %v2515
        %v2762 = vpop.f32.mrf.mxu0
        %v2763 = vadd.f32 %v2552, %v2762
        %v2764 = vpop.f32.mrf.mxu0
        %v2765 = vpop.f32.mrf.mxu0
        %v2766 = vadd.f32 %v2552, %v2765
        %v2767 = vpop.f32.mrf.mxu0
        %2768 = vmatprep.mubr.bf16.mxu0 %v2639
        %2769 = vmatmul.mubr.bf16.gmra.mxu0 %v2517
        %v2770 = vpop.f32.mrf.mxu0
        %v2771 = vadd.f32 %v2552, %v2770
        %v2772 = vpop.f32.mrf.mxu0
        %v2773 = vpop.f32.mrf.mxu0
        %v2774 = vadd.f32 %v2552, %v2773
        %v2775 = vpop.f32.mrf.mxu0
        %2776 = vmatprep.mubr.bf16.mxu0 %v2642
        %2777 = vmatmul.mubr.bf16.gmra.mxu0 %v2519
        %v2778 = vpop.f32.mrf.mxu0
        %v2779 = vadd.f32 %v2552, %v2778
        %v2780 = vpop.f32.mrf.mxu0
        %v2781 = vpop.f32.mrf.mxu0
        %v2782 = vadd.f32 %v2552, %v2781
        %v2783 = vpop.f32.mrf.mxu0
        %2784 = vmatprep.mubr.bf16.mxu0 %v2645
        %2785 = vmatmul.mubr.bf16.gmra.mxu0 %v2521
        %v2786 = vpop.f32.mrf.mxu0
        %v2787 = vadd.f32 %v2552, %v2786
        %v2788 = vpop.f32.mrf.mxu0
        %v2789 = vpop.f32.mrf.mxu0
        %v2790 = vadd.f32 %v2552, %v2789
        %v2791 = vpop.f32.mrf.mxu0
        %2792 = vmatprep.mubr.bf16.mxu0 %v2648
        %2793 = vmatmul.mubr.bf16.gmra.mxu0 %v2523
        %v2794 = vpop.f32.mrf.mxu0
        %v2795 = vadd.f32 %v2552, %v2794
        %v2796 = vpop.f32.mrf.mxu0
        %v2797 = vpop.f32.mrf.mxu0
        %v2798 = vadd.f32 %v2552, %v2797
        %v2799 = vpop.f32.mrf.mxu0
        %2800 = vmatprep.mubr.bf16.mxu0 %v2651
        %2801 = vmatmul.mubr.bf16.gmra.mxu0 %v2525
        %v2802 = vpop.f32.mrf.mxu0
        %v2803 = vadd.f32 %v2552, %v2802
        %v2804 = vpop.f32.mrf.mxu0
        %v2805 = vpop.f32.mrf.mxu0
        %v2806 = vadd.f32 %v2552, %v2805
        %v2807 = vpop.f32.mrf.mxu0
        %2808 = vmatprep.mubr.bf16.mxu0 %v2654
        %2809 = vmatmul.mubr.bf16.gmra.mxu0 %v2527
        %v2810 = vpop.f32.mrf.mxu0
        %v2811 = vadd.f32 %v2552, %v2810
        %v2812 = vpop.f32.mrf.mxu0
        %v2813 = vpop.f32.mrf.mxu0
        %v2814 = vadd.f32 %v2552, %v2813
        %v2815 = vpop.f32.mrf.mxu0
        %2816 = vdwg.mxu0
        %v2817 = vmax.f32 %v2691, 0.0
        %v2818 = vmax.f32 %v2694, 0.0
        %v2819 = vmax.f32 %v2699, 0.0
        %v2820 = vmax.f32 %v2702, 0.0
        %v2821 = vmax.f32 %v2707, 0.0
        %v2822 = vmax.f32 %v2710, 0.0
        %v2823 = vmax.f32 %v2715, 0.0
        %v2824 = vmax.f32 %v2718, 0.0
        %v2825 = vmax.f32 %v2723, 0.0
        %v2826 = vmax.f32 %v2726, 0.0
        %v2827 = vmax.f32 %v2731, 0.0
        %v2828 = vmax.f32 %v2734, 0.0
        %v2829 = vmax.f32 %v2739, 0.0
        %v2830 = vmax.f32 %v2742, 0.0
        %v2831 = vmax.f32 %v2747, 0.0
        %v2832 = vmax.f32 %v2750, 0.0
        %v2833 = vmax.f32 %v2755, 0.0
        %v2834 = vmax.f32 %v2758, 0.0
        %v2835 = vmax.f32 %v2763, 0.0
        %v2836 = vmax.f32 %v2766, 0.0
        %v2837 = vmax.f32 %v2771, 0.0
        %v2838 = vmax.f32 %v2774, 0.0
        %v2839 = vmax.f32 %v2779, 0.0
        %v2840 = vmax.f32 %v2782, 0.0
        %v2841 = vmax.f32 %v2787, 0.0
        %v2842 = vmax.f32 %v2790, 0.0
        %v2843 = vmax.f32 %v2795, 0.0
        %v2844 = vmax.f32 %v2798, 0.0
        %v2845 = vmax.f32 %v2803, 0.0
        %v2846 = vmax.f32 %v2806, 0.0
        %v2847 = vmax.f32 %v2811, 0.0
        %v2848 = vmax.f32 %v2814, 0.0
        %v2881 = vrot.slane %v1334, 1
        %v2882 = vrot.slane %v1236, 1
        %v2883 = vsel %vm1400, %v2881, %v2882
        %v2884 = vrot.slane %v1351, 1
        %v2885 = vsel %vm1400, %v2882, %v2884
        %v2886 = vrot.slane %v1335, 1
        %v2887 = vrot.slane %v1239, 1
        %v2888 = vsel %vm1400, %v2886, %v2887
        %v2889 = vrot.slane %v1352, 1
        %v2890 = vsel %vm1400, %v2887, %v2889
        %v2891 = vrot.slane %v1336, 1
        %v2892 = vrot.slane %v1242, 1
        %v2893 = vsel %vm1400, %v2891, %v2892
        %v2894 = vrot.slane %v1353, 1
        %v2895 = vsel %vm1400, %v2892, %v2894
        %v2896 = vrot.slane %v1337, 1
        %v2897 = vrot.slane %v1245, 1
        %v2898 = vsel %vm1400, %v2896, %v2897
        %v2899 = vrot.slane %v1354, 1
        %v2900 = vsel %vm1400, %v2897, %v2899
        %v2901 = vrot.slane %v1338, 1
        %v2902 = vrot.slane %v1248, 1
        %v2903 = vsel %vm1400, %v2901, %v2902
        %v2904 = vrot.slane %v1355, 1
        %v2905 = vsel %vm1400, %v2902, %v2904
        %v2906 = vrot.slane %v1339, 1
        %v2907 = vrot.slane %v1251, 1
        %v2908 = vsel %vm1400, %v2906, %v2907
        %v2909 = vrot.slane %v1356, 1
        %v2910 = vsel %vm1400, %v2907, %v2909
        %v2911 = vrot.slane %v1340, 1
        %v2912 = vrot.slane %v1254, 1
        %v2913 = vsel %vm1400, %v2911, %v2912
        %v2914 = vrot.slane %v1357, 1
        %v2915 = vsel %vm1400, %v2912, %v2914
        %v2916 = vrot.slane %v1341, 1
        %v2917 = vrot.slane %v1257, 1
        %v2918 = vsel %vm1400, %v2916, %v2917
        %v2919 = vrot.slane %v1358, 1
        %v2920 = vsel %vm1400, %v2917, %v2919
        %v2921 = vrot.slane %v1342, 1
        %v2922 = vrot.slane %v1260, 1
        %v2923 = vsel %vm1400, %v2921, %v2922
        %v2924 = vrot.slane %v1359, 1
        %v2925 = vsel %vm1400, %v2922, %v2924
        %v2926 = vrot.slane %v1343, 1
        %v2927 = vrot.slane %v1263, 1
        %v2928 = vsel %vm1400, %v2926, %v2927
        %v2929 = vrot.slane %v1360, 1
        %v2930 = vsel %vm1400, %v2927, %v2929
        %v2931 = vrot.slane %v1344, 1
        %v2932 = vrot.slane %v1266, 1
        %v2933 = vsel %vm1400, %v2931, %v2932
        %v2934 = vrot.slane %v1361, 1
        %v2935 = vsel %vm1400, %v2932, %v2934
        %v2936 = vrot.slane %v1345, 1
        %v2937 = vrot.slane %v1269, 1
        %v2938 = vsel %vm1400, %v2936, %v2937
        %v2939 = vrot.slane %v1362, 1
        %v2940 = vsel %vm1400, %v2937, %v2939
        %v2941 = vrot.slane %v1346, 1
        %v2942 = vrot.slane %v1272, 1
        %v2943 = vsel %vm1400, %v2941, %v2942
        %v2944 = vrot.slane %v1363, 1
        %v2945 = vsel %vm1400, %v2942, %v2944
        %v2946 = vrot.slane %v1347, 1
        %v2947 = vrot.slane %v1275, 1
        %v2948 = vsel %vm1400, %v2946, %v2947
        %v2949 = vrot.slane %v1364, 1
        %v2950 = vsel %vm1400, %v2947, %v2949
        %v2951 = vrot.slane %v1348, 1
        %v2952 = vrot.slane %v1278, 1
        %v2953 = vsel %vm1400, %v2951, %v2952
        %v2954 = vrot.slane %v1365, 1
        %v2955 = vsel %vm1400, %v2952, %v2954
        %v2956 = vrot.slane %v1349, 1
        %v2957 = vrot.slane %v1281, 1
        %v2958 = vsel %vm1400, %v2956, %v2957
        %v2959 = vrot.slane %v1366, 1
        %v2960 = vsel %vm1400, %v2957, %v2959
        %2961 = vrot.lane.b32.xlu0 %v2883, 16
        %v2962 = vpop.permute.xlu0 %2961
        %2963 = vrot.lane.b32.xlu0 %v2885, 16
        %v2964 = vpop.permute.xlu0 %2963
        %2965 = vrot.lane.b32.xlu0 %v2888, 16
        %v2966 = vpop.permute.xlu0 %2965
        %2967 = vrot.lane.b32.xlu0 %v2890, 16
        %v2968 = vpop.permute.xlu0 %2967
        %2969 = vrot.lane.b32.xlu0 %v2893, 16
        %v2970 = vpop.permute.xlu0 %2969
        %2971 = vrot.lane.b32.xlu0 %v2895, 16
        %v2972 = vpop.permute.xlu0 %2971
        %2973 = vrot.lane.b32.xlu0 %v2898, 16
        %v2974 = vpop.permute.xlu0 %2973
        %2975 = vrot.lane.b32.xlu0 %v2900, 16
        %v2976 = vpop.permute.xlu0 %2975
        %2977 = vrot.lane.b32.xlu0 %v2903, 16
        %v2978 = vpop.permute.xlu0 %2977
        %2979 = vrot.lane.b32.xlu0 %v2905, 16
        %v2980 = vpop.permute.xlu0 %2979
        %2981 = vrot.lane.b32.xlu0 %v2908, 16
        %v2982 = vpop.permute.xlu0 %2981
        %2983 = vrot.lane.b32.xlu0 %v2910, 16
        %v2984 = vpop.permute.xlu0 %2983
        %2985 = vrot.lane.b32.xlu0 %v2913, 16
        %v2986 = vpop.permute.xlu0 %2985
        %2987 = vrot.lane.b32.xlu0 %v2915, 16
        %v2988 = vpop.permute.xlu0 %2987
        %2989 = vrot.lane.b32.xlu0 %v2918, 16
        %v2990 = vpop.permute.xlu0 %2989
        %2991 = vrot.lane.b32.xlu0 %v2920, 16
        %v2992 = vpop.permute.xlu0 %2991
        %2993 = vrot.lane.b32.xlu0 %v2923, 16
        %v2994 = vpop.permute.xlu0 %2993
        %2995 = vrot.lane.b32.xlu0 %v2925, 16
        %v2996 = vpop.permute.xlu0 %2995
        %2997 = vrot.lane.b32.xlu0 %v2928, 16
        %v2998 = vpop.permute.xlu0 %2997
        %2999 = vrot.lane.b32.xlu0 %v2930, 16
        %v3000 = vpop.permute.xlu0 %2999
        %3001 = vrot.lane.b32.xlu0 %v2933, 16
        %v3002 = vpop.permute.xlu0 %3001
        %3003 = vrot.lane.b32.xlu0 %v2935, 16
        %v3004 = vpop.permute.xlu0 %3003
        %3005 = vrot.lane.b32.xlu0 %v2938, 16
        %v3006 = vpop.permute.xlu0 %3005
        %3007 = vrot.lane.b32.xlu0 %v2940, 16
        %v3008 = vpop.permute.xlu0 %3007
        %3009 = vrot.lane.b32.xlu0 %v2943, 16
        %v3010 = vpop.permute.xlu0 %3009
        %3011 = vrot.lane.b32.xlu0 %v2945, 16
        %v3012 = vpop.permute.xlu0 %3011
        %3013 = vrot.lane.b32.xlu0 %v2948, 16
        %v3014 = vpop.permute.xlu0 %3013
        %3015 = vrot.lane.b32.xlu0 %v2950, 16
        %v3016 = vpop.permute.xlu0 %3015
        %3017 = vrot.lane.b32.xlu0 %v2953, 16
        %v3018 = vpop.permute.xlu0 %3017
        %3019 = vrot.lane.b32.xlu0 %v2955, 16
        %v3020 = vpop.permute.xlu0 %3019
        %3021 = vrot.lane.b32.xlu0 %v2958, 16
        %v3022 = vpop.permute.xlu0 %3021
        %3023 = vrot.lane.b32.xlu0 %v2960, 16
        %v3024 = vpop.permute.xlu0 %3023
        %v3057 = vrot.slane %v1334, 2
        %v3058 = vrot.slane %v1236, 2
        %v3059 = vsel %vm1577, %v3057, %v3058
        %v3060 = vrot.slane %v1351, 2
        %v3061 = vsel %vm1577, %v3058, %v3060
        %v3062 = vrot.slane %v1335, 2
        %v3063 = vrot.slane %v1239, 2
        %v3064 = vsel %vm1577, %v3062, %v3063
        %v3065 = vrot.slane %v1352, 2
        %v3066 = vsel %vm1577, %v3063, %v3065
        %v3067 = vrot.slane %v1336, 2
        %v3068 = vrot.slane %v1242, 2
        %v3069 = vsel %vm1577, %v3067, %v3068
        %v3070 = vrot.slane %v1353, 2
        %v3071 = vsel %vm1577, %v3068, %v3070
        %v3072 = vrot.slane %v1337, 2
        %v3073 = vrot.slane %v1245, 2
        %v3074 = vsel %vm1577, %v3072, %v3073
        %v3075 = vrot.slane %v1354, 2
        %v3076 = vsel %vm1577, %v3073, %v3075
        %v3077 = vrot.slane %v1338, 2
        %v3078 = vrot.slane %v1248, 2
        %v3079 = vsel %vm1577, %v3077, %v3078
        %v3080 = vrot.slane %v1355, 2
        %v3081 = vsel %vm1577, %v3078, %v3080
        %v3082 = vrot.slane %v1339, 2
        %v3083 = vrot.slane %v1251, 2
        %v3084 = vsel %vm1577, %v3082, %v3083
        %v3085 = vrot.slane %v1356, 2
        %v3086 = vsel %vm1577, %v3083, %v3085
        %v3087 = vrot.slane %v1340, 2
        %v3088 = vrot.slane %v1254, 2
        %v3089 = vsel %vm1577, %v3087, %v3088
        %v3090 = vrot.slane %v1357, 2
        %v3091 = vsel %vm1577, %v3088, %v3090
        %v3092 = vrot.slane %v1341, 2
        %v3093 = vrot.slane %v1257, 2
        %v3094 = vsel %vm1577, %v3092, %v3093
        %v3095 = vrot.slane %v1358, 2
        %v3096 = vsel %vm1577, %v3093, %v3095
        %v3097 = vrot.slane %v1342, 2
        %v3098 = vrot.slane %v1260, 2
        %v3099 = vsel %vm1577, %v3097, %v3098
        %v3100 = vrot.slane %v1359, 2
        %v3101 = vsel %vm1577, %v3098, %v3100
        %v3102 = vrot.slane %v1343, 2
        %v3103 = vrot.slane %v1263, 2
        %v3104 = vsel %vm1577, %v3102, %v3103
        %v3105 = vrot.slane %v1360, 2
        %v3106 = vsel %vm1577, %v3103, %v3105
        %v3107 = vrot.slane %v1344, 2
        %v3108 = vrot.slane %v1266, 2
        %v3109 = vsel %vm1577, %v3107, %v3108
        %v3110 = vrot.slane %v1361, 2
        %v3111 = vsel %vm1577, %v3108, %v3110
        %v3112 = vrot.slane %v1345, 2
        %v3113 = vrot.slane %v1269, 2
        %v3114 = vsel %vm1577, %v3112, %v3113
        %v3115 = vrot.slane %v1362, 2
        %v3116 = vsel %vm1577, %v3113, %v3115
        %v3117 = vrot.slane %v1346, 2
        %v3118 = vrot.slane %v1272, 2
        %v3119 = vsel %vm1577, %v3117, %v3118
        %v3120 = vrot.slane %v1363, 2
        %v3121 = vsel %vm1577, %v3118, %v3120
        %v3122 = vrot.slane %v1347, 2
        %v3123 = vrot.slane %v1275, 2
        %v3124 = vsel %vm1577, %v3122, %v3123
        %v3125 = vrot.slane %v1364, 2
        %v3126 = vsel %vm1577, %v3123, %v3125
        %v3127 = vrot.slane %v1348, 2
        %v3128 = vrot.slane %v1278, 2
        %v3129 = vsel %vm1577, %v3127, %v3128
        %v3130 = vrot.slane %v1365, 2
        %v3131 = vsel %vm1577, %v3128, %v3130
        %v3132 = vrot.slane %v1349, 2
        %v3133 = vrot.slane %v1281, 2
        %v3134 = vsel %vm1577, %v3132, %v3133
        %v3135 = vrot.slane %v1366, 2
        %v3136 = vsel %vm1577, %v3133, %v3135
        %3137 = vrot.lane.b32.xlu0 %v3059, 32
        %v3138 = vpop.permute.xlu0 %3137
        %3139 = vrot.lane.b32.xlu0 %v3061, 32
        %v3140 = vpop.permute.xlu0 %3139
        %3141 = vrot.lane.b32.xlu0 %v3064, 32
        %v3142 = vpop.permute.xlu0 %3141
        %3143 = vrot.lane.b32.xlu0 %v3066, 32
        %v3144 = vpop.permute.xlu0 %3143
        %3145 = vrot.lane.b32.xlu0 %v3069, 32
        %v3146 = vpop.permute.xlu0 %3145
        %3147 = vrot.lane.b32.xlu0 %v3071, 32
        %v3148 = vpop.permute.xlu0 %3147
        %3149 = vrot.lane.b32.xlu0 %v3074, 32
        %v3150 = vpop.permute.xlu0 %3149
        %3151 = vrot.lane.b32.xlu0 %v3076, 32
        %v3152 = vpop.permute.xlu0 %3151
        %3153 = vrot.lane.b32.xlu0 %v3079, 32
        %v3154 = vpop.permute.xlu0 %3153
        %3155 = vrot.lane.b32.xlu0 %v3081, 32
        %v3156 = vpop.permute.xlu0 %3155
        %3157 = vrot.lane.b32.xlu0 %v3084, 32
        %v3158 = vpop.permute.xlu0 %3157
        %3159 = vrot.lane.b32.xlu0 %v3086, 32
        %v3160 = vpop.permute.xlu0 %3159
        %3161 = vrot.lane.b32.xlu0 %v3089, 32
        %v3162 = vpop.permute.xlu0 %3161
        %3163 = vrot.lane.b32.xlu0 %v3091, 32
        %v3164 = vpop.permute.xlu0 %3163
        %3165 = vrot.lane.b32.xlu0 %v3094, 32
        %v3166 = vpop.permute.xlu0 %3165
        %3167 = vrot.lane.b32.xlu0 %v3096, 32
        %v3168 = vpop.permute.xlu0 %3167
        %3169 = vrot.lane.b32.xlu0 %v3099, 32
        %v3170 = vpop.permute.xlu0 %3169
        %3171 = vrot.lane.b32.xlu0 %v3101, 32
        %v3172 = vpop.permute.xlu0 %3171
        %3173 = vrot.lane.b32.xlu0 %v3104, 32
        %v3174 = vpop.permute.xlu0 %3173
        %3175 = vrot.lane.b32.xlu0 %v3106, 32
        %v3176 = vpop.permute.xlu0 %3175
        %3177 = vrot.lane.b32.xlu0 %v3109, 32
        %v3178 = vpop.permute.xlu0 %3177
        %3179 = vrot.lane.b32.xlu0 %v3111, 32
        %v3180 = vpop.permute.xlu0 %3179
        %3181 = vrot.lane.b32.xlu0 %v3114, 32
        %v3182 = vpop.permute.xlu0 %3181
        %3183 = vrot.lane.b32.xlu0 %v3116, 32
        %v3184 = vpop.permute.xlu0 %3183
        %3185 = vrot.lane.b32.xlu0 %v3119, 32
        %v3186 = vpop.permute.xlu0 %3185
        %3187 = vrot.lane.b32.xlu0 %v3121, 32
        %v3188 = vpop.permute.xlu0 %3187
        %3189 = vrot.lane.b32.xlu0 %v3124, 32
        %v3190 = vpop.permute.xlu0 %3189
        %3191 = vrot.lane.b32.xlu0 %v3126, 32
        %v3192 = vpop.permute.xlu0 %3191
        %3193 = vrot.lane.b32.xlu0 %v3129, 32
        %v3194 = vpop.permute.xlu0 %3193
        %3195 = vrot.lane.b32.xlu0 %v3131, 32
        %v3196 = vpop.permute.xlu0 %3195
        %3197 = vrot.lane.b32.xlu0 %v3134, 32
        %v3198 = vpop.permute.xlu0 %3197
        %3199 = vrot.lane.b32.xlu0 %v3136, 32
        %v3200 = vpop.permute.xlu0 %3199
        %3234 = vrot.lane.b32.xlu0 %v1335, 48
        %v3235 = vpop.permute.xlu0 %3234
        %3236 = vrot.lane.b32.xlu0 %v1239, 48
        %v3237 = vpop.permute.xlu0 %3236
        %3238 = vrot.lane.b32.xlu0 %v1336, 48
        %v3239 = vpop.permute.xlu0 %3238
        %3240 = vrot.lane.b32.xlu0 %v1242, 48
        %v3241 = vpop.permute.xlu0 %3240
        %3242 = vrot.lane.b32.xlu0 %v1337, 48
        %v3243 = vpop.permute.xlu0 %3242
        %3244 = vrot.lane.b32.xlu0 %v1245, 48
        %v3245 = vpop.permute.xlu0 %3244
        %3246 = vrot.lane.b32.xlu0 %v1338, 48
        %v3247 = vpop.permute.xlu0 %3246
        %3248 = vrot.lane.b32.xlu0 %v1248, 48
        %v3249 = vpop.permute.xlu0 %3248
        %3250 = vrot.lane.b32.xlu0 %v1339, 48
        %v3251 = vpop.permute.xlu0 %3250
        %3252 = vrot.lane.b32.xlu0 %v1251, 48
        %v3253 = vpop.permute.xlu0 %3252
        %3254 = vrot.lane.b32.xlu0 %v1340, 48
        %v3255 = vpop.permute.xlu0 %3254
        %3256 = vrot.lane.b32.xlu0 %v1254, 48
        %v3257 = vpop.permute.xlu0 %3256
        %3258 = vrot.lane.b32.xlu0 %v1341, 48
        %v3259 = vpop.permute.xlu0 %3258
        %3260 = vrot.lane.b32.xlu0 %v1257, 48
        %v3261 = vpop.permute.xlu0 %3260
        %3262 = vrot.lane.b32.xlu0 %v1342, 48
        %v3263 = vpop.permute.xlu0 %3262
        %3264 = vrot.lane.b32.xlu0 %v1260, 48
        %v3265 = vpop.permute.xlu0 %3264
        %3266 = vrot.lane.b32.xlu0 %v1343, 48
        %v3267 = vpop.permute.xlu0 %3266
        %3268 = vrot.lane.b32.xlu0 %v1263, 48
        %v3269 = vpop.permute.xlu0 %3268
        %3270 = vrot.lane.b32.xlu0 %v1344, 48
        %v3271 = vpop.permute.xlu0 %3270
        %3272 = vrot.lane.b32.xlu0 %v1266, 48
        %v3273 = vpop.permute.xlu0 %3272
        %3274 = vrot.lane.b32.xlu0 %v1345, 48
        %v3275 = vpop.permute.xlu0 %3274
        %3276 = vrot.lane.b32.xlu0 %v1269, 48
        %v3277 = vpop.permute.xlu0 %3276
        %3278 = vrot.lane.b32.xlu0 %v1346, 48
        %v3279 = vpop.permute.xlu0 %3278
        %3280 = vrot.lane.b32.xlu0 %v1272, 48
        %v3281 = vpop.permute.xlu0 %3280
        %3282 = vrot.lane.b32.xlu0 %v1347, 48
        %v3283 = vpop.permute.xlu0 %3282
        %3284 = vrot.lane.b32.xlu0 %v1275, 48
        %v3285 = vpop.permute.xlu0 %3284
        %3286 = vrot.lane.b32.xlu0 %v1348, 48
        %v3287 = vpop.permute.xlu0 %3286
        %3288 = vrot.lane.b32.xlu0 %v1278, 48
        %v3289 = vpop.permute.xlu0 %3288
        %3290 = vrot.lane.b32.xlu0 %v1349, 48
        %v3291 = vpop.permute.xlu0 %3290
        %3292 = vrot.lane.b32.xlu0 %v1281, 48
        %v3293 = vpop.permute.xlu0 %3292
        %3294 = vrot.lane.b32.xlu0 %v1350, 48
        %v3295 = vpop.permute.xlu0 %3294
        %3296 = vrot.lane.b32.xlu0 %v1284, 48
        %v3297 = vpop.permute.xlu0 %3296
        %v3331 = vrot.slane %v1350, 1
        %v3332 = vrot.slane %v1284, 1
        %v3333 = vsel %vm1400, %v3331, %v3332
        %v3334 = vrot.slane %v1367, 1
        %v3335 = vsel %vm1400, %v3332, %v3334
        %3336 = vrot.lane.b32.xlu0 %v2888, 64
        %v3337 = vpop.permute.xlu0 %3336
        %3338 = vrot.lane.b32.xlu0 %v2890, 64
        %v3339 = vpop.permute.xlu0 %3338
        %3340 = vrot.lane.b32.xlu0 %v2893, 64
        %v3341 = vpop.permute.xlu0 %3340
        %3342 = vrot.lane.b32.xlu0 %v2895, 64
        %v3343 = vpop.permute.xlu0 %3342
        %3344 = vrot.lane.b32.xlu0 %v2898, 64
        %v3345 = vpop.permute.xlu0 %3344
        %3346 = vrot.lane.b32.xlu0 %v2900, 64
        %v3347 = vpop.permute.xlu0 %3346
        %3348 = vrot.lane.b32.xlu0 %v2903, 64
        %v3349 = vpop.permute.xlu0 %3348
        %3350 = vrot.lane.b32.xlu0 %v2905, 64
        %v3351 = vpop.permute.xlu0 %3350
        %3352 = vrot.lane.b32.xlu0 %v2908, 64
        %v3353 = vpop.permute.xlu0 %3352
        %3354 = vrot.lane.b32.xlu0 %v2910, 64
        %v3355 = vpop.permute.xlu0 %3354
        %3356 = vrot.lane.b32.xlu0 %v2913, 64
        %v3357 = vpop.permute.xlu0 %3356
        %3358 = vrot.lane.b32.xlu0 %v2915, 64
        %v3359 = vpop.permute.xlu0 %3358
        %3360 = vrot.lane.b32.xlu0 %v2918, 64
        %v3361 = vpop.permute.xlu0 %3360
        %3362 = vrot.lane.b32.xlu0 %v2920, 64
        %v3363 = vpop.permute.xlu0 %3362
        %3364 = vrot.lane.b32.xlu0 %v2923, 64
        %v3365 = vpop.permute.xlu0 %3364
        %3366 = vrot.lane.b32.xlu0 %v2925, 64
        %v3367 = vpop.permute.xlu0 %3366
        %3368 = vrot.lane.b32.xlu0 %v2928, 64
        %v3369 = vpop.permute.xlu0 %3368
        %3370 = vrot.lane.b32.xlu0 %v2930, 64
        %v3371 = vpop.permute.xlu0 %3370
        %3372 = vrot.lane.b32.xlu0 %v2933, 64
        %v3373 = vpop.permute.xlu0 %3372
        %3374 = vrot.lane.b32.xlu0 %v2935, 64
        %v3375 = vpop.permute.xlu0 %3374
        %3376 = vrot.lane.b32.xlu0 %v2938, 64
        %v3377 = vpop.permute.xlu0 %3376
        %3378 = vrot.lane.b32.xlu0 %v2940, 64
        %v3379 = vpop.permute.xlu0 %3378
        %3380 = vrot.lane.b32.xlu0 %v2943, 64
        %v3381 = vpop.permute.xlu0 %3380
        %3382 = vrot.lane.b32.xlu0 %v2945, 64
        %v3383 = vpop.permute.xlu0 %3382
        %3384 = vrot.lane.b32.xlu0 %v2948, 64
        %v3385 = vpop.permute.xlu0 %3384
        %3386 = vrot.lane.b32.xlu0 %v2950, 64
        %v3387 = vpop.permute.xlu0 %3386
        %3388 = vrot.lane.b32.xlu0 %v2953, 64
        %v3389 = vpop.permute.xlu0 %3388
        %3390 = vrot.lane.b32.xlu0 %v2955, 64
        %v3391 = vpop.permute.xlu0 %3390
        %3392 = vrot.lane.b32.xlu0 %v2958, 64
        %v3393 = vpop.permute.xlu0 %3392
        %3394 = vrot.lane.b32.xlu0 %v2960, 64
        %v3395 = vpop.permute.xlu0 %3394
        %3396 = vrot.lane.b32.xlu0 %v3333, 64
        %v3397 = vpop.permute.xlu0 %3396
        %3398 = vrot.lane.b32.xlu0 %v3335, 64
        %v3399 = vpop.permute.xlu0 %3398
        %v3432 = vrot.slane %v1350, 2
        %v3433 = vrot.slane %v1284, 2
        %v3434 = vsel %vm1577, %v3432, %v3433
        %v3435 = vrot.slane %v1367, 2
        %v3436 = vsel %vm1577, %v3433, %v3435
        %3437 = vrot.lane.b32.xlu0 %v3064, 80
        %v3438 = vpop.permute.xlu0 %3437
        %3439 = vrot.lane.b32.xlu0 %v3066, 80
        %v3440 = vpop.permute.xlu0 %3439
        %3441 = vrot.lane.b32.xlu0 %v3069, 80
        %v3442 = vpop.permute.xlu0 %3441
        %3443 = vrot.lane.b32.xlu0 %v3071, 80
        %v3444 = vpop.permute.xlu0 %3443
        %3445 = vrot.lane.b32.xlu0 %v3074, 80
        %v3446 = vpop.permute.xlu0 %3445
        %3447 = vrot.lane.b32.xlu0 %v3076, 80
        %v3448 = vpop.permute.xlu0 %3447
        %3449 = vrot.lane.b32.xlu0 %v3079, 80
        %v3450 = vpop.permute.xlu0 %3449
        %3451 = vrot.lane.b32.xlu0 %v3081, 80
        %v3452 = vpop.permute.xlu0 %3451
        %3453 = vrot.lane.b32.xlu0 %v3084, 80
        %v3454 = vpop.permute.xlu0 %3453
        %3455 = vrot.lane.b32.xlu0 %v3086, 80
        %v3456 = vpop.permute.xlu0 %3455
        %3457 = vrot.lane.b32.xlu0 %v3089, 80
        %v3458 = vpop.permute.xlu0 %3457
        %3459 = vrot.lane.b32.xlu0 %v3091, 80
        %v3460 = vpop.permute.xlu0 %3459
        %3461 = vrot.lane.b32.xlu0 %v3094, 80
        %v3462 = vpop.permute.xlu0 %3461
        %3463 = vrot.lane.b32.xlu0 %v3096, 80
        %v3464 = vpop.permute.xlu0 %3463
        %3465 = vrot.lane.b32.xlu0 %v3099, 80
        %v3466 = vpop.permute.xlu0 %3465
        %3467 = vrot.lane.b32.xlu0 %v3101, 80
        %v3468 = vpop.permute.xlu0 %3467
        %3469 = vrot.lane.b32.xlu0 %v3104, 80
        %v3470 = vpop.permute.xlu0 %3469
        %3471 = vrot.lane.b32.xlu0 %v3106, 80
        %v3472 = vpop.permute.xlu0 %3471
        %3473 = vrot.lane.b32.xlu0 %v3109, 80
        %v3474 = vpop.permute.xlu0 %3473
        %3475 = vrot.lane.b32.xlu0 %v3111, 80
        %v3476 = vpop.permute.xlu0 %3475
        %3477 = vrot.lane.b32.xlu0 %v3114, 80
        %v3478 = vpop.permute.xlu0 %3477
        %3479 = vrot.lane.b32.xlu0 %v3116, 80
        %v3480 = vpop.permute.xlu0 %3479
        %3481 = vrot.lane.b32.xlu0 %v3119, 80
        %v3482 = vpop.permute.xlu0 %3481
        %3483 = vrot.lane.b32.xlu0 %v3121, 80
        %v3484 = vpop.permute.xlu0 %3483
        %3485 = vrot.lane.b32.xlu0 %v3124, 80
        %v3486 = vpop.permute.xlu0 %3485
        %3487 = vrot.lane.b32.xlu0 %v3126, 80
        %v3488 = vpop.permute.xlu0 %3487
        %3489 = vrot.lane.b32.xlu0 %v3129, 80
        %v3490 = vpop.permute.xlu0 %3489
        %3491 = vrot.lane.b32.xlu0 %v3131, 80
        %v3492 = vpop.permute.xlu0 %3491
        %3493 = vrot.lane.b32.xlu0 %v3134, 80
        %v3494 = vpop.permute.xlu0 %3493
        %3495 = vrot.lane.b32.xlu0 %v3136, 80
        %v3496 = vpop.permute.xlu0 %3495
        %3497 = vrot.lane.b32.xlu0 %v3434, 80
        %v3498 = vpop.permute.xlu0 %3497
        %3499 = vrot.lane.b32.xlu0 %v3436, 80
        %v3500 = vpop.permute.xlu0 %3499
        %3533 = vrot.lane.b32.xlu0 %v1336, 96
        %v3534 = vpop.permute.xlu0 %3533
        %3535 = vrot.lane.b32.xlu0 %v1242, 96
        %v3536 = vpop.permute.xlu0 %3535
        %3537 = vrot.lane.b32.xlu0 %v1337, 96
        %v3538 = vpop.permute.xlu0 %3537
        %3539 = vrot.lane.b32.xlu0 %v1245, 96
        %v3540 = vpop.permute.xlu0 %3539
        %3541 = vrot.lane.b32.xlu0 %v1338, 96
        %v3542 = vpop.permute.xlu0 %3541
        %3543 = vrot.lane.b32.xlu0 %v1248, 96
        %v3544 = vpop.permute.xlu0 %3543
        %3545 = vrot.lane.b32.xlu0 %v1339, 96
        %v3546 = vpop.permute.xlu0 %3545
        %3547 = vrot.lane.b32.xlu0 %v1251, 96
        %v3548 = vpop.permute.xlu0 %3547
        %3549 = vrot.lane.b32.xlu0 %v1340, 96
        %v3550 = vpop.permute.xlu0 %3549
        %3551 = vrot.lane.b32.xlu0 %v1254, 96
        %v3552 = vpop.permute.xlu0 %3551
        %3553 = vrot.lane.b32.xlu0 %v1341, 96
        %v3554 = vpop.permute.xlu0 %3553
        %3555 = vrot.lane.b32.xlu0 %v1257, 96
        %v3556 = vpop.permute.xlu0 %3555
        %3557 = vrot.lane.b32.xlu0 %v1342, 96
        %v3558 = vpop.permute.xlu0 %3557
        %3559 = vrot.lane.b32.xlu0 %v1260, 96
        %v3560 = vpop.permute.xlu0 %3559
        %3561 = vrot.lane.b32.xlu0 %v1343, 96
        %v3562 = vpop.permute.xlu0 %3561
        %3563 = vrot.lane.b32.xlu0 %v1263, 96
        %v3564 = vpop.permute.xlu0 %3563
        %3565 = vrot.lane.b32.xlu0 %v1344, 96
        %v3566 = vpop.permute.xlu0 %3565
        %3567 = vrot.lane.b32.xlu0 %v1266, 96
        %v3568 = vpop.permute.xlu0 %3567
        %3569 = vrot.lane.b32.xlu0 %v1345, 96
        %v3570 = vpop.permute.xlu0 %3569
        %3571 = vrot.lane.b32.xlu0 %v1269, 96
        %v3572 = vpop.permute.xlu0 %3571
        %3573 = vrot.lane.b32.xlu0 %v1346, 96
        %v3574 = vpop.permute.xlu0 %3573
        %3575 = vrot.lane.b32.xlu0 %v1272, 96
        %v3576 = vpop.permute.xlu0 %3575
        %3577 = vrot.lane.b32.xlu0 %v1347, 96
        %v3578 = vpop.permute.xlu0 %3577
        %3579 = vrot.lane.b32.xlu0 %v1275, 96
        %v3580 = vpop.permute.xlu0 %3579
        %3581 = vrot.lane.b32.xlu0 %v1348, 96
        %v3582 = vpop.permute.xlu0 %3581
        %3583 = vrot.lane.b32.xlu0 %v1278, 96
        %v3584 = vpop.permute.xlu0 %3583
        %3585 = vrot.lane.b32.xlu0 %v1349, 96
        %v3586 = vpop.permute.xlu0 %3585
        %3587 = vrot.lane.b32.xlu0 %v1281, 96
        %v3588 = vpop.permute.xlu0 %3587
        %3589 = vrot.lane.b32.xlu0 %v1350, 96
        %v3590 = vpop.permute.xlu0 %3589
        %3591 = vrot.lane.b32.xlu0 %v1284, 96
        %v3592 = vpop.permute.xlu0 %3591
        %3593 = vrot.lane.b32.xlu0 %v1334, 96
        %v3594 = vpop.permute.xlu0 %3593
        %3595 = vrot.lane.b32.xlu0 %v1236, 96
        %v3596 = vpop.permute.xlu0 %3595
        %3629 = vrot.lane.b32.xlu0 %v2893, 112
        %v3630 = vpop.permute.xlu0 %3629
        %3631 = vrot.lane.b32.xlu0 %v2895, 112
        %v3632 = vpop.permute.xlu0 %3631
        %3633 = vrot.lane.b32.xlu0 %v2898, 112
        %v3634 = vpop.permute.xlu0 %3633
        %3635 = vrot.lane.b32.xlu0 %v2900, 112
        %v3636 = vpop.permute.xlu0 %3635
        %3637 = vrot.lane.b32.xlu0 %v2903, 112
        %v3638 = vpop.permute.xlu0 %3637
        %3639 = vrot.lane.b32.xlu0 %v2905, 112
        %v3640 = vpop.permute.xlu0 %3639
        %3641 = vrot.lane.b32.xlu0 %v2908, 112
        %v3642 = vpop.permute.xlu0 %3641
        %3643 = vrot.lane.b32.xlu0 %v2910, 112
        %v3644 = vpop.permute.xlu0 %3643
        %3645 = vrot.lane.b32.xlu0 %v2913, 112
        %v3646 = vpop.permute.xlu0 %3645
        %3647 = vrot.lane.b32.xlu0 %v2915, 112
        %v3648 = vpop.permute.xlu0 %3647
        %3649 = vrot.lane.b32.xlu0 %v2918, 112
        %v3650 = vpop.permute.xlu0 %3649
        %3651 = vrot.lane.b32.xlu0 %v2920, 112
        %v3652 = vpop.permute.xlu0 %3651
        %3653 = vrot.lane.b32.xlu0 %v2923, 112
        %v3654 = vpop.permute.xlu0 %3653
        %3655 = vrot.lane.b32.xlu0 %v2925, 112
        %v3656 = vpop.permute.xlu0 %3655
        %3657 = vrot.lane.b32.xlu0 %v2928, 112
        %v3658 = vpop.permute.xlu0 %3657
        %3659 = vrot.lane.b32.xlu0 %v2930, 112
        %v3660 = vpop.permute.xlu0 %3659
        %3661 = vrot.lane.b32.xlu0 %v2933, 112
        %v3662 = vpop.permute.xlu0 %3661
        %3663 = vrot.lane.b32.xlu0 %v2935, 112
        %v3664 = vpop.permute.xlu0 %3663
        %3665 = vrot.lane.b32.xlu0 %v2938, 112
        %v3666 = vpop.permute.xlu0 %3665
        %3667 = vrot.lane.b32.xlu0 %v2940, 112
        %v3668 = vpop.permute.xlu0 %3667
        %3669 = vrot.lane.b32.xlu0 %v2943, 112
        %v3670 = vpop.permute.xlu0 %3669
        %3671 = vrot.lane.b32.xlu0 %v2945, 112
        %v3672 = vpop.permute.xlu0 %3671
        %3673 = vrot.lane.b32.xlu0 %v2948, 112
        %v3674 = vpop.permute.xlu0 %3673
        %3675 = vrot.lane.b32.xlu0 %v2950, 112
        %v3676 = vpop.permute.xlu0 %3675
        %3677 = vrot.lane.b32.xlu0 %v2953, 112
        %v3678 = vpop.permute.xlu0 %3677
        %3679 = vrot.lane.b32.xlu0 %v2955, 112
        %v3680 = vpop.permute.xlu0 %3679
        %3681 = vrot.lane.b32.xlu0 %v2958, 112
        %v3682 = vpop.permute.xlu0 %3681
        %3683 = vrot.lane.b32.xlu0 %v2960, 112
        %v3684 = vpop.permute.xlu0 %3683
        %3685 = vrot.lane.b32.xlu0 %v3333, 112
        %v3686 = vpop.permute.xlu0 %3685
        %3687 = vrot.lane.b32.xlu0 %v3335, 112
        %v3688 = vpop.permute.xlu0 %3687
        %3689 = vrot.lane.b32.xlu0 %v2883, 112
        %v3690 = vpop.permute.xlu0 %3689
        %3691 = vrot.lane.b32.xlu0 %v2885, 112
        %v3692 = vpop.permute.xlu0 %3691
        %v3757 = vsel %vm2266, %v1334, %v2962
        %v3758 = vsel %vm2266, %v1236, %v2964
        %v3759 = vsel %vm2266, %v1335, %v2966
        %v3760 = vsel %vm2266, %v1239, %v2968
        %v3761 = vsel %vm2266, %v1336, %v2970
        %v3762 = vsel %vm2266, %v1242, %v2972
        %v3763 = vsel %vm2266, %v1337, %v2974
        %v3764 = vsel %vm2266, %v1245, %v2976
        %v3765 = vsel %vm2266, %v1338, %v2978
        %v3766 = vsel %vm2266, %v1248, %v2980
        %v3767 = vsel %vm2266, %v1339, %v2982
        %v3768 = vsel %vm2266, %v1251, %v2984
        %v3769 = vsel %vm2266, %v1340, %v2986
        %v3770 = vsel %vm2266, %v1254, %v2988
        %v3771 = vsel %vm2266, %v1341, %v2990
        %v3772 = vsel %vm2266, %v1257, %v2992
        %v3773 = vsel %vm2266, %v1342, %v2994
        %v3774 = vsel %vm2266, %v1260, %v2996
        %v3775 = vsel %vm2266, %v1343, %v2998
        %v3776 = vsel %vm2266, %v1263, %v3000
        %v3777 = vsel %vm2266, %v1344, %v3002
        %v3778 = vsel %vm2266, %v1266, %v3004
        %v3779 = vsel %vm2266, %v1345, %v3006
        %v3780 = vsel %vm2266, %v1269, %v3008
        %v3781 = vsel %vm2266, %v1346, %v3010
        %v3782 = vsel %vm2266, %v1272, %v3012
        %v3783 = vsel %vm2266, %v1347, %v3014
        %v3784 = vsel %vm2266, %v1275, %v3016
        %v3785 = vsel %vm2266, %v1348, %v3018
        %v3786 = vsel %vm2266, %v1278, %v3020
        %v3787 = vsel %vm2266, %v1349, %v3022
        %v3788 = vsel %vm2266, %v1281, %v3024
        %v3789 = vsel %vm2299, %v3757, %v3138
        %v3790 = vsel %vm2299, %v3758, %v3140
        %v3791 = vsel %vm2299, %v3759, %v3142
        %v3792 = vsel %vm2299, %v3760, %v3144
        %v3793 = vsel %vm2299, %v3761, %v3146
        %v3794 = vsel %vm2299, %v3762, %v3148
        %v3795 = vsel %vm2299, %v3763, %v3150
        %v3796 = vsel %vm2299, %v3764, %v3152
        %v3797 = vsel %vm2299, %v3765, %v3154
        %v3798 = vsel %vm2299, %v3766, %v3156
        %v3799 = vsel %vm2299, %v3767, %v3158
        %v3800 = vsel %vm2299, %v3768, %v3160
        %v3801 = vsel %vm2299, %v3769, %v3162
        %v3802 = vsel %vm2299, %v3770, %v3164
        %v3803 = vsel %vm2299, %v3771, %v3166
        %v3804 = vsel %vm2299, %v3772, %v3168
        %v3805 = vsel %vm2299, %v3773, %v3170
        %v3806 = vsel %vm2299, %v3774, %v3172
        %v3807 = vsel %vm2299, %v3775, %v3174
        %v3808 = vsel %vm2299, %v3776, %v3176
        %v3809 = vsel %vm2299, %v3777, %v3178
        %v3810 = vsel %vm2299, %v3778, %v3180
        %v3811 = vsel %vm2299, %v3779, %v3182
        %v3812 = vsel %vm2299, %v3780, %v3184
        %v3813 = vsel %vm2299, %v3781, %v3186
        %v3814 = vsel %vm2299, %v3782, %v3188
        %v3815 = vsel %vm2299, %v3783, %v3190
        %v3816 = vsel %vm2299, %v3784, %v3192
        %v3817 = vsel %vm2299, %v3785, %v3194
        %v3818 = vsel %vm2299, %v3786, %v3196
        %v3819 = vsel %vm2299, %v3787, %v3198
        %v3820 = vsel %vm2299, %v3788, %v3200
        %v3821 = vsel %vm2332, %v3789, %v3235
        %v3822 = vsel %vm2332, %v3790, %v3237
        %v3823 = vsel %vm2332, %v3791, %v3239
        %v3824 = vsel %vm2332, %v3792, %v3241
        %v3825 = vsel %vm2332, %v3793, %v3243
        %v3826 = vsel %vm2332, %v3794, %v3245
        %v3827 = vsel %vm2332, %v3795, %v3247
        %v3828 = vsel %vm2332, %v3796, %v3249
        %v3829 = vsel %vm2332, %v3797, %v3251
        %v3830 = vsel %vm2332, %v3798, %v3253
        %v3831 = vsel %vm2332, %v3799, %v3255
        %v3832 = vsel %vm2332, %v3800, %v3257
        %v3833 = vsel %vm2332, %v3801, %v3259
        %v3834 = vsel %vm2332, %v3802, %v3261
        %v3835 = vsel %vm2332, %v3803, %v3263
        %v3836 = vsel %vm2332, %v3804, %v3265
        %v3837 = vsel %vm2332, %v3805, %v3267
        %v3838 = vsel %vm2332, %v3806, %v3269
        %v3839 = vsel %vm2332, %v3807, %v3271
        %v3840 = vsel %vm2332, %v3808, %v3273
        %v3841 = vsel %vm2332, %v3809, %v3275
        %v3842 = vsel %vm2332, %v3810, %v3277
        %v3843 = vsel %vm2332, %v3811, %v3279
        %v3844 = vsel %vm2332, %v3812, %v3281
        %v3845 = vsel %vm2332, %v3813, %v3283
        %v3846 = vsel %vm2332, %v3814, %v3285
        %v3847 = vsel %vm2332, %v3815, %v3287
        %v3848 = vsel %vm2332, %v3816, %v3289
        %v3849 = vsel %vm2332, %v3817, %v3291
        %v3850 = vsel %vm2332, %v3818, %v3293
        %v3851 = vsel %vm2332, %v3819, %v3295
        %v3852 = vsel %vm2332, %v3820, %v3297
        %v3853 = vsel %vm2365, %v3821, %v3337
        %v3854 = vsel %vm2365, %v3822, %v3339
        %v3855 = vsel %vm2365, %v3823, %v3341
        %v3856 = vsel %vm2365, %v3824, %v3343
        %v3857 = vsel %vm2365, %v3825, %v3345
        %v3858 = vsel %vm2365, %v3826, %v3347
        %v3859 = vsel %vm2365, %v3827, %v3349
        %v3860 = vsel %vm2365, %v3828, %v3351
        %v3861 = vsel %vm2365, %v3829, %v3353
        %v3862 = vsel %vm2365, %v3830, %v3355
        %v3863 = vsel %vm2365, %v3831, %v3357
        %v3864 = vsel %vm2365, %v3832, %v3359
        %v3865 = vsel %vm2365, %v3833, %v3361
        %v3866 = vsel %vm2365, %v3834, %v3363
        %v3867 = vsel %vm2365, %v3835, %v3365
        %v3868 = vsel %vm2365, %v3836, %v3367
        %v3869 = vsel %vm2365, %v3837, %v3369
        %v3870 = vsel %vm2365, %v3838, %v3371
        %v3871 = vsel %vm2365, %v3839, %v3373
        %v3872 = vsel %vm2365, %v3840, %v3375
        %v3873 = vsel %vm2365, %v3841, %v3377
        %v3874 = vsel %vm2365, %v3842, %v3379
        %v3875 = vsel %vm2365, %v3843, %v3381
        %v3876 = vsel %vm2365, %v3844, %v3383
        %v3877 = vsel %vm2365, %v3845, %v3385
        %v3878 = vsel %vm2365, %v3846, %v3387
        %v3879 = vsel %vm2365, %v3847, %v3389
        %v3880 = vsel %vm2365, %v3848, %v3391
        %v3881 = vsel %vm2365, %v3849, %v3393
        %v3882 = vsel %vm2365, %v3850, %v3395
        %v3883 = vsel %vm2365, %v3851, %v3397
        %v3884 = vsel %vm2365, %v3852, %v3399
        %v3885 = vsel %vm2398, %v3853, %v3438
        %v3886 = vsel %vm2398, %v3854, %v3440
        %v3887 = vsel %vm2398, %v3855, %v3442
        %v3888 = vsel %vm2398, %v3856, %v3444
        %v3889 = vsel %vm2398, %v3857, %v3446
        %v3890 = vsel %vm2398, %v3858, %v3448
        %v3891 = vsel %vm2398, %v3859, %v3450
        %v3892 = vsel %vm2398, %v3860, %v3452
        %v3893 = vsel %vm2398, %v3861, %v3454
        %v3894 = vsel %vm2398, %v3862, %v3456
        %v3895 = vsel %vm2398, %v3863, %v3458
        %v3896 = vsel %vm2398, %v3864, %v3460
        %v3897 = vsel %vm2398, %v3865, %v3462
        %v3898 = vsel %vm2398, %v3866, %v3464
        %v3899 = vsel %vm2398, %v3867, %v3466
        %v3900 = vsel %vm2398, %v3868, %v3468
        %v3901 = vsel %vm2398, %v3869, %v3470
        %v3902 = vsel %vm2398, %v3870, %v3472
        %v3903 = vsel %vm2398, %v3871, %v3474
        %v3904 = vsel %vm2398, %v3872, %v3476
        %v3905 = vsel %vm2398, %v3873, %v3478
        %v3906 = vsel %vm2398, %v3874, %v3480
        %v3907 = vsel %vm2398, %v3875, %v3482
        %v3908 = vsel %vm2398, %v3876, %v3484
        %v3909 = vsel %vm2398, %v3877, %v3486
        %v3910 = vsel %vm2398, %v3878, %v3488
        %v3911 = vsel %vm2398, %v3879, %v3490
        %v3912 = vsel %vm2398, %v3880, %v3492
        %v3913 = vsel %vm2398, %v3881, %v3494
        %v3914 = vsel %vm2398, %v3882, %v3496
        %v3915 = vsel %vm2398, %v3883, %v3498
        %v3916 = vsel %vm2398, %v3884, %v3500
        %v3917 = vsel %vm2431, %v3885, %v3534
        %v3918 = vsel %vm2431, %v3886, %v3536
        %v3919 = vsel %vm2431, %v3887, %v3538
        %v3920 = vsel %vm2431, %v3888, %v3540
        %v3921 = vsel %vm2431, %v3889, %v3542
        %v3922 = vsel %vm2431, %v3890, %v3544
        %v3923 = vsel %vm2431, %v3891, %v3546
        %v3924 = vsel %vm2431, %v3892, %v3548
        %v3925 = vsel %vm2431, %v3893, %v3550
        %v3926 = vsel %vm2431, %v3894, %v3552
        %v3927 = vsel %vm2431, %v3895, %v3554
        %v3928 = vsel %vm2431, %v3896, %v3556
        %v3929 = vsel %vm2431, %v3897, %v3558
        %v3930 = vsel %vm2431, %v3898, %v3560
        %v3931 = vsel %vm2431, %v3899, %v3562
        %v3932 = vsel %vm2431, %v3900, %v3564
        %v3933 = vsel %vm2431, %v3901, %v3566
        %v3934 = vsel %vm2431, %v3902, %v3568
        %v3935 = vsel %vm2431, %v3903, %v3570
        %v3936 = vsel %vm2431, %v3904, %v3572
        %v3937 = vsel %vm2431, %v3905, %v3574
        %v3938 = vsel %vm2431, %v3906, %v3576
        %v3939 = vsel %vm2431, %v3907, %v3578
        %v3940 = vsel %vm2431, %v3908, %v3580
        %v3941 = vsel %vm2431, %v3909, %v3582
        %v3942 = vsel %vm2431, %v3910, %v3584
        %v3943 = vsel %vm2431, %v3911, %v3586
        %v3944 = vsel %vm2431, %v3912, %v3588
        %v3945 = vsel %vm2431, %v3913, %v3590
        %v3946 = vsel %vm2431, %v3914, %v3592
        %v3947 = vsel %vm2431, %v3915, %v3594
        %v3948 = vsel %vm2431, %v3916, %v3596
        %v3949 = vsel %vm2464, %v3917, %v3630
        %v3950 = vsel %vm2464, %v3918, %v3632
        %v3951 = vsel %vm2464, %v3919, %v3634
        %v3952 = vsel %vm2464, %v3920, %v3636
        %v3953 = vsel %vm2464, %v3921, %v3638
        %v3954 = vsel %vm2464, %v3922, %v3640
        %v3955 = vsel %vm2464, %v3923, %v3642
        %v3956 = vsel %vm2464, %v3924, %v3644
        %v3957 = vsel %vm2464, %v3925, %v3646
        %v3958 = vsel %vm2464, %v3926, %v3648
        %v3959 = vsel %vm2464, %v3927, %v3650
        %v3960 = vsel %vm2464, %v3928, %v3652
        %v3961 = vsel %vm2464, %v3929, %v3654
        %v3962 = vsel %vm2464, %v3930, %v3656
        %v3963 = vsel %vm2464, %v3931, %v3658
        %v3964 = vsel %vm2464, %v3932, %v3660
        %v3965 = vsel %vm2464, %v3933, %v3662
        %v3966 = vsel %vm2464, %v3934, %v3664
        %v3967 = vsel %vm2464, %v3935, %v3666
        %v3968 = vsel %vm2464, %v3936, %v3668
        %v3969 = vsel %vm2464, %v3937, %v3670
        %v3970 = vsel %vm2464, %v3938, %v3672
        %v3971 = vsel %vm2464, %v3939, %v3674
        %v3972 = vsel %vm2464, %v3940, %v3676
        %v3973 = vsel %vm2464, %v3941, %v3678
        %v3974 = vsel %vm2464, %v3942, %v3680
        %v3975 = vsel %vm2464, %v3943, %v3682
        %v3976 = vsel %vm2464, %v3944, %v3684
        %v3977 = vsel %vm2464, %v3945, %v3686
        %v3978 = vsel %vm2464, %v3946, %v3688
        %v3979 = vsel %vm2464, %v3947, %v3690
        %v3980 = vsel %vm2464, %v3948, %v3692
        %v3981 = vpack.c.bf16 %v3950, %v3949
        %v3982 = vpack.c.bf16 %v3071, %v3069
        %v3983 = vpack.c.bf16 %v3952, %v3951
        %v3984 = vpack.c.bf16 %v3076, %v3074
        %v3985 = vpack.c.bf16 %v3954, %v3953
        %v3986 = vpack.c.bf16 %v3081, %v3079
        %v3987 = vpack.c.bf16 %v3956, %v3955
        %v3988 = vpack.c.bf16 %v3086, %v3084
        %v3989 = vpack.c.bf16 %v3958, %v3957
        %v3990 = vpack.c.bf16 %v3091, %v3089
        %v3991 = vpack.c.bf16 %v3960, %v3959
        %v3992 = vpack.c.bf16 %v3096, %v3094
        %v3993 = vpack.c.bf16 %v3962, %v3961
        %v3994 = vpack.c.bf16 %v3101, %v3099
        %v3995 = vpack.c.bf16 %v3964, %v3963
        %v3996 = vpack.c.bf16 %v3106, %v3104
        %v3997 = vpack.c.bf16 %v3966, %v3965
        %v3998 = vpack.c.bf16 %v3111, %v3109
        %v3999 = vpack.c.bf16 %v3968, %v3967
        %v4000 = vpack.c.bf16 %v3116, %v3114
        %v4001 = vpack.c.bf16 %v3970, %v3969
        %v4002 = vpack.c.bf16 %v3121, %v3119
        %v4003 = vpack.c.bf16 %v3972, %v3971
        %v4004 = vpack.c.bf16 %v3126, %v3124
        %v4005 = vpack.c.bf16 %v3974, %v3973
        %v4006 = vpack.c.bf16 %v3131, %v3129
        %v4007 = vpack.c.bf16 %v3976, %v3975
        %v4008 = vpack.c.bf16 %v3136, %v3134
        %v4009 = vpack.c.bf16 %v3978, %v3977
        %v4010 = vpack.c.bf16 %v3436, %v3434
        %v4011 = vpack.c.bf16 %v3980, %v3979
        %v4012 = vpack.c.bf16 %v3061, %v3059
        %v4013 = vld [vmem:[%s7] sm:$0xf]
        %v4014 = vld [vmem:[%s7 + $0x4] sm:$0xf]
        %v4015 = vld [vmem:[%s7 + $0x8] sm:$0xf]
        %v4016 = vld [vmem:[%s7 + $0xc] sm:$0xf]
        %v4017 = vld [vmem:[%s7 + $0x10] sm:$0xf]
        %v4018 = vld [vmem:[%s7 + $0x14] sm:$0xf]
        %v4019 = vld [vmem:[%s7 + $0x18] sm:$0xf]
        %v4020 = vld [vmem:[%s7 + $0x1c] sm:$0xf]
        %v4021 = vld [vmem:[%s7 + $0x20] sm:$0xf]
        %v4022 = vld [vmem:[%s7 + $0x24] sm:$0xf]
        %v4023 = vld [vmem:[%s7 + $0x28] sm:$0xf]
        %v4024 = vld [vmem:[%s7 + $0x2c] sm:$0xf]
        %v4025 = vld [vmem:[%s7 + $0x30] sm:$0xf]
        %v4026 = vld [vmem:[%s7 + $0x34] sm:$0xf]
        %v4027 = vld [vmem:[%s7 + $0x38] sm:$0xf]
        %v4028 = vld [vmem:[%s7 + $0x3c] sm:$0xf]
        %v4029 = vld [vmem:[%s7 + $0x40] sm:$0xf]
        %v4030 = vld [vmem:[%s7 + $0x44] sm:$0xf]
        %v4031 = vld [vmem:[%s8] sm:$0x1]
        %v4033 = vlaneseq
        %v4034 = vshrl.u32 %v4033, 7
        %v4035 = vsub.s32 0, %v4034
        %v4036 = vrot.slane %v4031, %v4035
        %v4056 = vunpack.c.l.b16 %v4013
        %v4057 = vunpack.c.l.b16 %v4014
        %v4058 = vunpack.c.l.b16 %v4015
        %v4059 = vunpack.c.l.b16 %v4016
        %v4060 = vunpack.c.l.b16 %v4017
        %v4061 = vunpack.c.l.b16 %v4018
        %v4062 = vunpack.c.l.b16 %v4019
        %v4063 = vunpack.c.l.b16 %v4020
        %v4064 = vunpack.c.l.b16 %v4021
        %v4065 = vunpack.c.l.b16 %v4022
        %v4066 = vunpack.c.l.b16 %v4023
        %v4067 = vunpack.c.l.b16 %v4024
        %v4068 = vunpack.c.l.b16 %v4025
        %v4069 = vunpack.c.l.b16 %v4026
        %v4070 = vunpack.c.l.b16 %v4027
        %v4071 = vunpack.c.l.b16 %v4028
        %v4072 = vunpack.c.l.b16 %v4029
        %v4073 = vunpack.c.l.b16 %v4030
        %v4074 = vpack.c.b16 %v4057, %v4056
        %v4075 = vpack.c.b16 %v4059, %v4058
        %v4076 = vpack.c.b16 %v4061, %v4060
        %v4077 = vpack.c.b16 %v4063, %v4062
        %v4078 = vpack.c.b16 %v4065, %v4064
        %v4079 = vpack.c.b16 %v4067, %v4066
        %v4080 = vpack.c.b16 %v4069, %v4068
        %v4081 = vpack.c.b16 %v4071, %v4070
        %v4082 = vpack.c.b16 %v4073, %v4072
        %v4093 = vsel %vm2266, %v3982, 0
        %v4096 = vsel %vm2266, %v3984, 0
        %v4099 = vsel %vm2266, %v3986, 0
        %v4102 = vsel %vm2266, %v3988, 0
        %v4105 = vsel %vm2266, %v3990, 0
        %v4108 = vsel %vm2266, %v3992, 0
        %v4111 = vsel %vm2266, %v3994, 0
        %v4114 = vsel %vm2266, %v3996, 0
        %v4117 = vsel %vm2266, %v3998, 0
        %v4120 = vsel %vm2266, %v4000, 0
        %v4123 = vsel %vm2266, %v4002, 0
        %v4126 = vsel %vm2266, %v4004, 0
        %v4129 = vsel %vm2266, %v4006, 0
        %v4132 = vsel %vm2266, %v4008, 0
        %v4135 = vsel %vm2266, %v4010, 0
        %v4138 = vsel %vm2266, %v4012, 0
        %4140 = vmatprep.subr.bf16.mxu0 0
        %4141 = vmatpush1.bf16.msra.mxu0 %v4081
        %4142 = vmatprep.subr.bf16.mxu0 0
        %4143 = vmatpush1.bf16.msra.mxu0 %v4080
        %4144 = vmatprep.subr.bf16.mxu0 0
        %4145 = vmatpush1.bf16.msra.mxu0 %v4079
        %4146 = vmatprep.subr.bf16.mxu0 0
        %4147 = vmatpush1.bf16.msra.mxu0 %v4078
        %4148 = vmatprep.subr.bf16.mxu0 0
        %4149 = vmatpush1.bf16.msra.mxu0 %v4077
        %4150 = vmatprep.subr.bf16.mxu0 0
        %4151 = vmatpush1.bf16.msra.mxu0 %v4076
        %4152 = vmatprep.subr.bf16.mxu0 0
        %4153 = vmatpush1.bf16.msra.mxu0 %v4075
        %4154 = vmatprep.subr.bf16.mxu0 0
        %4155 = vmatpush1.bf16.msra.mxu0 %v4074
        %4156 = vmatprep.subr.bf16.mxu0 0
        %4157 = vmatpush2.bf16.msra.mxu0 0
        %4158 = vmatprep.subr.bf16.mxu0 0
        %4159 = vmatpush2.bf16.msra.mxu0 0
        %4160 = vmatprep.subr.bf16.mxu0 0
        %4161 = vmatpush2.bf16.msra.mxu0 0
        %4162 = vmatprep.subr.bf16.mxu0 0
        %4163 = vmatpush2.bf16.msra.mxu0 0
        %4164 = vmatprep.subr.bf16.mxu0 0
        %4165 = vmatpush2.bf16.msra.mxu0 0
        %4166 = vmatprep.subr.bf16.mxu0 0
        %4167 = vmatpush2.bf16.msra.mxu0 0
        %4168 = vmatprep.subr.bf16.mxu0 0
        %4169 = vmatpush2.bf16.msra.mxu0 0
        %4170 = vmatprep.subr.bf16.mxu0 0
        %4171 = vmatpush2.bf16.msra.mxu0 %v4082
        %4172 = vmatprep.mubr.bf16.mxu0 %v4093
        %4173 = vmatmul.mubr.bf16.gmra.mxu0 %v3981
        %v4174 = vpop.f32.mrf.mxu0
        %v4175 = vadd.f32 %v4036, %v4174
        %v4176 = vpop.f32.mrf.mxu0
        %v4177 = vpop.f32.mrf.mxu0
        %v4178 = vadd.f32 %v4036, %v4177
        %v4179 = vpop.f32.mrf.mxu0
        %4180 = vmatprep.mubr.bf16.mxu0 %v4096
        %4181 = vmatmul.mubr.bf16.gmra.mxu0 %v3983
        %v4182 = vpop.f32.mrf.mxu0
        %v4183 = vadd.f32 %v4036, %v4182
        %v4184 = vpop.f32.mrf.mxu0
        %v4185 = vpop.f32.mrf.mxu0
        %v4186 = vadd.f32 %v4036, %v4185
        %v4187 = vpop.f32.mrf.mxu0
        %4188 = vmatprep.mubr.bf16.mxu0 %v4099
        %4189 = vmatmul.mubr.bf16.gmra.mxu0 %v3985
        %v4190 = vpop.f32.mrf.mxu0
        %v4191 = vadd.f32 %v4036, %v4190
        %v4192 = vpop.f32.mrf.mxu0
        %v4193 = vpop.f32.mrf.mxu0
        %v4194 = vadd.f32 %v4036, %v4193
        %v4195 = vpop.f32.mrf.mxu0
        %4196 = vmatprep.mubr.bf16.mxu0 %v4102
        %4197 = vmatmul.mubr.bf16.gmra.mxu0 %v3987
        %v4198 = vpop.f32.mrf.mxu0
        %v4199 = vadd.f32 %v4036, %v4198
        %v4200 = vpop.f32.mrf.mxu0
        %v4201 = vpop.f32.mrf.mxu0
        %v4202 = vadd.f32 %v4036, %v4201
        %v4203 = vpop.f32.mrf.mxu0
        %4204 = vmatprep.mubr.bf16.mxu0 %v4105
        %4205 = vmatmul.mubr.bf16.gmra.mxu0 %v3989
        %v4206 = vpop.f32.mrf.mxu0
        %v4207 = vadd.f32 %v4036, %v4206
        %v4208 = vpop.f32.mrf.mxu0
        %v4209 = vpop.f32.mrf.mxu0
        %v4210 = vadd.f32 %v4036, %v4209
        %v4211 = vpop.f32.mrf.mxu0
        %4212 = vmatprep.mubr.bf16.mxu0 %v4108
        %4213 = vmatmul.mubr.bf16.gmra.mxu0 %v3991
        %v4214 = vpop.f32.mrf.mxu0
        %v4215 = vadd.f32 %v4036, %v4214
        %v4216 = vpop.f32.mrf.mxu0
        %v4217 = vpop.f32.mrf.mxu0
        %v4218 = vadd.f32 %v4036, %v4217
        %v4219 = vpop.f32.mrf.mxu0
        %4220 = vmatprep.mubr.bf16.mxu0 %v4111
        %4221 = vmatmul.mubr.bf16.gmra.mxu0 %v3993
        %v4222 = vpop.f32.mrf.mxu0
        %v4223 = vadd.f32 %v4036, %v4222
        %v4224 = vpop.f32.mrf.mxu0
        %v4225 = vpop.f32.mrf.mxu0
        %v4226 = vadd.f32 %v4036, %v4225
        %v4227 = vpop.f32.mrf.mxu0
        %4228 = vmatprep.mubr.bf16.mxu0 %v4114
        %4229 = vmatmul.mubr.bf16.gmra.mxu0 %v3995
        %v4230 = vpop.f32.mrf.mxu0
        %v4231 = vadd.f32 %v4036, %v4230
        %v4232 = vpop.f32.mrf.mxu0
        %v4233 = vpop.f32.mrf.mxu0
        %v4234 = vadd.f32 %v4036, %v4233
        %v4235 = vpop.f32.mrf.mxu0
        %4236 = vmatprep.mubr.bf16.mxu0 %v4117
        %4237 = vmatmul.mubr.bf16.gmra.mxu0 %v3997
        %v4238 = vpop.f32.mrf.mxu0
        %v4239 = vadd.f32 %v4036, %v4238
        %v4240 = vpop.f32.mrf.mxu0
        %v4241 = vpop.f32.mrf.mxu0
        %v4242 = vadd.f32 %v4036, %v4241
        %v4243 = vpop.f32.mrf.mxu0
        %4244 = vmatprep.mubr.bf16.mxu0 %v4120
        %4245 = vmatmul.mubr.bf16.gmra.mxu0 %v3999
        %v4246 = vpop.f32.mrf.mxu0
        %v4247 = vadd.f32 %v4036, %v4246
        %v4248 = vpop.f32.mrf.mxu0
        %v4249 = vpop.f32.mrf.mxu0
        %v4250 = vadd.f32 %v4036, %v4249
        %v4251 = vpop.f32.mrf.mxu0
        %4252 = vmatprep.mubr.bf16.mxu0 %v4123
        %4253 = vmatmul.mubr.bf16.gmra.mxu0 %v4001
        %v4254 = vpop.f32.mrf.mxu0
        %v4255 = vadd.f32 %v4036, %v4254
        %v4256 = vpop.f32.mrf.mxu0
        %v4257 = vpop.f32.mrf.mxu0
        %v4258 = vadd.f32 %v4036, %v4257
        %v4259 = vpop.f32.mrf.mxu0
        %4260 = vmatprep.mubr.bf16.mxu0 %v4126
        %4261 = vmatmul.mubr.bf16.gmra.mxu0 %v4003
        %v4262 = vpop.f32.mrf.mxu0
        %v4263 = vadd.f32 %v4036, %v4262
        %v4264 = vpop.f32.mrf.mxu0
        %v4265 = vpop.f32.mrf.mxu0
        %v4266 = vadd.f32 %v4036, %v4265
        %v4267 = vpop.f32.mrf.mxu0
        %4268 = vmatprep.mubr.bf16.mxu0 %v4129
        %4269 = vmatmul.mubr.bf16.gmra.mxu0 %v4005
        %v4270 = vpop.f32.mrf.mxu0
        %v4271 = vadd.f32 %v4036, %v4270
        %v4272 = vpop.f32.mrf.mxu0
        %v4273 = vpop.f32.mrf.mxu0
        %v4274 = vadd.f32 %v4036, %v4273
        %v4275 = vpop.f32.mrf.mxu0
        %4276 = vmatprep.mubr.bf16.mxu0 %v4132
        %4277 = vmatmul.mubr.bf16.gmra.mxu0 %v4007
        %v4278 = vpop.f32.mrf.mxu0
        %v4279 = vadd.f32 %v4036, %v4278
        %v4280 = vpop.f32.mrf.mxu0
        %v4281 = vpop.f32.mrf.mxu0
        %v4282 = vadd.f32 %v4036, %v4281
        %v4283 = vpop.f32.mrf.mxu0
        %4284 = vmatprep.mubr.bf16.mxu0 %v4135
        %4285 = vmatmul.mubr.bf16.gmra.mxu0 %v4009
        %v4286 = vpop.f32.mrf.mxu0
        %v4287 = vadd.f32 %v4036, %v4286
        %v4288 = vpop.f32.mrf.mxu0
        %v4289 = vpop.f32.mrf.mxu0
        %v4290 = vadd.f32 %v4036, %v4289
        %v4291 = vpop.f32.mrf.mxu0
        %4292 = vmatprep.mubr.bf16.mxu0 %v4138
        %4293 = vmatmul.mubr.bf16.gmra.mxu0 %v4011
        %v4294 = vpop.f32.mrf.mxu0
        %v4295 = vadd.f32 %v4036, %v4294
        %v4296 = vpop.f32.mrf.mxu0
        %v4297 = vpop.f32.mrf.mxu0
        %v4298 = vadd.f32 %v4036, %v4297
        %v4299 = vpop.f32.mrf.mxu0
        %4300 = vdwg.mxu0
        %v4301 = vmax.f32 %v4175, 0.0
        %v4302 = vmax.f32 %v4178, 0.0
        %v4303 = vmax.f32 %v4183, 0.0
        %v4304 = vmax.f32 %v4186, 0.0
        %v4305 = vmax.f32 %v4191, 0.0
        %v4306 = vmax.f32 %v4194, 0.0
        %v4307 = vmax.f32 %v4199, 0.0
        %v4308 = vmax.f32 %v4202, 0.0
        %v4309 = vmax.f32 %v4207, 0.0
        %v4310 = vmax.f32 %v4210, 0.0
        %v4311 = vmax.f32 %v4215, 0.0
        %v4312 = vmax.f32 %v4218, 0.0
        %v4313 = vmax.f32 %v4223, 0.0
        %v4314 = vmax.f32 %v4226, 0.0
        %v4315 = vmax.f32 %v4231, 0.0
        %v4316 = vmax.f32 %v4234, 0.0
        %v4317 = vmax.f32 %v4239, 0.0
        %v4318 = vmax.f32 %v4242, 0.0
        %v4319 = vmax.f32 %v4247, 0.0
        %v4320 = vmax.f32 %v4250, 0.0
        %v4321 = vmax.f32 %v4255, 0.0
        %v4322 = vmax.f32 %v4258, 0.0
        %v4323 = vmax.f32 %v4263, 0.0
        %v4324 = vmax.f32 %v4266, 0.0
        %v4325 = vmax.f32 %v4271, 0.0
        %v4326 = vmax.f32 %v4274, 0.0
        %v4327 = vmax.f32 %v4279, 0.0
        %v4328 = vmax.f32 %v4282, 0.0
        %v4329 = vmax.f32 %v4287, 0.0
        %v4330 = vmax.f32 %v4290, 0.0
        %v4331 = vmax.f32 %v4295, 0.0
        %v4332 = vmax.f32 %v4298, 0.0
        %v4333 = vpack.c.bf16 %v2818, %v2817
        %v4334 = vpack.c.bf16 %v2820, %v2819
        %v4335 = vpack.c.bf16 %v2822, %v2821
        %v4336 = vpack.c.bf16 %v2824, %v2823
        %v4337 = vpack.c.bf16 %v2826, %v2825
        %v4338 = vpack.c.bf16 %v2828, %v2827
        %v4339 = vpack.c.bf16 %v2830, %v2829
        %v4340 = vpack.c.bf16 %v2832, %v2831
        %v4341 = vpack.c.bf16 %v2834, %v2833
        %v4342 = vpack.c.bf16 %v2836, %v2835
        %v4343 = vpack.c.bf16 %v2838, %v2837
        %v4344 = vpack.c.bf16 %v2840, %v2839
        %v4345 = vpack.c.bf16 %v2842, %v2841
        %v4346 = vpack.c.bf16 %v2844, %v2843
        %v4347 = vpack.c.bf16 %v2846, %v2845
        %v4348 = vpack.c.bf16 %v2848, %v2847
        %v4349 = vld [vmem:[%s9] sm:$0xf]
        %v4350 = vld [vmem:[%s9 + $0x4] sm:$0xf]
        %v4351 = vpack.c.bf16 %v4302, %v4301
        %v4352 = vpack.c.bf16 %v4304, %v4303
        %v4353 = vpack.c.bf16 %v4306, %v4305
        %v4354 = vpack.c.bf16 %v4308, %v4307
        %v4355 = vpack.c.bf16 %v4310, %v4309
        %v4356 = vpack.c.bf16 %v4312, %v4311
        %v4357 = vpack.c.bf16 %v4314, %v4313
        %v4358 = vpack.c.bf16 %v4316, %v4315
        %v4359 = vpack.c.bf16 %v4318, %v4317
        %v4360 = vpack.c.bf16 %v4320, %v4319
        %v4361 = vpack.c.bf16 %v4322, %v4321
        %v4362 = vpack.c.bf16 %v4324, %v4323
        %v4363 = vpack.c.bf16 %v4326, %v4325
        %v4364 = vpack.c.bf16 %v4328, %v4327
        %v4365 = vpack.c.bf16 %v4330, %v4329
        %v4366 = vpack.c.bf16 %v4332, %v4331
        %v4367 = vld [vmem:[%s10] sm:$0xf]
        %v4368 = vld [vmem:[%s10 + $0x4] sm:$0xf]
        %v4371 = vunpack.c.l.b16 %v4367
        %v4372 = vunpack.c.l.b16 %v4368
        %v4373 = vpack.c.b16 %v4372, %v4371
        %v4376 = vsel %vm2266, %v4351, 0
        %v4379 = vsel %vm2266, %v4352, 0
        %v4382 = vsel %vm2266, %v4353, 0
        %v4385 = vsel %vm2266, %v4354, 0
        %v4388 = vsel %vm2266, %v4355, 0
        %v4391 = vsel %vm2266, %v4356, 0
        %v4394 = vsel %vm2266, %v4357, 0
        %v4397 = vsel %vm2266, %v4358, 0
        %v4400 = vsel %vm2266, %v4359, 0
        %v4403 = vsel %vm2266, %v4360, 0
        %v4406 = vsel %vm2266, %v4361, 0
        %v4409 = vsel %vm2266, %v4362, 0
        %v4412 = vsel %vm2266, %v4363, 0
        %v4415 = vsel %vm2266, %v4364, 0
        %v4418 = vsel %vm2266, %v4365, 0
        %v4421 = vsel %vm2266, %v4366, 0
        %4423 = vmatprep.subr.bf16.mxu0 0
        %4424 = vmatpush1.bf16.msra.mxu0 0
        %4425 = vmatprep.subr.bf16.mxu0 0
        %4426 = vmatpush1.bf16.msra.mxu0 0
        %4427 = vmatprep.subr.bf16.mxu0 0
        %4428 = vmatpush1.bf16.msra.mxu0 0
        %4429 = vmatprep.subr.bf16.mxu0 0
        %4430 = vmatpush1.bf16.msra.mxu0 0
        %4431 = vmatprep.subr.bf16.mxu0 0
        %4432 = vmatpush1.bf16.msra.mxu0 0
        %4433 = vmatprep.subr.bf16.mxu0 0
        %4434 = vmatpush1.bf16.msra.mxu0 0
        %4435 = vmatprep.subr.bf16.mxu0 0
        %4436 = vmatpush1.bf16.msra.mxu0 0
        %4437 = vmatprep.subr.bf16.mxu0 0
        %4438 = vmatpush1.bf16.msra.mxu0 %v4373
        %4439 = vmatprep.subr.bf16.mxu0 0
        %4440 = vmatpush2.bf16.msra.mxu0 0
        %4441 = vmatprep.subr.bf16.mxu0 0
        %4442 = vmatpush2.bf16.msra.mxu0 0
        %4443 = vmatprep.subr.bf16.mxu0 0
        %4444 = vmatpush2.bf16.msra.mxu0 0
        %4445 = vmatprep.subr.bf16.mxu0 0
        %4446 = vmatpush2.bf16.msra.mxu0 0
        %4447 = vmatprep.subr.bf16.mxu0 0
        %4448 = vmatpush2.bf16.msra.mxu0 0
        %4449 = vmatprep.subr.bf16.mxu0 0
        %4450 = vmatpush2.bf16.msra.mxu0 0
        %4451 = vmatprep.subr.bf16.mxu0 0
        %4452 = vmatpush2.bf16.msra.mxu0 0
        %4453 = vmatprep.subr.bf16.mxu0 0
        %4454 = vmatpush2.bf16.msra.mxu0 0
        %4455 = vmatprep.mubr.bf16.mxu0 0
        %4456 = vmatmul.mubr.bf16.gmra.mxu0 %v4376
        %v4457 = vpop.f32.mrf.mxu0
        %v4458 = vadd.f32 0.0, %v4457
        %v4459 = vpop.f32.mrf.mxu0
        %v4460 = vpop.f32.mrf.mxu0
        %v4461 = vadd.f32 0.0, %v4460
        %v4462 = vpop.f32.mrf.mxu0
        %4463 = vmatprep.mubr.bf16.mxu0 0
        %4464 = vmatmul.mubr.bf16.gmra.mxu0 %v4379
        %v4465 = vpop.f32.mrf.mxu0
        %v4466 = vadd.f32 0.0, %v4465
        %v4467 = vpop.f32.mrf.mxu0
        %v4468 = vpop.f32.mrf.mxu0
        %v4469 = vadd.f32 0.0, %v4468
        %v4470 = vpop.f32.mrf.mxu0
        %4471 = vmatprep.mubr.bf16.mxu0 0
        %4472 = vmatmul.mubr.bf16.gmra.mxu0 %v4382
        %v4473 = vpop.f32.mrf.mxu0
        %v4474 = vadd.f32 0.0, %v4473
        %v4475 = vpop.f32.mrf.mxu0
        %v4476 = vpop.f32.mrf.mxu0
        %v4477 = vadd.f32 0.0, %v4476
        %v4478 = vpop.f32.mrf.mxu0
        %4479 = vmatprep.mubr.bf16.mxu0 0
        %4480 = vmatmul.mubr.bf16.gmra.mxu0 %v4385
        %v4481 = vpop.f32.mrf.mxu0
        %v4482 = vadd.f32 0.0, %v4481
        %v4483 = vpop.f32.mrf.mxu0
        %v4484 = vpop.f32.mrf.mxu0
        %v4485 = vadd.f32 0.0, %v4484
        %v4486 = vpop.f32.mrf.mxu0
        %4487 = vmatprep.mubr.bf16.mxu0 0
        %4488 = vmatmul.mubr.bf16.gmra.mxu0 %v4388
        %v4489 = vpop.f32.mrf.mxu0
        %v4490 = vadd.f32 0.0, %v4489
        %v4491 = vpop.f32.mrf.mxu0
        %v4492 = vpop.f32.mrf.mxu0
        %v4493 = vadd.f32 0.0, %v4492
        %v4494 = vpop.f32.mrf.mxu0
        %4495 = vmatprep.mubr.bf16.mxu0 0
        %4496 = vmatmul.mubr.bf16.gmra.mxu0 %v4391
        %v4497 = vpop.f32.mrf.mxu0
        %v4498 = vadd.f32 0.0, %v4497
        %v4499 = vpop.f32.mrf.mxu0
        %v4500 = vpop.f32.mrf.mxu0
        %v4501 = vadd.f32 0.0, %v4500
        %v4502 = vpop.f32.mrf.mxu0
        %4503 = vmatprep.mubr.bf16.mxu0 0
        %4504 = vmatmul.mubr.bf16.gmra.mxu0 %v4394
        %v4505 = vpop.f32.mrf.mxu0
        %v4506 = vadd.f32 0.0, %v4505
        %v4507 = vpop.f32.mrf.mxu0
        %v4508 = vpop.f32.mrf.mxu0
        %v4509 = vadd.f32 0.0, %v4508
        %v4510 = vpop.f32.mrf.mxu0
        %4511 = vmatprep.mubr.bf16.mxu0 0
        %4512 = vmatmul.mubr.bf16.gmra.mxu0 %v4397
        %v4513 = vpop.f32.mrf.mxu0
        %v4514 = vadd.f32 0.0, %v4513
        %v4515 = vpop.f32.mrf.mxu0
        %v4516 = vpop.f32.mrf.mxu0
        %v4517 = vadd.f32 0.0, %v4516
        %v4518 = vpop.f32.mrf.mxu0
        %4519 = vmatprep.mubr.bf16.mxu0 0
        %4520 = vmatmul.mubr.bf16.gmra.mxu0 %v4400
        %v4521 = vpop.f32.mrf.mxu0
        %v4522 = vadd.f32 0.0, %v4521
        %v4523 = vpop.f32.mrf.mxu0
        %v4524 = vpop.f32.mrf.mxu0
        %v4525 = vadd.f32 0.0, %v4524
        %v4526 = vpop.f32.mrf.mxu0
        %4527 = vmatprep.mubr.bf16.mxu0 0
        %4528 = vmatmul.mubr.bf16.gmra.mxu0 %v4403
        %v4529 = vpop.f32.mrf.mxu0
        %v4530 = vadd.f32 0.0, %v4529
        %v4531 = vpop.f32.mrf.mxu0
        %v4532 = vpop.f32.mrf.mxu0
        %v4533 = vadd.f32 0.0, %v4532
        %v4534 = vpop.f32.mrf.mxu0
        %4535 = vmatprep.mubr.bf16.mxu0 0
        %4536 = vmatmul.mubr.bf16.gmra.mxu0 %v4406
        %v4537 = vpop.f32.mrf.mxu0
        %v4538 = vadd.f32 0.0, %v4537
        %v4539 = vpop.f32.mrf.mxu0
        %v4540 = vpop.f32.mrf.mxu0
        %v4541 = vadd.f32 0.0, %v4540
        %v4542 = vpop.f32.mrf.mxu0
        %4543 = vmatprep.mubr.bf16.mxu0 0
        %4544 = vmatmul.mubr.bf16.gmra.mxu0 %v4409
        %v4545 = vpop.f32.mrf.mxu0
        %v4546 = vadd.f32 0.0, %v4545
        %v4547 = vpop.f32.mrf.mxu0
        %v4548 = vpop.f32.mrf.mxu0
        %v4549 = vadd.f32 0.0, %v4548
        %v4550 = vpop.f32.mrf.mxu0
        %4551 = vmatprep.mubr.bf16.mxu0 0
        %4552 = vmatmul.mubr.bf16.gmra.mxu0 %v4412
        %v4553 = vpop.f32.mrf.mxu0
        %v4554 = vadd.f32 0.0, %v4553
        %v4555 = vpop.f32.mrf.mxu0
        %v4556 = vpop.f32.mrf.mxu0
        %v4557 = vadd.f32 0.0, %v4556
        %v4558 = vpop.f32.mrf.mxu0
        %4559 = vmatprep.mubr.bf16.mxu0 0
        %4560 = vmatmul.mubr.bf16.gmra.mxu0 %v4415
        %v4561 = vpop.f32.mrf.mxu0
        %v4562 = vadd.f32 0.0, %v4561
        %v4563 = vpop.f32.mrf.mxu0
        %v4564 = vpop.f32.mrf.mxu0
        %v4565 = vadd.f32 0.0, %v4564
        %v4566 = vpop.f32.mrf.mxu0
        %4567 = vmatprep.mubr.bf16.mxu0 0
        %4568 = vmatmul.mubr.bf16.gmra.mxu0 %v4418
        %v4569 = vpop.f32.mrf.mxu0
        %v4570 = vadd.f32 0.0, %v4569
        %v4571 = vpop.f32.mrf.mxu0
        %v4572 = vpop.f32.mrf.mxu0
        %v4573 = vadd.f32 0.0, %v4572
        %v4574 = vpop.f32.mrf.mxu0
        %4575 = vmatprep.mubr.bf16.mxu0 0
        %4576 = vmatmul.mubr.bf16.gmra.mxu0 %v4421
        %v4577 = vpop.f32.mrf.mxu0
        %v4578 = vadd.f32 0.0, %v4577
        %v4579 = vpop.f32.mrf.mxu0
        %v4580 = vpop.f32.mrf.mxu0
        %v4581 = vadd.f32 0.0, %v4580
        %v4582 = vpop.f32.mrf.mxu0
        %4583 = vdwg.mxu0
        %v4586 = vunpack.c.l.b16 %v4349
        %v4587 = vunpack.c.l.b16 %v4350
        %v4588 = vpack.c.b16 %v4587, %v4586
        %v4591 = vsel %vm2266, %v4333, 0
        %v4594 = vsel %vm2266, %v4334, 0
        %v4597 = vsel %vm2266, %v4335, 0
        %v4600 = vsel %vm2266, %v4336, 0
        %v4603 = vsel %vm2266, %v4337, 0
        %v4606 = vsel %vm2266, %v4338, 0
        %v4609 = vsel %vm2266, %v4339, 0
        %v4612 = vsel %vm2266, %v4340, 0
        %v4615 = vsel %vm2266, %v4341, 0
        %v4618 = vsel %vm2266, %v4342, 0
        %v4621 = vsel %vm2266, %v4343, 0
        %v4624 = vsel %vm2266, %v4344, 0
        %v4627 = vsel %vm2266, %v4345, 0
        %v4630 = vsel %vm2266, %v4346, 0
        %v4633 = vsel %vm2266, %v4347, 0
        %v4636 = vsel %vm2266, %v4348, 0
        %4638 = vmatprep.subr.bf16.mxu0 0
        %4639 = vmatpush1.bf16.msra.mxu0 0
        %4640 = vmatprep.subr.bf16.mxu0 0
        %4641 = vmatpush1.bf16.msra.mxu0 0
        %4642 = vmatprep.subr.bf16.mxu0 0
        %4643 = vmatpush1.bf16.msra.mxu0 0
        %4644 = vmatprep.subr.bf16.mxu0 0
        %4645 = vmatpush1.bf16.msra.mxu0 0
        %4646 = vmatprep.subr.bf16.mxu0 0
        %4647 = vmatpush1.bf16.msra.mxu0 0
        %4648 = vmatprep.subr.bf16.mxu0 0
        %4649 = vmatpush1.bf16.msra.mxu0 0
        %4650 = vmatprep.subr.bf16.mxu0 0
        %4651 = vmatpush1.bf16.msra.mxu0 0
        %4652 = vmatprep.subr.bf16.mxu0 0
        %4653 = vmatpush1.bf16.msra.mxu0 %v4588
        %4654 = vmatprep.subr.bf16.mxu0 0
        %4655 = vmatpush2.bf16.msra.mxu0 0
        %4656 = vmatprep.subr.bf16.mxu0 0
        %4657 = vmatpush2.bf16.msra.mxu0 0
        %4658 = vmatprep.subr.bf16.mxu0 0
        %4659 = vmatpush2.bf16.msra.mxu0 0
        %4660 = vmatprep.subr.bf16.mxu0 0
        %4661 = vmatpush2.bf16.msra.mxu0 0
        %4662 = vmatprep.subr.bf16.mxu0 0
        %4663 = vmatpush2.bf16.msra.mxu0 0
        %4664 = vmatprep.subr.bf16.mxu0 0
        %4665 = vmatpush2.bf16.msra.mxu0 0
        %4666 = vmatprep.subr.bf16.mxu0 0
        %4667 = vmatpush2.bf16.msra.mxu0 0
        %4668 = vmatprep.subr.bf16.mxu0 0
        %4669 = vmatpush2.bf16.msra.mxu0 0
        %4670 = vmatprep.mubr.bf16.mxu0 0
        %4671 = vmatmul.mubr.bf16.gmra.mxu0 %v4591
        %v4672 = vpop.f32.mrf.mxu0
        %v4673 = vadd.f32 %v4458, %v4672
        %v4674 = vpop.f32.mrf.mxu0
        %v4675 = vpop.f32.mrf.mxu0
        %v4676 = vadd.f32 %v4461, %v4675
        %v4677 = vpop.f32.mrf.mxu0
        %4678 = vmatprep.mubr.bf16.mxu0 0
        %4679 = vmatmul.mubr.bf16.gmra.mxu0 %v4594
        %v4680 = vpop.f32.mrf.mxu0
        %v4681 = vadd.f32 %v4466, %v4680
        %v4682 = vpop.f32.mrf.mxu0
        %v4683 = vpop.f32.mrf.mxu0
        %v4684 = vadd.f32 %v4469, %v4683
        %v4685 = vpop.f32.mrf.mxu0
        %4686 = vmatprep.mubr.bf16.mxu0 0
        %4687 = vmatmul.mubr.bf16.gmra.mxu0 %v4597
        %v4688 = vpop.f32.mrf.mxu0
        %v4689 = vadd.f32 %v4474, %v4688
        %v4690 = vpop.f32.mrf.mxu0
        %v4691 = vpop.f32.mrf.mxu0
        %v4692 = vadd.f32 %v4477, %v4691
        %v4693 = vpop.f32.mrf.mxu0
        %4694 = vmatprep.mubr.bf16.mxu0 0
        %4695 = vmatmul.mubr.bf16.gmra.mxu0 %v4600
        %v4696 = vpop.f32.mrf.mxu0
        %v4697 = vadd.f32 %v4482, %v4696
        %v4698 = vpop.f32.mrf.mxu0
        %v4699 = vpop.f32.mrf.mxu0
        %v4700 = vadd.f32 %v4485, %v4699
        %v4701 = vpop.f32.mrf.mxu0
        %4702 = vmatprep.mubr.bf16.mxu0 0
        %4703 = vmatmul.mubr.bf16.gmra.mxu0 %v4603
        %v4704 = vpop.f32.mrf.mxu0
        %v4705 = vadd.f32 %v4490, %v4704
        %v4706 = vpop.f32.mrf.mxu0
        %v4707 = vpop.f32.mrf.mxu0
        %v4708 = vadd.f32 %v4493, %v4707
        %v4709 = vpop.f32.mrf.mxu0
        %4710 = vmatprep.mubr.bf16.mxu0 0
        %4711 = vmatmul.mubr.bf16.gmra.mxu0 %v4606
        %v4712 = vpop.f32.mrf.mxu0
        %v4713 = vadd.f32 %v4498, %v4712
        %v4714 = vpop.f32.mrf.mxu0
        %v4715 = vpop.f32.mrf.mxu0
        %v4716 = vadd.f32 %v4501, %v4715
        %v4717 = vpop.f32.mrf.mxu0
        %4718 = vmatprep.mubr.bf16.mxu0 0
        %4719 = vmatmul.mubr.bf16.gmra.mxu0 %v4609
        %v4720 = vpop.f32.mrf.mxu0
        %v4721 = vadd.f32 %v4506, %v4720
        %v4722 = vpop.f32.mrf.mxu0
        %v4723 = vpop.f32.mrf.mxu0
        %v4724 = vadd.f32 %v4509, %v4723
        %v4725 = vpop.f32.mrf.mxu0
        %4726 = vmatprep.mubr.bf16.mxu0 0
        %4727 = vmatmul.mubr.bf16.gmra.mxu0 %v4612
        %v4728 = vpop.f32.mrf.mxu0
        %v4729 = vadd.f32 %v4514, %v4728
        %v4730 = vpop.f32.mrf.mxu0
        %v4731 = vpop.f32.mrf.mxu0
        %v4732 = vadd.f32 %v4517, %v4731
        %v4733 = vpop.f32.mrf.mxu0
        %4734 = vmatprep.mubr.bf16.mxu0 0
        %4735 = vmatmul.mubr.bf16.gmra.mxu0 %v4615
        %v4736 = vpop.f32.mrf.mxu0
        %v4737 = vadd.f32 %v4522, %v4736
        %v4738 = vpop.f32.mrf.mxu0
        %v4739 = vpop.f32.mrf.mxu0
        %v4740 = vadd.f32 %v4525, %v4739
        %v4741 = vpop.f32.mrf.mxu0
        %4742 = vmatprep.mubr.bf16.mxu0 0
        %4743 = vmatmul.mubr.bf16.gmra.mxu0 %v4618
        %v4744 = vpop.f32.mrf.mxu0
        %v4745 = vadd.f32 %v4530, %v4744
        %v4746 = vpop.f32.mrf.mxu0
        %v4747 = vpop.f32.mrf.mxu0
        %v4748 = vadd.f32 %v4533, %v4747
        %v4749 = vpop.f32.mrf.mxu0
        %4750 = vmatprep.mubr.bf16.mxu0 0
        %4751 = vmatmul.mubr.bf16.gmra.mxu0 %v4621
        %v4752 = vpop.f32.mrf.mxu0
        %v4753 = vadd.f32 %v4538, %v4752
        %v4754 = vpop.f32.mrf.mxu0
        %v4755 = vpop.f32.mrf.mxu0
        %v4756 = vadd.f32 %v4541, %v4755
        %v4757 = vpop.f32.mrf.mxu0
        %4758 = vmatprep.mubr.bf16.mxu0 0
        %4759 = vmatmul.mubr.bf16.gmra.mxu0 %v4624
        %v4760 = vpop.f32.mrf.mxu0
        %v4761 = vadd.f32 %v4546, %v4760
        %v4762 = vpop.f32.mrf.mxu0
        %v4763 = vpop.f32.mrf.mxu0
        %v4764 = vadd.f32 %v4549, %v4763
        %v4765 = vpop.f32.mrf.mxu0
        %4766 = vmatprep.mubr.bf16.mxu0 0
        %4767 = vmatmul.mubr.bf16.gmra.mxu0 %v4627
        %v4768 = vpop.f32.mrf.mxu0
        %v4769 = vadd.f32 %v4554, %v4768
        %v4770 = vpop.f32.mrf.mxu0
        %v4771 = vpop.f32.mrf.mxu0
        %v4772 = vadd.f32 %v4557, %v4771
        %v4773 = vpop.f32.mrf.mxu0
        %4774 = vmatprep.mubr.bf16.mxu0 0
        %4775 = vmatmul.mubr.bf16.gmra.mxu0 %v4630
        %v4776 = vpop.f32.mrf.mxu0
        %v4777 = vadd.f32 %v4562, %v4776
        %v4778 = vpop.f32.mrf.mxu0
        %v4779 = vpop.f32.mrf.mxu0
        %v4780 = vadd.f32 %v4565, %v4779
        %v4781 = vpop.f32.mrf.mxu0
        %4782 = vmatprep.mubr.bf16.mxu0 0
        %4783 = vmatmul.mubr.bf16.gmra.mxu0 %v4633
        %v4784 = vpop.f32.mrf.mxu0
        %v4785 = vadd.f32 %v4570, %v4784
        %v4786 = vpop.f32.mrf.mxu0
        %v4787 = vpop.f32.mrf.mxu0
        %v4788 = vadd.f32 %v4573, %v4787
        %v4789 = vpop.f32.mrf.mxu0
        %4790 = vmatprep.mubr.bf16.mxu0 0
        %4791 = vmatmul.mubr.bf16.gmra.mxu0 %v4636
        %v4792 = vpop.f32.mrf.mxu0
        %v4793 = vadd.f32 %v4578, %v4792
        %v4794 = vpop.f32.mrf.mxu0
        %v4795 = vpop.f32.mrf.mxu0
        %v4796 = vadd.f32 %v4581, %v4795
        %v4797 = vpop.f32.mrf.mxu0
        %4798 = vdwg.mxu0
        %v4799 = vld [vmem:[%s11] sm:$0x1]
        %v4801 = vlaneseq
        %v4802 = vshrl.u32 %v4801, 7
        %v4803 = vsub.s32 0, %v4802
        %v4804 = vrot.slane %v4799, %v4803
        %v4806 = vadd.f32 %v4673, %v4804
        %v4807 = vadd.f32 %v4676, %v4804
        %v4808 = vadd.f32 %v4681, %v4804
        %v4809 = vadd.f32 %v4684, %v4804
        %v4810 = vadd.f32 %v4689, %v4804
        %v4811 = vadd.f32 %v4692, %v4804
        %v4812 = vadd.f32 %v4697, %v4804
        %v4813 = vadd.f32 %v4700, %v4804
        %v4814 = vadd.f32 %v4705, %v4804
        %v4815 = vadd.f32 %v4708, %v4804
        %v4816 = vadd.f32 %v4713, %v4804
        %v4817 = vadd.f32 %v4716, %v4804
        %v4818 = vadd.f32 %v4721, %v4804
        %v4819 = vadd.f32 %v4724, %v4804
        %v4820 = vadd.f32 %v4729, %v4804
        %v4821 = vadd.f32 %v4732, %v4804
        %v4822 = vadd.f32 %v4737, %v4804
        %v4823 = vadd.f32 %v4740, %v4804
        %v4824 = vadd.f32 %v4745, %v4804
        %v4825 = vadd.f32 %v4748, %v4804
        %v4826 = vadd.f32 %v4753, %v4804
        %v4827 = vadd.f32 %v4756, %v4804
        %v4828 = vadd.f32 %v4761, %v4804
        %v4829 = vadd.f32 %v4764, %v4804
        %v4830 = vadd.f32 %v4769, %v4804
        %v4831 = vadd.f32 %v4772, %v4804
        %v4832 = vadd.f32 %v4777, %v4804
        %v4833 = vadd.f32 %v4780, %v4804
        %v4834 = vadd.f32 %v4785, %v4804
        %v4835 = vadd.f32 %v4788, %v4804
        %v4836 = vadd.f32 %v4793, %v4804
        %v4837 = vadd.f32 %v4796, %v4804
        %v4838 = vadd.f32 %v4806, %v433
        %v4839 = vadd.f32 %v4807, %v434
        %v4840 = vadd.f32 %v4808, %v435
        %v4841 = vadd.f32 %v4809, %v436
        %v4842 = vadd.f32 %v4810, %v437
        %v4843 = vadd.f32 %v4811, %v438
        %v4844 = vadd.f32 %v4812, %v439
        %v4845 = vadd.f32 %v4813, %v440
        %v4846 = vadd.f32 %v4814, %v441
        %v4847 = vadd.f32 %v4815, %v442
        %v4848 = vadd.f32 %v4816, %v443
        %v4849 = vadd.f32 %v4817, %v444
        %v4850 = vadd.f32 %v4818, %v445
        %v4851 = vadd.f32 %v4819, %v446
        %v4852 = vadd.f32 %v4820, %v447
        %v4853 = vadd.f32 %v4821, %v448
        %v4854 = vadd.f32 %v4822, %v449
        %v4855 = vadd.f32 %v4823, %v450
        %v4856 = vadd.f32 %v4824, %v451
        %v4857 = vadd.f32 %v4825, %v452
        %v4858 = vadd.f32 %v4826, %v453
        %v4859 = vadd.f32 %v4827, %v454
        %v4860 = vadd.f32 %v4828, %v455
        %v4861 = vadd.f32 %v4829, %v456
        %v4862 = vadd.f32 %v4830, %v457
        %v4863 = vadd.f32 %v4831, %v458
        %v4864 = vadd.f32 %v4832, %v459
        %v4865 = vadd.f32 %v4833, %v460
        %v4866 = vadd.f32 %v4834, %v461
        %v4867 = vadd.f32 %v4835, %v462
        %v4868 = vadd.f32 %v4836, %v463
        %v4869 = vadd.f32 %v4837, %v464
        %v4870 = vmax.f32 %v4838, 0.0
        %v4871 = vmax.f32 %v4839, 0.0
        %v4872 = vmax.f32 %v4840, 0.0
        %v4873 = vmax.f32 %v4841, 0.0
        %v4874 = vmax.f32 %v4842, 0.0
        %v4875 = vmax.f32 %v4843, 0.0
        %v4876 = vmax.f32 %v4844, 0.0
        %v4877 = vmax.f32 %v4845, 0.0
        %v4878 = vmax.f32 %v4846, 0.0
        %v4879 = vmax.f32 %v4847, 0.0
        %v4880 = vmax.f32 %v4848, 0.0
        %v4881 = vmax.f32 %v4849, 0.0
        %v4882 = vmax.f32 %v4850, 0.0
        %v4883 = vmax.f32 %v4851, 0.0
        %v4884 = vmax.f32 %v4852, 0.0
        %v4885 = vmax.f32 %v4853, 0.0
        %v4886 = vmax.f32 %v4854, 0.0
        %v4887 = vmax.f32 %v4855, 0.0
        %v4888 = vmax.f32 %v4856, 0.0
        %v4889 = vmax.f32 %v4857, 0.0
        %v4890 = vmax.f32 %v4858, 0.0
        %v4891 = vmax.f32 %v4859, 0.0
        %v4892 = vmax.f32 %v4860, 0.0
        %v4893 = vmax.f32 %v4861, 0.0
        %v4894 = vmax.f32 %v4862, 0.0
        %v4895 = vmax.f32 %v4863, 0.0
        %v4896 = vmax.f32 %v4864, 0.0
        %v4897 = vmax.f32 %v4865, 0.0
        %v4898 = vmax.f32 %v4866, 0.0
        %v4899 = vmax.f32 %v4867, 0.0
        %v4900 = vmax.f32 %v4868, 0.0
        %v4901 = vmax.f32 %v4869, 0.0
        %4902 = vst [vmem:[%s431] sm:$0xff] %v4870
        %4903 = vst [vmem:[%s431 + $0x8] sm:$0xff] %v4871
        %4904 = vst [vmem:[%s431 + $0x10] sm:$0xff] %v4872
        %4905 = vst [vmem:[%s431 + $0x18] sm:$0xff] %v4873
        %4906 = vst [vmem:[%s431 + $0x20] sm:$0xff] %v4874
        %4907 = vst [vmem:[%s431 + $0x28] sm:$0xff] %v4875
        %4908 = vst [vmem:[%s431 + $0x30] sm:$0xff] %v4876
        %4909 = vst [vmem:[%s431 + $0x38] sm:$0xff] %v4877
        %4910 = vst [vmem:[%s431 + $0x40] sm:$0xff] %v4878
        %4911 = vst [vmem:[%s431 + $0x48] sm:$0xff] %v4879
        %4912 = vst [vmem:[%s431 + $0x50] sm:$0xff] %v4880
        %4913 = vst [vmem:[%s431 + $0x58] sm:$0xff] %v4881
        %4914 = vst [vmem:[%s431 + $0x60] sm:$0xff] %v4882
        %4915 = vst [vmem:[%s431 + $0x68] sm:$0xff] %v4883
        %4916 = vst [vmem:[%s431 + $0x70] sm:$0xff] %v4884
        %4917 = vst [vmem:[%s431 + $0x78] sm:$0xff] %v4885
        %4918 = vst [vmem:[%s431 + $0x80] sm:$0xff] %v4886
        %4919 = vst [vmem:[%s431 + $0x88] sm:$0xff] %v4887
        %4920 = vst [vmem:[%s431 + $0x90] sm:$0xff] %v4888
        %4921 = vst [vmem:[%s431 + $0x98] sm:$0xff] %v4889
        %4922 = vst [vmem:[%s431 + $0xa0] sm:$0xff] %v4890
        %4923 = vst [vmem:[%s431 + $0xa8] sm:$0xff] %v4891
        %4924 = vst [vmem:[%s431 + $0xb0] sm:$0xff] %v4892
        %4925 = vst [vmem:[%s431 + $0xb8] sm:$0xff] %v4893
        %4926 = vst [vmem:[%s431 + $0xc0] sm:$0xff] %v4894
        %4927 = vst [vmem:[%s431 + $0xc8] sm:$0xff] %v4895
        %4928 = vst [vmem:[%s431 + $0xd0] sm:$0xff] %v4896
        %4929 = vst [vmem:[%s431 + $0xd8] sm:$0xff] %v4897
        %4930 = vst [vmem:[%s431 + $0xe0] sm:$0xff] %v4898
        %4931 = vst [vmem:[%s431 + $0xe8] sm:$0xff] %v4899
        %4932 = vst [vmem:[%s431 + $0xf0] sm:$0xff] %v4900
        %4933 = vst [vmem:[%s431 + $0xf8] sm:$0xff] %v4901
        %s4934 = sand.u32 %s294, 1
        %s4935 = scalar_lea.sflag [#allocation4], %s4934
        %s4936 = sand.u32 %s294, 1
        %s4937 = smul.addr %s4936, 256
        %s4938 = scalar_lea.vmem [#allocation5], %s4937
        // Predicated region
        $region73: #{hybrid_block_forward.1} parent=67 // pred_check
          %p4939 = pneg %p304
        $region74: #{hybrid_block_forward.1} parent=67 // pred_check_branch
          %4941 = sbr.rel (%p4939) target = $region76
        $region75: #{hybrid_block_forward.1} parent=67 // pred_region
          %s4943 = ssub.s32 4096, 4096
          %4944 = vsyncadd %s4935, %s4943
          %s4945 = smul.addr %s29, 32
          %s4946 = smul.addr %s4945, 128
          %s4947 = scalar_lea.hbm %s12, %s4946
          %s4948 = sshll.u32 %s4938, 4
          %s4949 = int_to_ptr.vmem [resolvable:$true] %s4948
          %4954 = dma.vmem_to_hbm [thread:$0]  %s4949, 4096, %s4947, %s4935, 128, 128, 8
        $region76: #{hybrid_block_forward.1} parent=67 // pred_fallthru
          _
      $region68: #{hybrid_block_forward.1} parent=5 // pred_fallthru
        _
      %p4955 = scmp.le.s32.totalorder 2, %s24
      // Predicated region
      $region77: #{hybrid_block_forward.1} parent=5 // pred_check
        %p4956 = pneg %p4955
      $region78: #{hybrid_block_forward.1} parent=5 // pred_check_branch
        %4958 = sbr.rel (%p4956) target = $region80
      $region79: #{hybrid_block_forward.1} parent=5 // pred_region
        %s4959 = ssub.s32 %s24, 2
        // Predicated region
        $region81: #{hybrid_block_forward.1} parent=79 // pred_check
          %p4960 = pneg %p310
        $region82: #{hybrid_block_forward.1} parent=79 // pred_check_branch
          %4962 = sbr.rel (%p4960) target = $region84
        $region83: #{hybrid_block_forward.1} parent=79 // pred_region
          %s4963 = sand.u32 %s295, 1
          %s4964 = scalar_lea.sflag [#allocation4], %s4963
          %s4965 = sand.u32 %s295, 1
          %s4966 = smul.addr %s4965, 256
          %s4967 = scalar_lea.vmem [#allocation5], %s4966
          %4968 = dma.done %s4964, 4096
        $region84: #{hybrid_block_forward.1} parent=79 // pred_fallthru
          _
      $region80: #{hybrid_block_forward.1} parent=5 // pred_fallthru
        _
    $region6: #{hybrid_block_forward.1} parent=1 // loop_footer
      %s28 = sadd.s32 1, %s24
    $region7: #{hybrid_block_forward.1} parent=1 // loop_footer_branch
      %23 = sbr.rel target = $region3
    $region8: #{hybrid_block_forward.1} parent=1 // loop_exit
      _
    %4969 = vsyncpa [#allocation3], 1
    %s4970 = scalar_lea.sflag [#allocation3], 1
    %4971 = vsyncpa %s4970, 1
    %4972 = vsyncpa [#allocation4], 1
    %s4973 = scalar_lea.sflag [#allocation4], 1
    %4974 = vsyncpa %s4973, 1

</llo_original>
